<compile_context>
chip_gen: v7x
topology: tpu7x:2x2x1
jax: 0.10.0
libtpu: 0.0.40
codegen_flags: <defaults>
</compile_context>

<pallas_src>
import jax
import jax.numpy as jnp
from jax.experimental import pallas as pl
from jax.experimental.pallas import tpu as pltpu

# ---------------- scaled-down config (bert-base-uncased analogue) -----------
VOCAB = 100
MAX_POS = 64
TYPE_VOCAB = 2
HIDDEN = 64
HEADS = 4
HEAD_DIM = HIDDEN // HEADS
INTER = 128
LAYERS = 2
NUM_LABELS = 23
CLS_PAD = 128          # lane-dense classifier width; sliced to NUM_LABELS outside
LN_EPS = 1e-12         # BERT layer_norm_eps

_SQRT1_2 = 0.7071067811865476

# rows of the packed per-layer vector table (width = 3*HIDDEN, zero padded)
_R_BQKV, _R_BO, _R_LN1G, _R_LN1B, _R_B1, _R_B2, _R_LN2G, _R_LN2B = range(8)
VEC_W = 3 * HIDDEN
# rows of the packed misc vector table (width = CLS_PAD)
_M_EMBG, _M_EMBB, _M_POOLB, _M_CLSB = range(4)


# ------------------------------ in-kernel helpers ----------------------------
def _erf_approx(x):
    # Abramowitz & Stegun 7.1.26 (|err| <= 1.5e-7): matches BERT's exact-erf
    # GELU to below f32 matmul noise, using only VPU/EUP-friendly ops.
    a1, a2, a3, a4, a5 = (0.254829592, -0.284496736, 1.421413741,
                          -1.453152027, 1.061405429)
    p = 0.3275911
    sgn = jnp.where(x >= 0.0, 1.0, -1.0)
    ax = jnp.abs(x)
    t = 1.0 / (1.0 + p * ax)
    poly = ((((a5 * t + a4) * t + a3) * t + a2) * t + a1) * t
    return sgn * (1.0 - poly * jnp.exp(-ax * ax))


def _gelu_erf(x):
    return 0.5 * x * (1.0 + _erf_approx(x * _SQRT1_2))


def _layer_norm(x, g, b):
    mu = jnp.mean(x, axis=-1, keepdims=True)
    var = jnp.mean(jnp.square(x - mu), axis=-1, keepdims=True)
    return (x - mu) * jax.lax.rsqrt(var + LN_EPS) * g + b


# ------------------------------ fused BERT kernel ----------------------------
def _bert_fused_kernel(emb_ref, mask_ref,
                       wqkv_ref, wo_ref, w1_ref, w2_ref, lvec_ref,
                       pw_ref, cw_ref, mvec_ref,
                       logits_ref, ctx_scratch):
    # additive key-padding bias built in-kernel from the int32 mask row: (1, S)
    bias = jnp.where(mask_ref[...] > 0, 0.0, -1e9).astype(jnp.float32)

    mvec = mvec_ref[...]                                            # (4, 128) f32
    h = _layer_norm(emb_ref[...],
                    mvec[_M_EMBG:_M_EMBG + 1, :HIDDEN],
                    mvec[_M_EMBB:_M_EMBB + 1, :HIDDEN])             # (S, H) f32

    for l in range(LAYERS):                                         # static unroll (tiny L)
        vecs = lvec_ref[l]                                          # (8, 3H) f32
        bqkv = vecs[_R_BQKV:_R_BQKV + 1, :]                         # (1, 3H) (Q part pre-scaled)
        bo = vecs[_R_BO:_R_BO + 1, :HIDDEN]
        ln1g = vecs[_R_LN1G:_R_LN1G + 1, :HIDDEN]
        ln1b = vecs[_R_LN1B:_R_LN1B + 1, :HIDDEN]
        b1 = vecs[_R_B1:_R_B1 + 1, :INTER]
        b2 = vecs[_R_B2:_R_B2 + 1, :HIDDEN]
        ln2g = vecs[_R_LN2G:_R_LN2G + 1, :HIDDEN]
        ln2b = vecs[_R_LN2B:_R_LN2B + 1, :HIDDEN]

        # fused QKV projection: one (S,H) @ (H,3H) bf16 matmul, f32 accumulate.
        qkv = jnp.dot(h.astype(jnp.bfloat16), wqkv_ref[l],
                      preferred_element_type=jnp.float32) + bqkv
        qkv_bf = qkv.astype(jnp.bfloat16)

        # multi-head attention; each head's context written into a static lane
        # slice of the (S,H) scratch so the output projection is ONE matmul.
        for hh in range(HEADS):                                     # static unroll
            lo = hh * HEAD_DIM
            qh = qkv_bf[:, lo:lo + HEAD_DIM]                        # pre-scaled at init
            kh = qkv_bf[:, HIDDEN + lo:HIDDEN + lo + HEAD_DIM]
            vh = qkv_bf[:, 2 * HIDDEN + lo:2 * HIDDEN + lo + HEAD_DIM]
            s = jax.lax.dot_general(qh, kh, (((1,), (1,)), ((), ())),
                                    preferred_element_type=jnp.float32) + bias
            s = s - jnp.max(s, axis=-1, keepdims=True)
            p = jnp.exp(s)
            p = p * pl.reciprocal(jnp.sum(p, axis=-1, keepdims=True))   # exact
            ctx_scratch[:, lo:lo + HEAD_DIM] = jnp.dot(
                p.astype(jnp.bfloat16), vh, preferred_element_type=jnp.float32)

        attn_out = jnp.dot(ctx_scratch[...].astype(jnp.bfloat16), wo_ref[l],
                           preferred_element_type=jnp.float32) + bo
        h = _layer_norm(attn_out + h, ln1g, ln1b)

        # feed-forward (erf GELU, matching HF BERT); f32 elementwise math.
        ff = _gelu_erf(jnp.dot(h.astype(jnp.bfloat16), w1_ref[l],
                               preferred_element_type=jnp.float32) + b1)
        ff = jnp.dot(ff.astype(jnp.bfloat16), w2_ref[l],
                     preferred_element_type=jnp.float32) + b2
        h = _layer_norm(ff + h, ln2g, ln2b)

    # pooler: [CLS] is row 0 of this sequence (direct row slice, no selector matmul)
    cls_tok = h[0:1, :]                                             # (1, H)
    pooled = jnp.tanh(jnp.dot(cls_tok.astype(jnp.bfloat16), pw_ref[...],
                              preferred_element_type=jnp.float32)
                      + mvec[_M_POOLB:_M_POOLB + 1, :HIDDEN])
    # TODO(synk): nn.Dropout(0.3) is identity in eval mode; training-time dropout
    # is not applied here.
    logits_ref[...] = (jnp.dot(pooled.astype(jnp.bfloat16), cw_ref[...],
                               preferred_element_type=jnp.float32)
                       + mvec[_M_CLSB:_M_CLSB + 1, :])


# ------------------------------ params / wrapper -----------------------------
def init_params(key):
    keys = iter(jax.random.split(key, 16))
    nk = lambda: next(keys)
    w = lambda *shape: jax.random.normal(nk(), shape, jnp.float32) * 0.02

    # fold 1/sqrt(head_dim) into the Q columns (and Q bias) at init time
    scale = 1.0 / float(HEAD_DIM) ** 0.5
    wqkv = w(LAYERS, HIDDEN, 3 * HIDDEN)
    wqkv = wqkv.at[:, :, :HIDDEN].multiply(scale)
    bqkv = jnp.zeros((LAYERS, 3 * HIDDEN), jnp.float32)
    bqkv = bqkv.at[:, :HIDDEN].multiply(scale)

    # pack the 8 tiny per-layer vectors into ONE (LAYERS, 8, 3H) f32 table
    def row(vec, width):
        return jnp.pad(vec, ((0, 0), (0, VEC_W - width)))
    layer_vecs = jnp.stack([
        row(bqkv, 3 * HIDDEN),                                       # _R_BQKV
        row(jnp.zeros((LAYERS, HIDDEN), jnp.float32), HIDDEN),       # _R_BO
        row(jnp.ones((LAYERS, HIDDEN), jnp.float32), HIDDEN),        # _R_LN1G
        row(jnp.zeros((LAYERS, HIDDEN), jnp.float32), HIDDEN),       # _R_LN1B
        row(jnp.zeros((LAYERS, INTER), jnp.float32), INTER),         # _R_B1
        row(jnp.zeros((LAYERS, HIDDEN), jnp.float32), HIDDEN),       # _R_B2
        row(jnp.ones((LAYERS, HIDDEN), jnp.float32), HIDDEN),        # _R_LN2G
        row(jnp.zeros((LAYERS, HIDDEN), jnp.float32), HIDDEN),       # _R_LN2B
    ], axis=1).astype(jnp.float32)                                   # (L, 8, 192)

    # pack emb-LN / pooler / classifier biases into ONE (4, 128) f32 table
    misc_vecs = jnp.stack([
        jnp.pad(jnp.ones((HIDDEN,), jnp.float32), (0, CLS_PAD - HIDDEN)),   # emb_ln_g
        jnp.zeros((CLS_PAD,), jnp.float32),                                 # emb_ln_b
        jnp.zeros((CLS_PAD,), jnp.float32),                                 # pool_b
        jnp.zeros((CLS_PAD,), jnp.float32),                                 # cls_b
    ], axis=0)

    cls_w = w(HIDDEN, NUM_LABELS)
    return {
        "word_emb": w(VOCAB, HIDDEN),
        "pos_emb": w(MAX_POS, HIDDEN),
        "type_emb": w(TYPE_VOCAB, HIDDEN),
        # matmul weights stored bf16 (MXU-native on v5e/v6e/v7x); f32 accumulate
        "wqkv": wqkv.astype(jnp.bfloat16),
        "wo": w(LAYERS, HIDDEN, HIDDEN).astype(jnp.bfloat16),
        "w1": w(LAYERS, HIDDEN, INTER).astype(jnp.bfloat16),
        "w2": w(LAYERS, INTER, HIDDEN).astype(jnp.bfloat16),
        "layer_vecs": layer_vecs,
        "pool_w": w(HIDDEN, HIDDEN).astype(jnp.bfloat16),
        # lane-dense classifier: pad output dim to 128, slice outside
        "cls_w": jnp.pad(cls_w, ((0, 0), (0, CLS_PAD - NUM_LABELS))).astype(jnp.bfloat16),
        "misc_vecs": misc_vecs,
    }


def bert_base_forward(params, ids, mask, token_type_ids):
    """Mirrors BERTBase.forward: BertModel -> pooled [CLS] -> dropout -> Linear."""
    B, S = ids.shape

    # --- embedding gathers (plain-JAX glue; XLA fuses the adds into the gathers)
    pos_ids = jnp.broadcast_to(jnp.arange(S, dtype=jnp.int32), (B, S))
    we = jnp.take(params["word_emb"], ids.reshape(-1), axis=0)
    pe = jnp.take(params["pos_emb"], pos_ids.reshape(-1), axis=0)
    te = jnp.take(params["type_emb"], token_type_ids.reshape(-1), axis=0)
    emb = (we + pe + te).astype(jnp.float32).reshape(B, S, HIDDEN)   # (B, S, H)
    mask3 = mask.reshape(B, 1, S).astype(jnp.int32)                  # (B, 1, S)

    def full(arr):  # whole-array resident block (constant block index)
        return pl.BlockSpec(arr.shape, lambda b: (0,) * arr.ndim)

    logits_pad = pl.pallas_call(
        _bert_fused_kernel,
        out_shape=jax.ShapeDtypeStruct((B, 1, CLS_PAD), jnp.float32),
        grid=(B,),
        in_specs=[
            pl.BlockSpec((None, S, HIDDEN), lambda b: (b, 0, 0)),    # emb (per sequence)
            pl.BlockSpec((None, 1, S), lambda b: (b, 0, 0)),         # int mask row
            full(params["wqkv"]), full(params["wo"]),
            full(params["w1"]), full(params["w2"]),
            full(params["layer_vecs"]),
            full(params["pool_w"]), full(params["cls_w"]),
            full(params["misc_vecs"]),
        ],
        out_specs=pl.BlockSpec((None, 1, CLS_PAD), lambda b: (b, 0, 0)),
        scratch_shapes=[pltpu.VMEM((S, HIDDEN), jnp.float32)],       # per-head ctx slab
        compiler_params=pltpu.CompilerParams(
            dimension_semantics=("parallel",)),
    )(emb, mask3,
      params["wqkv"], params["wo"], params["w1"], params["w2"],
      params["layer_vecs"], params["pool_w"], params["cls_w"],
      params["misc_vecs"])
    return logits_pad[:, 0, :NUM_LABELS]


if __name__ == "__main__":
    key = jax.random.PRNGKey(0)
    pkey, ikey = jax.random.split(key)
    params = init_params(pkey)

    B, S = 2, 8
    ids = jax.random.randint(ikey, (B, S), 0, VOCAB, dtype=jnp.int32)
    mask = jnp.ones((B, S), dtype=jnp.int32)
    token_type_ids = jnp.zeros((B, S), dtype=jnp.int32)

    logits = jax.jit(bert_base_forward)(params, ids, mask, token_type_ids)
    jax.block_until_ready(logits)
    assert logits.shape == (B, NUM_LABELS) and logits.dtype == jnp.float32
    print("KERNEL_OK")
</pallas_src>

<mosaic_0001>
module attributes {stable_mosaic.version = 11 : i64} {
  func.func @_bert_fused_kernel(%arg0: i32, %arg1: memref<1x8x64xf32, #tpu.memory_space<vmem>>, %arg2: memref<1x1x8xi32, #tpu.memory_space<vmem>>, %arg3: memref<2x64x192xbf16, #tpu.memory_space<vmem>>, %arg4: memref<2x64x64xbf16, #tpu.memory_space<vmem>>, %arg5: memref<2x64x128xbf16, #tpu.memory_space<vmem>>, %arg6: memref<2x128x64xbf16, #tpu.memory_space<vmem>>, %arg7: memref<2x8x192xf32, #tpu.memory_space<vmem>>, %arg8: memref<64x64xbf16, #tpu.memory_space<vmem>>, %arg9: memref<64x128xbf16, #tpu.memory_space<vmem>>, %arg10: memref<4x128xf32, #tpu.memory_space<vmem>>, %arg11: memref<1x1x128xf32, #tpu.memory_space<vmem>>, %arg12: memref<8x64xf32, #tpu.memory_space<vmem>>) attributes {dimension_semantics = [#tpu.dimension_semantics<parallel>], iteration_bounds = array<i64: 2>, scalar_prefetch = 0 : i64, scratch_operands = 1 : i64, tpu.core_type = #tpu.core_type<tc>, window_params = [{transform_indices = @transform_0, window_bounds = array<i64: 1, 8, 64>}, {transform_indices = @transform_1, window_bounds = array<i64: 1, 1, 8>}, {pipeline_mode = #tpu.pipeline_mode<synchronous>, transform_indices = @transform_2, window_bounds = array<i64: 2, 64, 192>}, {pipeline_mode = #tpu.pipeline_mode<synchronous>, transform_indices = @transform_3, window_bounds = array<i64: 2, 64, 64>}, {pipeline_mode = #tpu.pipeline_mode<synchronous>, transform_indices = @transform_4, window_bounds = array<i64: 2, 64, 128>}, {pipeline_mode = #tpu.pipeline_mode<synchronous>, transform_indices = @transform_5, window_bounds = array<i64: 2, 128, 64>}, {pipeline_mode = #tpu.pipeline_mode<synchronous>, transform_indices = @transform_6, window_bounds = array<i64: 2, 8, 192>}, {pipeline_mode = #tpu.pipeline_mode<synchronous>, transform_indices = @transform_7, window_bounds = array<i64: 64, 64>}, {pipeline_mode = #tpu.pipeline_mode<synchronous>, transform_indices = @transform_8, window_bounds = array<i64: 64, 128>}, {pipeline_mode = #tpu.pipeline_mode<synchronous>, transform_indices = @transform_9, window_bounds = array<i64: 4, 128>}, {transform_indices = @transform_10, window_bounds = array<i64: 1, 1, 128>}]} {
    %c0 = arith.constant 0 : index
    %c0_0 = arith.constant 0 : index
    %c0_1 = arith.constant 0 : index
    %0 = vector.load %arg2[%c0, %c0_0, %c0_1] : memref<1x1x8xi32, #tpu.memory_space<vmem>>, vector<1x1x8xi32>
    %1 = vector.shape_cast %0 : vector<1x1x8xi32> to vector<1x8xi32>
    %c0_i32 = arith.constant 0 : i32
    %2 = vector.broadcast %c0_i32 : i32 to vector<1x8xi32>
    %3 = arith.cmpi sgt, %1, %2 : vector<1x8xi32>
    %cst = arith.constant 0.000000e+00 : f32
    %cst_2 = arith.constant -1.000000e+09 : f32
    %4 = vector.broadcast %cst : f32 to vector<1x8xf32>
    %5 = vector.broadcast %cst_2 : f32 to vector<1x8xf32>
    %6 = arith.select %3, %4, %5 : vector<1x8xi1>, vector<1x8xf32>
    %c0_3 = arith.constant 0 : index
    %c0_4 = arith.constant 0 : index
    %7 = vector.load %arg10[%c0_3, %c0_4] : memref<4x128xf32, #tpu.memory_space<vmem>>, vector<4x128xf32>
    %c0_5 = arith.constant 0 : index
    %c0_6 = arith.constant 0 : index
    %c0_7 = arith.constant 0 : index
    %8 = vector.load %arg1[%c0_5, %c0_6, %c0_7] : memref<1x8x64xf32, #tpu.memory_space<vmem>>, vector<1x8x64xf32>
    %9 = vector.shape_cast %8 : vector<1x8x64xf32> to vector<8x64xf32>
    %10 = vector.extract_strided_slice %7 {offsets = [0, 0], sizes = [1, 64], strides = [1, 1]} : vector<4x128xf32> to vector<1x64xf32>
    %11 = vector.extract_strided_slice %7 {offsets = [1, 0], sizes = [1, 64], strides = [1, 1]} : vector<4x128xf32> to vector<1x64xf32>
    %cst_8 = arith.constant dense<0.000000e+00> : vector<8xf32>
    %12 = vector.multi_reduction <add>, %9, %cst_8 [1] : vector<8x64xf32> to vector<8xf32>
    %13 = vector.shape_cast %12 : vector<8xf32> to vector<8x1xf32>
    %cst_9 = arith.constant 6.400000e+01 : f32
    %14 = vector.broadcast %cst_9 : f32 to vector<8x1xf32>
    %15 = arith.divf %13, %14 : vector<8x1xf32>
    %16 = vector.broadcast %15 : vector<8x1xf32> to vector<8x64xf32>
    %17 = arith.subf %9, %16 : vector<8x64xf32>
    %18 = arith.mulf %17, %17 : vector<8x64xf32>
    %cst_10 = arith.constant dense<0.000000e+00> : vector<8xf32>
    %19 = vector.multi_reduction <add>, %18, %cst_10 [1] : vector<8x64xf32> to vector<8xf32>
    %20 = vector.shape_cast %19 : vector<8xf32> to vector<8x1xf32>
    %cst_11 = arith.constant 6.400000e+01 : f32
    %21 = vector.broadcast %cst_11 : f32 to vector<8x1xf32>
    %22 = arith.divf %20, %21 : vector<8x1xf32>
    %23 = vector.broadcast %15 : vector<8x1xf32> to vector<8x64xf32>
    %24 = arith.subf %9, %23 : vector<8x64xf32>
    %cst_12 = arith.constant 9.99999996E-13 : f32
    %25 = vector.broadcast %cst_12 : f32 to vector<8x1xf32>
    %26 = arith.addf %22, %25 : vector<8x1xf32>
    %27 = math.rsqrt %26 : vector<8x1xf32>
    %28 = vector.broadcast %27 : vector<8x1xf32> to vector<8x64xf32>
    %29 = arith.mulf %24, %28 : vector<8x64xf32>
    %30 = vector.broadcast %10 : vector<1x64xf32> to vector<8x64xf32>
    %31 = arith.mulf %29, %30 : vector<8x64xf32>
    %32 = vector.broadcast %11 : vector<1x64xf32> to vector<8x64xf32>
    %33 = arith.addf %31, %32 : vector<8x64xf32>
    %c0_13 = arith.constant 0 : index
    %c0_14 = arith.constant 0 : index
    %c0_15 = arith.constant 0 : index
    %34 = vector.load %arg7[%c0_13, %c0_14, %c0_15] : memref<2x8x192xf32, #tpu.memory_space<vmem>>, vector<1x8x192xf32>
    %35 = vector.shape_cast %34 : vector<1x8x192xf32> to vector<8x192xf32>
    %36 = vector.extract_strided_slice %35 {offsets = [0, 0], sizes = [1, 192], strides = [1, 1]} : vector<8x192xf32> to vector<1x192xf32>
    %37 = vector.extract_strided_slice %35 {offsets = [1, 0], sizes = [1, 64], strides = [1, 1]} : vector<8x192xf32> to vector<1x64xf32>
    %38 = vector.extract_strided_slice %35 {offsets = [2, 0], sizes = [1, 64], strides = [1, 1]} : vector<8x192xf32> to vector<1x64xf32>
    %39 = vector.extract_strided_slice %35 {offsets = [3, 0], sizes = [1, 64], strides = [1, 1]} : vector<8x192xf32> to vector<1x64xf32>
    %40 = vector.extract_strided_slice %35 {offsets = [4, 0], sizes = [1, 128], strides = [1, 1]} : vector<8x192xf32> to vector<1x128xf32>
    %41 = vector.extract_strided_slice %35 {offsets = [5, 0], sizes = [1, 64], strides = [1, 1]} : vector<8x192xf32> to vector<1x64xf32>
    %42 = vector.extract_strided_slice %35 {offsets = [6, 0], sizes = [1, 64], strides = [1, 1]} : vector<8x192xf32> to vector<1x64xf32>
    %43 = vector.extract_strided_slice %35 {offsets = [7, 0], sizes = [1, 64], strides = [1, 1]} : vector<8x192xf32> to vector<1x64xf32>
    %44 = arith.truncf %33 : vector<8x64xf32> to vector<8x64xbf16>
    %c0_16 = arith.constant 0 : index
    %c0_17 = arith.constant 0 : index
    %c0_18 = arith.constant 0 : index
    %45 = vector.load %arg3[%c0_16, %c0_17, %c0_18] : memref<2x64x192xbf16, #tpu.memory_space<vmem>>, vector<1x64x192xbf16>
    %46 = vector.shape_cast %45 : vector<1x64x192xbf16> to vector<64x192xbf16>
    %cst_19 = arith.constant dense<0.000000e+00> : vector<8x192xf32>
    %47 = tpu.matmul %44, %46, %cst_19 {dimension_numbers = #tpu.dot_dimension_numbers<[1], [0], [0], [1], [0, 0, 1, 1], [], []>} : vector<8x64xbf16>, vector<64x192xbf16>, vector<8x192xf32> -> vector<8x192xf32>
    %48 = vector.broadcast %36 : vector<1x192xf32> to vector<8x192xf32>
    %49 = arith.addf %47, %48 : vector<8x192xf32>
    %50 = arith.truncf %49 : vector<8x192xf32> to vector<8x192xbf16>
    %51 = vector.extract_strided_slice %50 {offsets = [0, 0], sizes = [8, 16], strides = [1, 1]} : vector<8x192xbf16> to vector<8x16xbf16>
    %52 = vector.extract_strided_slice %50 {offsets = [0, 64], sizes = [8, 16], strides = [1, 1]} : vector<8x192xbf16> to vector<8x16xbf16>
    %53 = vector.extract_strided_slice %50 {offsets = [0, 128], sizes = [8, 16], strides = [1, 1]} : vector<8x192xbf16> to vector<8x16xbf16>
    %cst_20 = arith.constant dense<0.000000e+00> : vector<8x8xf32>
    %54 = tpu.matmul %51, %52, %cst_20 {dimension_numbers = #tpu.dot_dimension_numbers<[1], [1], [0], [0], [0, 0, 1, 0], [], []>} : vector<8x16xbf16>, vector<8x16xbf16>, vector<8x8xf32> -> vector<8x8xf32>
    %55 = vector.broadcast %6 : vector<1x8xf32> to vector<8x8xf32>
    %56 = arith.addf %54, %55 : vector<8x8xf32>
    %cst_21 = arith.constant dense<0xFF800000> : vector<8xf32>
    %57 = vector.multi_reduction <maximumf>, %56, %cst_21 [1] : vector<8x8xf32> to vector<8xf32>
    %58 = vector.shape_cast %57 : vector<8xf32> to vector<8x1xf32>
    %59 = vector.broadcast %58 : vector<8x1xf32> to vector<8x8xf32>
    %60 = arith.subf %56, %59 : vector<8x8xf32>
    %61 = math.exp %60 : vector<8x8xf32>
    %cst_22 = arith.constant dense<0.000000e+00> : vector<8xf32>
    %62 = vector.multi_reduction <add>, %61, %cst_22 [1] : vector<8x8xf32> to vector<8xf32>
    %63 = vector.shape_cast %62 : vector<8xf32> to vector<8x1xf32>
    %64 = tpu.reciprocal %63 : vector<8x1xf32> -> vector<8x1xf32>
    %65 = vector.broadcast %64 : vector<8x1xf32> to vector<8x8xf32>
    %66 = arith.mulf %61, %65 : vector<8x8xf32>
    %67 = arith.truncf %66 : vector<8x8xf32> to vector<8x8xbf16>
    %cst_23 = arith.constant dense<0.000000e+00> : vector<8x16xf32>
    %68 = tpu.matmul %67, %53, %cst_23 {dimension_numbers = #tpu.dot_dimension_numbers<[1], [0], [0], [1], [0, 0, 1, 1], [], []>} : vector<8x8xbf16>, vector<8x16xbf16>, vector<8x16xf32> -> vector<8x16xf32>
    %c0_24 = arith.constant 0 : index
    %c0_25 = arith.constant 0 : index
    %69 = vector.load %arg12[%c0_24, %c0_25] : memref<8x64xf32, #tpu.memory_space<vmem>>, vector<8x16xf32>
    tpu.vector_store %arg12[%c0_24, %c0_25], %68 {strides = array<i32>} : memref<8x64xf32, #tpu.memory_space<vmem>>, vector<8x16xf32>,
    %70 = vector.extract_strided_slice %50 {offsets = [0, 16], sizes = [8, 16], strides = [1, 1]} : vector<8x192xbf16> to vector<8x16xbf16>
    %71 = vector.extract_strided_slice %50 {offsets = [0, 80], sizes = [8, 16], strides = [1, 1]} : vector<8x192xbf16> to vector<8x16xbf16>
    %72 = vector.extract_strided_slice %50 {offsets = [0, 144], sizes = [8, 16], strides = [1, 1]} : vector<8x192xbf16> to vector<8x16xbf16>
    %cst_26 = arith.constant dense<0.000000e+00> : vector<8x8xf32>
    %73 = tpu.matmul %70, %71, %cst_26 {dimension_numbers = #tpu.dot_dimension_numbers<[1], [1], [0], [0], [0, 0, 1, 0], [], []>} : vector<8x16xbf16>, vector<8x16xbf16>, vector<8x8xf32> -> vector<8x8xf32>
    %74 = vector.broadcast %6 : vector<1x8xf32> to vector<8x8xf32>
    %75 = arith.addf %73, %74 : vector<8x8xf32>
    %cst_27 = arith.constant dense<0xFF800000> : vector<8xf32>
    %76 = vector.multi_reduction <maximumf>, %75, %cst_27 [1] : vector<8x8xf32> to vector<8xf32>
    %77 = vector.shape_cast %76 : vector<8xf32> to vector<8x1xf32>
    %78 = vector.broadcast %77 : vector<8x1xf32> to vector<8x8xf32>
    %79 = arith.subf %75, %78 : vector<8x8xf32>
    %80 = math.exp %79 : vector<8x8xf32>
    %cst_28 = arith.constant dense<0.000000e+00> : vector<8xf32>
    %81 = vector.multi_reduction <add>, %80, %cst_28 [1] : vector<8x8xf32> to vector<8xf32>
    %82 = vector.shape_cast %81 : vector<8xf32> to vector<8x1xf32>
    %83 = tpu.reciprocal %82 : vector<8x1xf32> -> vector<8x1xf32>
    %84 = vector.broadcast %83 : vector<8x1xf32> to vector<8x8xf32>
    %85 = arith.mulf %80, %84 : vector<8x8xf32>
    %86 = arith.truncf %85 : vector<8x8xf32> to vector<8x8xbf16>
    %cst_29 = arith.constant dense<0.000000e+00> : vector<8x16xf32>
    %87 = tpu.matmul %86, %72, %cst_29 {dimension_numbers = #tpu.dot_dimension_numbers<[1], [0], [0], [1], [0, 0, 1, 1], [], []>} : vector<8x8xbf16>, vector<8x16xbf16>, vector<8x16xf32> -> vector<8x16xf32>
    %c0_30 = arith.constant 0 : index
    %c16 = arith.constant 16 : index
    %88 = vector.load %arg12[%c0_30, %c16] : memref<8x64xf32, #tpu.memory_space<vmem>>, vector<8x16xf32>
    tpu.vector_store %arg12[%c0_30, %c16], %87 {strides = array<i32>} : memref<8x64xf32, #tpu.memory_space<vmem>>, vector<8x16xf32>,
    %89 = vector.extract_strided_slice %50 {offsets = [0, 32], sizes = [8, 16], strides = [1, 1]} : vector<8x192xbf16> to vector<8x16xbf16>
    %90 = vector.extract_strided_slice %50 {offsets = [0, 96], sizes = [8, 16], strides = [1, 1]} : vector<8x192xbf16> to vector<8x16xbf16>
    %91 = vector.extract_strided_slice %50 {offsets = [0, 160], sizes = [8, 16], strides = [1, 1]} : vector<8x192xbf16> to vector<8x16xbf16>
    %cst_31 = arith.constant dense<0.000000e+00> : vector<8x8xf32>
    %92 = tpu.matmul %89, %90, %cst_31 {dimension_numbers = #tpu.dot_dimension_numbers<[1], [1], [0], [0], [0, 0, 1, 0], [], []>} : vector<8x16xbf16>, vector<8x16xbf16>, vector<8x8xf32> -> vector<8x8xf32>
    %93 = vector.broadcast %6 : vector<1x8xf32> to vector<8x8xf32>
    %94 = arith.addf %92, %93 : vector<8x8xf32>
    %cst_32 = arith.constant dense<0xFF800000> : vector<8xf32>
    %95 = vector.multi_reduction <maximumf>, %94, %cst_32 [1] : vector<8x8xf32> to vector<8xf32>
    %96 = vector.shape_cast %95 : vector<8xf32> to vector<8x1xf32>
    %97 = vector.broadcast %96 : vector<8x1xf32> to vector<8x8xf32>
    %98 = arith.subf %94, %97 : vector<8x8xf32>
    %99 = math.exp %98 : vector<8x8xf32>
    %cst_33 = arith.constant dense<0.000000e+00> : vector<8xf32>
    %100 = vector.multi_reduction <add>, %99, %cst_33 [1] : vector<8x8xf32> to vector<8xf32>
    %101 = vector.shape_cast %100 : vector<8xf32> to vector<8x1xf32>
    %102 = tpu.reciprocal %101 : vector<8x1xf32> -> vector<8x1xf32>
    %103 = vector.broadcast %102 : vector<8x1xf32> to vector<8x8xf32>
    %104 = arith.mulf %99, %103 : vector<8x8xf32>
    %105 = arith.truncf %104 : vector<8x8xf32> to vector<8x8xbf16>
    %cst_34 = arith.constant dense<0.000000e+00> : vector<8x16xf32>
    %106 = tpu.matmul %105, %91, %cst_34 {dimension_numbers = #tpu.dot_dimension_numbers<[1], [0], [0], [1], [0, 0, 1, 1], [], []>} : vector<8x8xbf16>, vector<8x16xbf16>, vector<8x16xf32> -> vector<8x16xf32>
    %c0_35 = arith.constant 0 : index
    %c32 = arith.constant 32 : index
    %107 = vector.load %arg12[%c0_35, %c32] : memref<8x64xf32, #tpu.memory_space<vmem>>, vector<8x16xf32>
    tpu.vector_store %arg12[%c0_35, %c32], %106 {strides = array<i32>} : memref<8x64xf32, #tpu.memory_space<vmem>>, vector<8x16xf32>,
    %108 = vector.extract_strided_slice %50 {offsets = [0, 48], sizes = [8, 16], strides = [1, 1]} : vector<8x192xbf16> to vector<8x16xbf16>
    %109 = vector.extract_strided_slice %50 {offsets = [0, 112], sizes = [8, 16], strides = [1, 1]} : vector<8x192xbf16> to vector<8x16xbf16>
    %110 = vector.extract_strided_slice %50 {offsets = [0, 176], sizes = [8, 16], strides = [1, 1]} : vector<8x192xbf16> to vector<8x16xbf16>
    %cst_36 = arith.constant dense<0.000000e+00> : vector<8x8xf32>
    %111 = tpu.matmul %108, %109, %cst_36 {dimension_numbers = #tpu.dot_dimension_numbers<[1], [1], [0], [0], [0, 0, 1, 0], [], []>} : vector<8x16xbf16>, vector<8x16xbf16>, vector<8x8xf32> -> vector<8x8xf32>
    %112 = vector.broadcast %6 : vector<1x8xf32> to vector<8x8xf32>
    %113 = arith.addf %111, %112 : vector<8x8xf32>
    %cst_37 = arith.constant dense<0xFF800000> : vector<8xf32>
    %114 = vector.multi_reduction <maximumf>, %113, %cst_37 [1] : vector<8x8xf32> to vector<8xf32>
    %115 = vector.shape_cast %114 : vector<8xf32> to vector<8x1xf32>
    %116 = vector.broadcast %115 : vector<8x1xf32> to vector<8x8xf32>
    %117 = arith.subf %113, %116 : vector<8x8xf32>
    %118 = math.exp %117 : vector<8x8xf32>
    %cst_38 = arith.constant dense<0.000000e+00> : vector<8xf32>
    %119 = vector.multi_reduction <add>, %118, %cst_38 [1] : vector<8x8xf32> to vector<8xf32>
    %120 = vector.shape_cast %119 : vector<8xf32> to vector<8x1xf32>
    %121 = tpu.reciprocal %120 : vector<8x1xf32> -> vector<8x1xf32>
    %122 = vector.broadcast %121 : vector<8x1xf32> to vector<8x8xf32>
    %123 = arith.mulf %118, %122 : vector<8x8xf32>
    %124 = arith.truncf %123 : vector<8x8xf32> to vector<8x8xbf16>
    %cst_39 = arith.constant dense<0.000000e+00> : vector<8x16xf32>
    %125 = tpu.matmul %124, %110, %cst_39 {dimension_numbers = #tpu.dot_dimension_numbers<[1], [0], [0], [1], [0, 0, 1, 1], [], []>} : vector<8x8xbf16>, vector<8x16xbf16>, vector<8x16xf32> -> vector<8x16xf32>
    %c0_40 = arith.constant 0 : index
    %c48 = arith.constant 48 : index
    %126 = vector.load %arg12[%c0_40, %c48] : memref<8x64xf32, #tpu.memory_space<vmem>>, vector<8x16xf32>
    tpu.vector_store %arg12[%c0_40, %c48], %125 {strides = array<i32>} : memref<8x64xf32, #tpu.memory_space<vmem>>, vector<8x16xf32>,
    %c0_41 = arith.constant 0 : index
    %c0_42 = arith.constant 0 : index
    %127 = vector.load %arg12[%c0_41, %c0_42] : memref<8x64xf32, #tpu.memory_space<vmem>>, vector<8x64xf32>
    %128 = arith.truncf %127 : vector<8x64xf32> to vector<8x64xbf16>
    %c0_43 = arith.constant 0 : index
    %c0_44 = arith.constant 0 : index
    %c0_45 = arith.constant 0 : index
    %129 = vector.load %arg4[%c0_43, %c0_44, %c0_45] : memref<2x64x64xbf16, #tpu.memory_space<vmem>>, vector<1x64x64xbf16>
    %130 = vector.shape_cast %129 : vector<1x64x64xbf16> to vector<64x64xbf16>
    %cst_46 = arith.constant dense<0.000000e+00> : vector<8x64xf32>
    %131 = tpu.matmul %128, %130, %cst_46 {dimension_numbers = #tpu.dot_dimension_numbers<[1], [0], [0], [1], [0, 0, 1, 1], [], []>} : vector<8x64xbf16>, vector<64x64xbf16>, vector<8x64xf32> -> vector<8x64xf32>
    %132 = vector.broadcast %37 : vector<1x64xf32> to vector<8x64xf32>
    %133 = arith.addf %131, %132 : vector<8x64xf32>
    %134 = arith.addf %133, %33 : vector<8x64xf32>
    %cst_47 = arith.constant dense<0.000000e+00> : vector<8xf32>
    %135 = vector.multi_reduction <add>, %134, %cst_47 [1] : vector<8x64xf32> to vector<8xf32>
    %136 = vector.shape_cast %135 : vector<8xf32> to vector<8x1xf32>
    %cst_48 = arith.constant 6.400000e+01 : f32
    %137 = vector.broadcast %cst_48 : f32 to vector<8x1xf32>
    %138 = arith.divf %136, %137 : vector<8x1xf32>
    %139 = vector.broadcast %138 : vector<8x1xf32> to vector<8x64xf32>
    %140 = arith.subf %134, %139 : vector<8x64xf32>
    %141 = arith.mulf %140, %140 : vector<8x64xf32>
    %cst_49 = arith.constant dense<0.000000e+00> : vector<8xf32>
    %142 = vector.multi_reduction <add>, %141, %cst_49 [1] : vector<8x64xf32> to vector<8xf32>
    %143 = vector.shape_cast %142 : vector<8xf32> to vector<8x1xf32>
    %cst_50 = arith.constant 6.400000e+01 : f32
    %144 = vector.broadcast %cst_50 : f32 to vector<8x1xf32>
    %145 = arith.divf %143, %144 : vector<8x1xf32>
    %146 = vector.broadcast %138 : vector<8x1xf32> to vector<8x64xf32>
    %147 = arith.subf %134, %146 : vector<8x64xf32>
    %cst_51 = arith.constant 9.99999996E-13 : f32
    %148 = vector.broadcast %cst_51 : f32 to vector<8x1xf32>
    %149 = arith.addf %145, %148 : vector<8x1xf32>
    %150 = math.rsqrt %149 : vector<8x1xf32>
    %151 = vector.broadcast %150 : vector<8x1xf32> to vector<8x64xf32>
    %152 = arith.mulf %147, %151 : vector<8x64xf32>
    %153 = vector.broadcast %38 : vector<1x64xf32> to vector<8x64xf32>
    %154 = arith.mulf %152, %153 : vector<8x64xf32>
    %155 = vector.broadcast %39 : vector<1x64xf32> to vector<8x64xf32>
    %156 = arith.addf %154, %155 : vector<8x64xf32>
    %157 = arith.truncf %156 : vector<8x64xf32> to vector<8x64xbf16>
    %c0_52 = arith.constant 0 : index
    %c0_53 = arith.constant 0 : index
    %c0_54 = arith.constant 0 : index
    %158 = vector.load %arg5[%c0_52, %c0_53, %c0_54] : memref<2x64x128xbf16, #tpu.memory_space<vmem>>, vector<1x64x128xbf16>
    %159 = vector.shape_cast %158 : vector<1x64x128xbf16> to vector<64x128xbf16>
    %cst_55 = arith.constant dense<0.000000e+00> : vector<8x128xf32>
    %160 = tpu.matmul %157, %159, %cst_55 {dimension_numbers = #tpu.dot_dimension_numbers<[1], [0], [0], [1], [0, 0, 1, 1], [], []>} : vector<8x64xbf16>, vector<64x128xbf16>, vector<8x128xf32> -> vector<8x128xf32>
    %161 = vector.broadcast %40 : vector<1x128xf32> to vector<8x128xf32>
    %162 = arith.addf %160, %161 : vector<8x128xf32>
    %cst_56 = arith.constant 5.000000e-01 : f32
    %163 = vector.broadcast %cst_56 : f32 to vector<8x128xf32>
    %164 = arith.mulf %163, %162 : vector<8x128xf32>
    %cst_57 = arith.constant 0.707106769 : f32
    %165 = vector.broadcast %cst_57 : f32 to vector<8x128xf32>
    %166 = arith.mulf %162, %165 : vector<8x128xf32>
    %cst_58 = arith.constant 0.000000e+00 : f32
    %167 = vector.broadcast %cst_58 : f32 to vector<8x128xf32>
    %168 = arith.cmpf oge, %166, %167 : vector<8x128xf32>
    %cst_59 = arith.constant 1.000000e+00 : f32
    %cst_60 = arith.constant -1.000000e+00 : f32
    %169 = vector.broadcast %cst_59 : f32 to vector<8x128xf32>
    %170 = vector.broadcast %cst_60 : f32 to vector<8x128xf32>
    %171 = arith.select %168, %169, %170 : vector<8x128xi1>, vector<8x128xf32>
    %172 = math.absf %166 : vector<8x128xf32>
    %cst_61 = arith.constant 0.327591091 : f32
    %173 = vector.broadcast %cst_61 : f32 to vector<8x128xf32>
    %174 = arith.mulf %173, %172 : vector<8x128xf32>
    %cst_62 = arith.constant 1.000000e+00 : f32
    %175 = vector.broadcast %cst_62 : f32 to vector<8x128xf32>
    %176 = arith.addf %175, %174 : vector<8x128xf32>
    %cst_63 = arith.constant 1.000000e+00 : f32
    %177 = vector.broadcast %cst_63 : f32 to vector<8x128xf32>
    %178 = arith.divf %177, %176 : vector<8x128xf32>
    %cst_64 = arith.constant 1.06140542 : f32
    %179 = vector.broadcast %cst_64 : f32 to vector<8x128xf32>
    %180 = arith.mulf %179, %178 : vector<8x128xf32>
    %cst_65 = arith.constant -1.45315206 : f32
    %181 = vector.broadcast %cst_65 : f32 to vector<8x128xf32>
    %182 = arith.addf %180, %181 : vector<8x128xf32>
    %183 = arith.mulf %182, %178 : vector<8x128xf32>
    %cst_66 = arith.constant 1.42141378 : f32
    %184 = vector.broadcast %cst_66 : f32 to vector<8x128xf32>
    %185 = arith.addf %183, %184 : vector<8x128xf32>
    %186 = arith.mulf %185, %178 : vector<8x128xf32>
    %cst_67 = arith.constant -0.284496725 : f32
    %187 = vector.broadcast %cst_67 : f32 to vector<8x128xf32>
    %188 = arith.addf %186, %187 : vector<8x128xf32>
    %189 = arith.mulf %188, %178 : vector<8x128xf32>
    %cst_68 = arith.constant 0.254829586 : f32
    %190 = vector.broadcast %cst_68 : f32 to vector<8x128xf32>
    %191 = arith.addf %189, %190 : vector<8x128xf32>
    %192 = arith.mulf %191, %178 : vector<8x128xf32>
    %cst_69 = arith.constant 0.000000e+00 : f32
    %193 = vector.broadcast %cst_69 : f32 to vector<8x128xf32>
    %194 = arith.subf %193, %172 : vector<8x128xf32>
    %195 = arith.mulf %194, %172 : vector<8x128xf32>
    %196 = math.exp %195 : vector<8x128xf32>
    %197 = arith.mulf %192, %196 : vector<8x128xf32>
    %cst_70 = arith.constant 1.000000e+00 : f32
    %198 = vector.broadcast %cst_70 : f32 to vector<8x128xf32>
    %199 = arith.subf %198, %197 : vector<8x128xf32>
    %200 = arith.mulf %171, %199 : vector<8x128xf32>
    %cst_71 = arith.constant 1.000000e+00 : f32
    %201 = vector.broadcast %cst_71 : f32 to vector<8x128xf32>
    %202 = arith.addf %201, %200 : vector<8x128xf32>
    %203 = arith.mulf %164, %202 : vector<8x128xf32>
    %204 = arith.truncf %203 : vector<8x128xf32> to vector<8x128xbf16>
    %c0_72 = arith.constant 0 : index
    %c0_73 = arith.constant 0 : index
    %c0_74 = arith.constant 0 : index
    %205 = vector.load %arg6[%c0_72, %c0_73, %c0_74] : memref<2x128x64xbf16, #tpu.memory_space<vmem>>, vector<1x128x64xbf16>
    %206 = vector.shape_cast %205 : vector<1x128x64xbf16> to vector<128x64xbf16>
    %cst_75 = arith.constant dense<0.000000e+00> : vector<8x64xf32>
    %207 = tpu.matmul %204, %206, %cst_75 {dimension_numbers = #tpu.dot_dimension_numbers<[1], [0], [0], [1], [0, 0, 1, 1], [], []>} : vector<8x128xbf16>, vector<128x64xbf16>, vector<8x64xf32> -> vector<8x64xf32>
    %208 = vector.broadcast %41 : vector<1x64xf32> to vector<8x64xf32>
    %209 = arith.addf %207, %208 : vector<8x64xf32>
    %210 = arith.addf %209, %156 : vector<8x64xf32>
    %cst_76 = arith.constant dense<0.000000e+00> : vector<8xf32>
    %211 = vector.multi_reduction <add>, %210, %cst_76 [1] : vector<8x64xf32> to vector<8xf32>
    %212 = vector.shape_cast %211 : vector<8xf32> to vector<8x1xf32>
    %cst_77 = arith.constant 6.400000e+01 : f32
    %213 = vector.broadcast %cst_77 : f32 to vector<8x1xf32>
    %214 = arith.divf %212, %213 : vector<8x1xf32>
    %215 = vector.broadcast %214 : vector<8x1xf32> to vector<8x64xf32>
    %216 = arith.subf %210, %215 : vector<8x64xf32>
    %217 = arith.mulf %216, %216 : vector<8x64xf32>
    %cst_78 = arith.constant dense<0.000000e+00> : vector<8xf32>
    %218 = vector.multi_reduction <add>, %217, %cst_78 [1] : vector<8x64xf32> to vector<8xf32>
    %219 = vector.shape_cast %218 : vector<8xf32> to vector<8x1xf32>
    %cst_79 = arith.constant 6.400000e+01 : f32
    %220 = vector.broadcast %cst_79 : f32 to vector<8x1xf32>
    %221 = arith.divf %219, %220 : vector<8x1xf32>
    %222 = vector.broadcast %214 : vector<8x1xf32> to vector<8x64xf32>
    %223 = arith.subf %210, %222 : vector<8x64xf32>
    %cst_80 = arith.constant 9.99999996E-13 : f32
    %224 = vector.broadcast %cst_80 : f32 to vector<8x1xf32>
    %225 = arith.addf %221, %224 : vector<8x1xf32>
    %226 = math.rsqrt %225 : vector<8x1xf32>
    %227 = vector.broadcast %226 : vector<8x1xf32> to vector<8x64xf32>
    %228 = arith.mulf %223, %227 : vector<8x64xf32>
    %229 = vector.broadcast %42 : vector<1x64xf32> to vector<8x64xf32>
    %230 = arith.mulf %228, %229 : vector<8x64xf32>
    %231 = vector.broadcast %43 : vector<1x64xf32> to vector<8x64xf32>
    %232 = arith.addf %230, %231 : vector<8x64xf32>
    %c1 = arith.constant 1 : index
    %c0_81 = arith.constant 0 : index
    %c0_82 = arith.constant 0 : index
    %233 = vector.load %arg7[%c1, %c0_81, %c0_82] : memref<2x8x192xf32, #tpu.memory_space<vmem>>, vector<1x8x192xf32>
    %234 = vector.shape_cast %233 : vector<1x8x192xf32> to vector<8x192xf32>
    %235 = vector.extract_strided_slice %234 {offsets = [0, 0], sizes = [1, 192], strides = [1, 1]} : vector<8x192xf32> to vector<1x192xf32>
    %236 = vector.extract_strided_slice %234 {offsets = [1, 0], sizes = [1, 64], strides = [1, 1]} : vector<8x192xf32> to vector<1x64xf32>
    %237 = vector.extract_strided_slice %234 {offsets = [2, 0], sizes = [1, 64], strides = [1, 1]} : vector<8x192xf32> to vector<1x64xf32>
    %238 = vector.extract_strided_slice %234 {offsets = [3, 0], sizes = [1, 64], strides = [1, 1]} : vector<8x192xf32> to vector<1x64xf32>
    %239 = vector.extract_strided_slice %234 {offsets = [4, 0], sizes = [1, 128], strides = [1, 1]} : vector<8x192xf32> to vector<1x128xf32>
    %240 = vector.extract_strided_slice %234 {offsets = [5, 0], sizes = [1, 64], strides = [1, 1]} : vector<8x192xf32> to vector<1x64xf32>
    %241 = vector.extract_strided_slice %234 {offsets = [6, 0], sizes = [1, 64], strides = [1, 1]} : vector<8x192xf32> to vector<1x64xf32>
    %242 = vector.extract_strided_slice %234 {offsets = [7, 0], sizes = [1, 64], strides = [1, 1]} : vector<8x192xf32> to vector<1x64xf32>
    %243 = arith.truncf %232 : vector<8x64xf32> to vector<8x64xbf16>
    %c1_83 = arith.constant 1 : index
    %c0_84 = arith.constant 0 : index
    %c0_85 = arith.constant 0 : index
    %244 = vector.load %arg3[%c1_83, %c0_84, %c0_85] : memref<2x64x192xbf16, #tpu.memory_space<vmem>>, vector<1x64x192xbf16>
    %245 = vector.shape_cast %244 : vector<1x64x192xbf16> to vector<64x192xbf16>
    %cst_86 = arith.constant dense<0.000000e+00> : vector<8x192xf32>
    %246 = tpu.matmul %243, %245, %cst_86 {dimension_numbers = #tpu.dot_dimension_numbers<[1], [0], [0], [1], [0, 0, 1, 1], [], []>} : vector<8x64xbf16>, vector<64x192xbf16>, vector<8x192xf32> -> vector<8x192xf32>
    %247 = vector.broadcast %235 : vector<1x192xf32> to vector<8x192xf32>
    %248 = arith.addf %246, %247 : vector<8x192xf32>
    %249 = arith.truncf %248 : vector<8x192xf32> to vector<8x192xbf16>
    %250 = vector.extract_strided_slice %249 {offsets = [0, 0], sizes = [8, 16], strides = [1, 1]} : vector<8x192xbf16> to vector<8x16xbf16>
    %251 = vector.extract_strided_slice %249 {offsets = [0, 64], sizes = [8, 16], strides = [1, 1]} : vector<8x192xbf16> to vector<8x16xbf16>
    %252 = vector.extract_strided_slice %249 {offsets = [0, 128], sizes = [8, 16], strides = [1, 1]} : vector<8x192xbf16> to vector<8x16xbf16>
    %cst_87 = arith.constant dense<0.000000e+00> : vector<8x8xf32>
    %253 = tpu.matmul %250, %251, %cst_87 {dimension_numbers = #tpu.dot_dimension_numbers<[1], [1], [0], [0], [0, 0, 1, 0], [], []>} : vector<8x16xbf16>, vector<8x16xbf16>, vector<8x8xf32> -> vector<8x8xf32>
    %254 = vector.broadcast %6 : vector<1x8xf32> to vector<8x8xf32>
    %255 = arith.addf %253, %254 : vector<8x8xf32>
    %cst_88 = arith.constant dense<0xFF800000> : vector<8xf32>
    %256 = vector.multi_reduction <maximumf>, %255, %cst_88 [1] : vector<8x8xf32> to vector<8xf32>
    %257 = vector.shape_cast %256 : vector<8xf32> to vector<8x1xf32>
    %258 = vector.broadcast %257 : vector<8x1xf32> to vector<8x8xf32>
    %259 = arith.subf %255, %258 : vector<8x8xf32>
    %260 = math.exp %259 : vector<8x8xf32>
    %cst_89 = arith.constant dense<0.000000e+00> : vector<8xf32>
    %261 = vector.multi_reduction <add>, %260, %cst_89 [1] : vector<8x8xf32> to vector<8xf32>
    %262 = vector.shape_cast %261 : vector<8xf32> to vector<8x1xf32>
    %263 = tpu.reciprocal %262 : vector<8x1xf32> -> vector<8x1xf32>
    %264 = vector.broadcast %263 : vector<8x1xf32> to vector<8x8xf32>
    %265 = arith.mulf %260, %264 : vector<8x8xf32>
    %266 = arith.truncf %265 : vector<8x8xf32> to vector<8x8xbf16>
    %cst_90 = arith.constant dense<0.000000e+00> : vector<8x16xf32>
    %267 = tpu.matmul %266, %252, %cst_90 {dimension_numbers = #tpu.dot_dimension_numbers<[1], [0], [0], [1], [0, 0, 1, 1], [], []>} : vector<8x8xbf16>, vector<8x16xbf16>, vector<8x16xf32> -> vector<8x16xf32>
    %c0_91 = arith.constant 0 : index
    %c0_92 = arith.constant 0 : index
    %268 = vector.load %arg12[%c0_91, %c0_92] : memref<8x64xf32, #tpu.memory_space<vmem>>, vector<8x16xf32>
    tpu.vector_store %arg12[%c0_91, %c0_92], %267 {strides = array<i32>} : memref<8x64xf32, #tpu.memory_space<vmem>>, vector<8x16xf32>,
    %269 = vector.extract_strided_slice %249 {offsets = [0, 16], sizes = [8, 16], strides = [1, 1]} : vector<8x192xbf16> to vector<8x16xbf16>
    %270 = vector.extract_strided_slice %249 {offsets = [0, 80], sizes = [8, 16], strides = [1, 1]} : vector<8x192xbf16> to vector<8x16xbf16>
    %271 = vector.extract_strided_slice %249 {offsets = [0, 144], sizes = [8, 16], strides = [1, 1]} : vector<8x192xbf16> to vector<8x16xbf16>
    %cst_93 = arith.constant dense<0.000000e+00> : vector<8x8xf32>
    %272 = tpu.matmul %269, %270, %cst_93 {dimension_numbers = #tpu.dot_dimension_numbers<[1], [1], [0], [0], [0, 0, 1, 0], [], []>} : vector<8x16xbf16>, vector<8x16xbf16>, vector<8x8xf32> -> vector<8x8xf32>
    %273 = vector.broadcast %6 : vector<1x8xf32> to vector<8x8xf32>
    %274 = arith.addf %272, %273 : vector<8x8xf32>
    %cst_94 = arith.constant dense<0xFF800000> : vector<8xf32>
    %275 = vector.multi_reduction <maximumf>, %274, %cst_94 [1] : vector<8x8xf32> to vector<8xf32>
    %276 = vector.shape_cast %275 : vector<8xf32> to vector<8x1xf32>
    %277 = vector.broadcast %276 : vector<8x1xf32> to vector<8x8xf32>
    %278 = arith.subf %274, %277 : vector<8x8xf32>
    %279 = math.exp %278 : vector<8x8xf32>
    %cst_95 = arith.constant dense<0.000000e+00> : vector<8xf32>
    %280 = vector.multi_reduction <add>, %279, %cst_95 [1] : vector<8x8xf32> to vector<8xf32>
    %281 = vector.shape_cast %280 : vector<8xf32> to vector<8x1xf32>
    %282 = tpu.reciprocal %281 : vector<8x1xf32> -> vector<8x1xf32>
    %283 = vector.broadcast %282 : vector<8x1xf32> to vector<8x8xf32>
    %284 = arith.mulf %279, %283 : vector<8x8xf32>
    %285 = arith.truncf %284 : vector<8x8xf32> to vector<8x8xbf16>
    %cst_96 = arith.constant dense<0.000000e+00> : vector<8x16xf32>
    %286 = tpu.matmul %285, %271, %cst_96 {dimension_numbers = #tpu.dot_dimension_numbers<[1], [0], [0], [1], [0, 0, 1, 1], [], []>} : vector<8x8xbf16>, vector<8x16xbf16>, vector<8x16xf32> -> vector<8x16xf32>
    %c0_97 = arith.constant 0 : index
    %c16_98 = arith.constant 16 : index
    %287 = vector.load %arg12[%c0_97, %c16_98] : memref<8x64xf32, #tpu.memory_space<vmem>>, vector<8x16xf32>
    tpu.vector_store %arg12[%c0_97, %c16_98], %286 {strides = array<i32>} : memref<8x64xf32, #tpu.memory_space<vmem>>, vector<8x16xf32>,
    %288 = vector.extract_strided_slice %249 {offsets = [0, 32], sizes = [8, 16], strides = [1, 1]} : vector<8x192xbf16> to vector<8x16xbf16>
    %289 = vector.extract_strided_slice %249 {offsets = [0, 96], sizes = [8, 16], strides = [1, 1]} : vector<8x192xbf16> to vector<8x16xbf16>
    %290 = vector.extract_strided_slice %249 {offsets = [0, 160], sizes = [8, 16], strides = [1, 1]} : vector<8x192xbf16> to vector<8x16xbf16>
    %cst_99 = arith.constant dense<0.000000e+00> : vector<8x8xf32>
    %291 = tpu.matmul %288, %289, %cst_99 {dimension_numbers = #tpu.dot_dimension_numbers<[1], [1], [0], [0], [0, 0, 1, 0], [], []>} : vector<8x16xbf16>, vector<8x16xbf16>, vector<8x8xf32> -> vector<8x8xf32>
    %292 = vector.broadcast %6 : vector<1x8xf32> to vector<8x8xf32>
    %293 = arith.addf %291, %292 : vector<8x8xf32>
    %cst_100 = arith.constant dense<0xFF800000> : vector<8xf32>
    %294 = vector.multi_reduction <maximumf>, %293, %cst_100 [1] : vector<8x8xf32> to vector<8xf32>
    %295 = vector.shape_cast %294 : vector<8xf32> to vector<8x1xf32>
    %296 = vector.broadcast %295 : vector<8x1xf32> to vector<8x8xf32>
    %297 = arith.subf %293, %296 : vector<8x8xf32>
    %298 = math.exp %297 : vector<8x8xf32>
    %cst_101 = arith.constant dense<0.000000e+00> : vector<8xf32>
    %299 = vector.multi_reduction <add>, %298, %cst_101 [1] : vector<8x8xf32> to vector<8xf32>
    %300 = vector.shape_cast %299 : vector<8xf32> to vector<8x1xf32>
    %301 = tpu.reciprocal %300 : vector<8x1xf32> -> vector<8x1xf32>
    %302 = vector.broadcast %301 : vector<8x1xf32> to vector<8x8xf32>
    %303 = arith.mulf %298, %302 : vector<8x8xf32>
    %304 = arith.truncf %303 : vector<8x8xf32> to vector<8x8xbf16>
    %cst_102 = arith.constant dense<0.000000e+00> : vector<8x16xf32>
    %305 = tpu.matmul %304, %290, %cst_102 {dimension_numbers = #tpu.dot_dimension_numbers<[1], [0], [0], [1], [0, 0, 1, 1], [], []>} : vector<8x8xbf16>, vector<8x16xbf16>, vector<8x16xf32> -> vector<8x16xf32>
    %c0_103 = arith.constant 0 : index
    %c32_104 = arith.constant 32 : index
    %306 = vector.load %arg12[%c0_103, %c32_104] : memref<8x64xf32, #tpu.memory_space<vmem>>, vector<8x16xf32>
    tpu.vector_store %arg12[%c0_103, %c32_104], %305 {strides = array<i32>} : memref<8x64xf32, #tpu.memory_space<vmem>>, vector<8x16xf32>,
    %307 = vector.extract_strided_slice %249 {offsets = [0, 48], sizes = [8, 16], strides = [1, 1]} : vector<8x192xbf16> to vector<8x16xbf16>
    %308 = vector.extract_strided_slice %249 {offsets = [0, 112], sizes = [8, 16], strides = [1, 1]} : vector<8x192xbf16> to vector<8x16xbf16>
    %309 = vector.extract_strided_slice %249 {offsets = [0, 176], sizes = [8, 16], strides = [1, 1]} : vector<8x192xbf16> to vector<8x16xbf16>
    %cst_105 = arith.constant dense<0.000000e+00> : vector<8x8xf32>
    %310 = tpu.matmul %307, %308, %cst_105 {dimension_numbers = #tpu.dot_dimension_numbers<[1], [1], [0], [0], [0, 0, 1, 0], [], []>} : vector<8x16xbf16>, vector<8x16xbf16>, vector<8x8xf32> -> vector<8x8xf32>
    %311 = vector.broadcast %6 : vector<1x8xf32> to vector<8x8xf32>
    %312 = arith.addf %310, %311 : vector<8x8xf32>
    %cst_106 = arith.constant dense<0xFF800000> : vector<8xf32>
    %313 = vector.multi_reduction <maximumf>, %312, %cst_106 [1] : vector<8x8xf32> to vector<8xf32>
    %314 = vector.shape_cast %313 : vector<8xf32> to vector<8x1xf32>
    %315 = vector.broadcast %314 : vector<8x1xf32> to vector<8x8xf32>
    %316 = arith.subf %312, %315 : vector<8x8xf32>
    %317 = math.exp %316 : vector<8x8xf32>
    %cst_107 = arith.constant dense<0.000000e+00> : vector<8xf32>
    %318 = vector.multi_reduction <add>, %317, %cst_107 [1] : vector<8x8xf32> to vector<8xf32>
    %319 = vector.shape_cast %318 : vector<8xf32> to vector<8x1xf32>
    %320 = tpu.reciprocal %319 : vector<8x1xf32> -> vector<8x1xf32>
    %321 = vector.broadcast %320 : vector<8x1xf32> to vector<8x8xf32>
    %322 = arith.mulf %317, %321 : vector<8x8xf32>
    %323 = arith.truncf %322 : vector<8x8xf32> to vector<8x8xbf16>
    %cst_108 = arith.constant dense<0.000000e+00> : vector<8x16xf32>
    %324 = tpu.matmul %323, %309, %cst_108 {dimension_numbers = #tpu.dot_dimension_numbers<[1], [0], [0], [1], [0, 0, 1, 1], [], []>} : vector<8x8xbf16>, vector<8x16xbf16>, vector<8x16xf32> -> vector<8x16xf32>
    %c0_109 = arith.constant 0 : index
    %c48_110 = arith.constant 48 : index
    %325 = vector.load %arg12[%c0_109, %c48_110] : memref<8x64xf32, #tpu.memory_space<vmem>>, vector<8x16xf32>
    tpu.vector_store %arg12[%c0_109, %c48_110], %324 {strides = array<i32>} : memref<8x64xf32, #tpu.memory_space<vmem>>, vector<8x16xf32>,
    %c0_111 = arith.constant 0 : index
    %c0_112 = arith.constant 0 : index
    %326 = vector.load %arg12[%c0_111, %c0_112] : memref<8x64xf32, #tpu.memory_space<vmem>>, vector<8x64xf32>
    %327 = arith.truncf %326 : vector<8x64xf32> to vector<8x64xbf16>
    %c1_113 = arith.constant 1 : index
    %c0_114 = arith.constant 0 : index
    %c0_115 = arith.constant 0 : index
    %328 = vector.load %arg4[%c1_113, %c0_114, %c0_115] : memref<2x64x64xbf16, #tpu.memory_space<vmem>>, vector<1x64x64xbf16>
    %329 = vector.shape_cast %328 : vector<1x64x64xbf16> to vector<64x64xbf16>
    %cst_116 = arith.constant dense<0.000000e+00> : vector<8x64xf32>
    %330 = tpu.matmul %327, %329, %cst_116 {dimension_numbers = #tpu.dot_dimension_numbers<[1], [0], [0], [1], [0, 0, 1, 1], [], []>} : vector<8x64xbf16>, vector<64x64xbf16>, vector<8x64xf32> -> vector<8x64xf32>
    %331 = vector.broadcast %236 : vector<1x64xf32> to vector<8x64xf32>
    %332 = arith.addf %330, %331 : vector<8x64xf32>
    %333 = arith.addf %332, %232 : vector<8x64xf32>
    %cst_117 = arith.constant dense<0.000000e+00> : vector<8xf32>
    %334 = vector.multi_reduction <add>, %333, %cst_117 [1] : vector<8x64xf32> to vector<8xf32>
    %335 = vector.shape_cast %334 : vector<8xf32> to vector<8x1xf32>
    %cst_118 = arith.constant 6.400000e+01 : f32
    %336 = vector.broadcast %cst_118 : f32 to vector<8x1xf32>
    %337 = arith.divf %335, %336 : vector<8x1xf32>
    %338 = vector.broadcast %337 : vector<8x1xf32> to vector<8x64xf32>
    %339 = arith.subf %333, %338 : vector<8x64xf32>
    %340 = arith.mulf %339, %339 : vector<8x64xf32>
    %cst_119 = arith.constant dense<0.000000e+00> : vector<8xf32>
    %341 = vector.multi_reduction <add>, %340, %cst_119 [1] : vector<8x64xf32> to vector<8xf32>
    %342 = vector.shape_cast %341 : vector<8xf32> to vector<8x1xf32>
    %cst_120 = arith.constant 6.400000e+01 : f32
    %343 = vector.broadcast %cst_120 : f32 to vector<8x1xf32>
    %344 = arith.divf %342, %343 : vector<8x1xf32>
    %345 = vector.broadcast %337 : vector<8x1xf32> to vector<8x64xf32>
    %346 = arith.subf %333, %345 : vector<8x64xf32>
    %cst_121 = arith.constant 9.99999996E-13 : f32
    %347 = vector.broadcast %cst_121 : f32 to vector<8x1xf32>
    %348 = arith.addf %344, %347 : vector<8x1xf32>
    %349 = math.rsqrt %348 : vector<8x1xf32>
    %350 = vector.broadcast %349 : vector<8x1xf32> to vector<8x64xf32>
    %351 = arith.mulf %346, %350 : vector<8x64xf32>
    %352 = vector.broadcast %237 : vector<1x64xf32> to vector<8x64xf32>
    %353 = arith.mulf %351, %352 : vector<8x64xf32>
    %354 = vector.broadcast %238 : vector<1x64xf32> to vector<8x64xf32>
    %355 = arith.addf %353, %354 : vector<8x64xf32>
    %356 = arith.truncf %355 : vector<8x64xf32> to vector<8x64xbf16>
    %c1_122 = arith.constant 1 : index
    %c0_123 = arith.constant 0 : index
    %c0_124 = arith.constant 0 : index
    %357 = vector.load %arg5[%c1_122, %c0_123, %c0_124] : memref<2x64x128xbf16, #tpu.memory_space<vmem>>, vector<1x64x128xbf16>
    %358 = vector.shape_cast %357 : vector<1x64x128xbf16> to vector<64x128xbf16>
    %cst_125 = arith.constant dense<0.000000e+00> : vector<8x128xf32>
    %359 = tpu.matmul %356, %358, %cst_125 {dimension_numbers = #tpu.dot_dimension_numbers<[1], [0], [0], [1], [0, 0, 1, 1], [], []>} : vector<8x64xbf16>, vector<64x128xbf16>, vector<8x128xf32> -> vector<8x128xf32>
    %360 = vector.broadcast %239 : vector<1x128xf32> to vector<8x128xf32>
    %361 = arith.addf %359, %360 : vector<8x128xf32>
    %cst_126 = arith.constant 5.000000e-01 : f32
    %362 = vector.broadcast %cst_126 : f32 to vector<8x128xf32>
    %363 = arith.mulf %362, %361 : vector<8x128xf32>
    %cst_127 = arith.constant 0.707106769 : f32
    %364 = vector.broadcast %cst_127 : f32 to vector<8x128xf32>
    %365 = arith.mulf %361, %364 : vector<8x128xf32>
    %cst_128 = arith.constant 0.000000e+00 : f32
    %366 = vector.broadcast %cst_128 : f32 to vector<8x128xf32>
    %367 = arith.cmpf oge, %365, %366 : vector<8x128xf32>
    %cst_129 = arith.constant 1.000000e+00 : f32
    %cst_130 = arith.constant -1.000000e+00 : f32
    %368 = vector.broadcast %cst_129 : f32 to vector<8x128xf32>
    %369 = vector.broadcast %cst_130 : f32 to vector<8x128xf32>
    %370 = arith.select %367, %368, %369 : vector<8x128xi1>, vector<8x128xf32>
    %371 = math.absf %365 : vector<8x128xf32>
    %cst_131 = arith.constant 0.327591091 : f32
    %372 = vector.broadcast %cst_131 : f32 to vector<8x128xf32>
    %373 = arith.mulf %372, %371 : vector<8x128xf32>
    %cst_132 = arith.constant 1.000000e+00 : f32
    %374 = vector.broadcast %cst_132 : f32 to vector<8x128xf32>
    %375 = arith.addf %374, %373 : vector<8x128xf32>
    %cst_133 = arith.constant 1.000000e+00 : f32
    %376 = vector.broadcast %cst_133 : f32 to vector<8x128xf32>
    %377 = arith.divf %376, %375 : vector<8x128xf32>
    %cst_134 = arith.constant 1.06140542 : f32
    %378 = vector.broadcast %cst_134 : f32 to vector<8x128xf32>
    %379 = arith.mulf %378, %377 : vector<8x128xf32>
    %cst_135 = arith.constant -1.45315206 : f32
    %380 = vector.broadcast %cst_135 : f32 to vector<8x128xf32>
    %381 = arith.addf %379, %380 : vector<8x128xf32>
    %382 = arith.mulf %381, %377 : vector<8x128xf32>
    %cst_136 = arith.constant 1.42141378 : f32
    %383 = vector.broadcast %cst_136 : f32 to vector<8x128xf32>
    %384 = arith.addf %382, %383 : vector<8x128xf32>
    %385 = arith.mulf %384, %377 : vector<8x128xf32>
    %cst_137 = arith.constant -0.284496725 : f32
    %386 = vector.broadcast %cst_137 : f32 to vector<8x128xf32>
    %387 = arith.addf %385, %386 : vector<8x128xf32>
    %388 = arith.mulf %387, %377 : vector<8x128xf32>
    %cst_138 = arith.constant 0.254829586 : f32
    %389 = vector.broadcast %cst_138 : f32 to vector<8x128xf32>
    %390 = arith.addf %388, %389 : vector<8x128xf32>
    %391 = arith.mulf %390, %377 : vector<8x128xf32>
    %cst_139 = arith.constant 0.000000e+00 : f32
    %392 = vector.broadcast %cst_139 : f32 to vector<8x128xf32>
    %393 = arith.subf %392, %371 : vector<8x128xf32>
    %394 = arith.mulf %393, %371 : vector<8x128xf32>
    %395 = math.exp %394 : vector<8x128xf32>
    %396 = arith.mulf %391, %395 : vector<8x128xf32>
    %cst_140 = arith.constant 1.000000e+00 : f32
    %397 = vector.broadcast %cst_140 : f32 to vector<8x128xf32>
    %398 = arith.subf %397, %396 : vector<8x128xf32>
    %399 = arith.mulf %370, %398 : vector<8x128xf32>
    %cst_141 = arith.constant 1.000000e+00 : f32
    %400 = vector.broadcast %cst_141 : f32 to vector<8x128xf32>
    %401 = arith.addf %400, %399 : vector<8x128xf32>
    %402 = arith.mulf %363, %401 : vector<8x128xf32>
    %403 = arith.truncf %402 : vector<8x128xf32> to vector<8x128xbf16>
    %c1_142 = arith.constant 1 : index
    %c0_143 = arith.constant 0 : index
    %c0_144 = arith.constant 0 : index
    %404 = vector.load %arg6[%c1_142, %c0_143, %c0_144] : memref<2x128x64xbf16, #tpu.memory_space<vmem>>, vector<1x128x64xbf16>
    %405 = vector.shape_cast %404 : vector<1x128x64xbf16> to vector<128x64xbf16>
    %cst_145 = arith.constant dense<0.000000e+00> : vector<8x64xf32>
    %406 = tpu.matmul %403, %405, %cst_145 {dimension_numbers = #tpu.dot_dimension_numbers<[1], [0], [0], [1], [0, 0, 1, 1], [], []>} : vector<8x128xbf16>, vector<128x64xbf16>, vector<8x64xf32> -> vector<8x64xf32>
    %407 = vector.broadcast %240 : vector<1x64xf32> to vector<8x64xf32>
    %408 = arith.addf %406, %407 : vector<8x64xf32>
    %409 = arith.addf %408, %355 : vector<8x64xf32>
    %cst_146 = arith.constant dense<0.000000e+00> : vector<8xf32>
    %410 = vector.multi_reduction <add>, %409, %cst_146 [1] : vector<8x64xf32> to vector<8xf32>
    %411 = vector.shape_cast %410 : vector<8xf32> to vector<8x1xf32>
    %cst_147 = arith.constant 6.400000e+01 : f32
    %412 = vector.broadcast %cst_147 : f32 to vector<8x1xf32>
    %413 = arith.divf %411, %412 : vector<8x1xf32>
    %414 = vector.broadcast %413 : vector<8x1xf32> to vector<8x64xf32>
    %415 = arith.subf %409, %414 : vector<8x64xf32>
    %416 = arith.mulf %415, %415 : vector<8x64xf32>
    %cst_148 = arith.constant dense<0.000000e+00> : vector<8xf32>
    %417 = vector.multi_reduction <add>, %416, %cst_148 [1] : vector<8x64xf32> to vector<8xf32>
    %418 = vector.shape_cast %417 : vector<8xf32> to vector<8x1xf32>
    %cst_149 = arith.constant 6.400000e+01 : f32
    %419 = vector.broadcast %cst_149 : f32 to vector<8x1xf32>
    %420 = arith.divf %418, %419 : vector<8x1xf32>
    %421 = vector.broadcast %413 : vector<8x1xf32> to vector<8x64xf32>
    %422 = arith.subf %409, %421 : vector<8x64xf32>
    %cst_150 = arith.constant 9.99999996E-13 : f32
    %423 = vector.broadcast %cst_150 : f32 to vector<8x1xf32>
    %424 = arith.addf %420, %423 : vector<8x1xf32>
    %425 = math.rsqrt %424 : vector<8x1xf32>
    %426 = vector.broadcast %425 : vector<8x1xf32> to vector<8x64xf32>
    %427 = arith.mulf %422, %426 : vector<8x64xf32>
    %428 = vector.broadcast %241 : vector<1x64xf32> to vector<8x64xf32>
    %429 = arith.mulf %427, %428 : vector<8x64xf32>
    %430 = vector.broadcast %242 : vector<1x64xf32> to vector<8x64xf32>
    %431 = arith.addf %429, %430 : vector<8x64xf32>
    %432 = vector.extract_strided_slice %431 {offsets = [0, 0], sizes = [1, 64], strides = [1, 1]} : vector<8x64xf32> to vector<1x64xf32>
    %433 = arith.truncf %432 : vector<1x64xf32> to vector<1x64xbf16>
    %c0_151 = arith.constant 0 : index
    %c0_152 = arith.constant 0 : index
    %434 = vector.load %arg8[%c0_151, %c0_152] : memref<64x64xbf16, #tpu.memory_space<vmem>>, vector<64x64xbf16>
    %cst_153 = arith.constant dense<0.000000e+00> : vector<1x64xf32>
    %435 = tpu.matmul %433, %434, %cst_153 {dimension_numbers = #tpu.dot_dimension_numbers<[1], [0], [0], [1], [0, 0, 1, 1], [], []>} : vector<1x64xbf16>, vector<64x64xbf16>, vector<1x64xf32> -> vector<1x64xf32>
    %436 = vector.extract_strided_slice %7 {offsets = [2, 0], sizes = [1, 64], strides = [1, 1]} : vector<4x128xf32> to vector<1x64xf32>
    %437 = arith.addf %435, %436 : vector<1x64xf32>
    %438 = math.tanh %437 : vector<1x64xf32>
    %439 = arith.truncf %438 : vector<1x64xf32> to vector<1x64xbf16>
    %c0_154 = arith.constant 0 : index
    %c0_155 = arith.constant 0 : index
    %440 = vector.load %arg9[%c0_154, %c0_155] : memref<64x128xbf16, #tpu.memory_space<vmem>>, vector<64x128xbf16>
    %cst_156 = arith.constant dense<0.000000e+00> : vector<1x128xf32>
    %441 = tpu.matmul %439, %440, %cst_156 {dimension_numbers = #tpu.dot_dimension_numbers<[1], [0], [0], [1], [0, 0, 1, 1], [], []>} : vector<1x64xbf16>, vector<64x128xbf16>, vector<1x128xf32> -> vector<1x128xf32>
    %442 = vector.extract_strided_slice %7 {offsets = [3, 0], sizes = [1, 128], strides = [1, 1]} : vector<4x128xf32> to vector<1x128xf32>
    %443 = arith.addf %441, %442 : vector<1x128xf32>
    %c0_157 = arith.constant 0 : index
    %c0_158 = arith.constant 0 : index
    %c0_159 = arith.constant 0 : index
    %444 = vector.load %arg11[%c0_157, %c0_158, %c0_159] : memref<1x1x128xf32, #tpu.memory_space<vmem>>, vector<1x1x128xf32>
    %445 = vector.shape_cast %444 : vector<1x1x128xf32> to vector<1x128xf32>
    %446 = vector.shape_cast %443 : vector<1x128xf32> to vector<1x1x128xf32>
    tpu.vector_store %arg11[%c0_157, %c0_158, %c0_159], %446 {strides = array<i32>} : memref<1x1x128xf32, #tpu.memory_space<vmem>>, vector<1x1x128xf32>,
    return
  }
  func.func @transform_0(%arg0: i32) -> (i32, i32, i32) {
    %c0_i32 = arith.constant 0 : i32
    %c0_i32_0 = arith.constant 0 : i32
    %c0_i32_1 = arith.constant 0 : i32
    return %arg0, %c0_i32, %c0_i32_0 : i32, i32, i32
  }
  func.func @transform_1(%arg0: i32) -> (i32, i32, i32) {
    %c0_i32 = arith.constant 0 : i32
    %c0_i32_0 = arith.constant 0 : i32
    %c0_i32_1 = arith.constant 0 : i32
    return %arg0, %c0_i32, %c0_i32_0 : i32, i32, i32
  }
  func.func @transform_2(%arg0: i32) -> (i32, i32, i32) {
    %c0_i32 = arith.constant 0 : i32
    %c0_i32_0 = arith.constant 0 : i32
    %c0_i32_1 = arith.constant 0 : i32
    %c0_i32_2 = arith.constant 0 : i32
    return %c0_i32, %c0_i32_0, %c0_i32_1 : i32, i32, i32
  }
  func.func @transform_3(%arg0: i32) -> (i32, i32, i32) {
    %c0_i32 = arith.constant 0 : i32
    %c0_i32_0 = arith.constant 0 : i32
    %c0_i32_1 = arith.constant 0 : i32
    %c0_i32_2 = arith.constant 0 : i32
    return %c0_i32, %c0_i32_0, %c0_i32_1 : i32, i32, i32
  }
  func.func @transform_4(%arg0: i32) -> (i32, i32, i32) {
    %c0_i32 = arith.constant 0 : i32
    %c0_i32_0 = arith.constant 0 : i32
    %c0_i32_1 = arith.constant 0 : i32
    %c0_i32_2 = arith.constant 0 : i32
    return %c0_i32, %c0_i32_0, %c0_i32_1 : i32, i32, i32
  }
  func.func @transform_5(%arg0: i32) -> (i32, i32, i32) {
    %c0_i32 = arith.constant 0 : i32
    %c0_i32_0 = arith.constant 0 : i32
    %c0_i32_1 = arith.constant 0 : i32
    %c0_i32_2 = arith.constant 0 : i32
    return %c0_i32, %c0_i32_0, %c0_i32_1 : i32, i32, i32
  }
  func.func @transform_6(%arg0: i32) -> (i32, i32, i32) {
    %c0_i32 = arith.constant 0 : i32
    %c0_i32_0 = arith.constant 0 : i32
    %c0_i32_1 = arith.constant 0 : i32
    %c0_i32_2 = arith.constant 0 : i32
    return %c0_i32, %c0_i32_0, %c0_i32_1 : i32, i32, i32
  }
  func.func @transform_7(%arg0: i32) -> (i32, i32) {
    %c0_i32 = arith.constant 0 : i32
    %c0_i32_0 = arith.constant 0 : i32
    %c0_i32_1 = arith.constant 0 : i32
    return %c0_i32, %c0_i32_0 : i32, i32
  }
  func.func @transform_8(%arg0: i32) -> (i32, i32) {
    %c0_i32 = arith.constant 0 : i32
    %c0_i32_0 = arith.constant 0 : i32
    %c0_i32_1 = arith.constant 0 : i32
    return %c0_i32, %c0_i32_0 : i32, i32
  }
  func.func @transform_9(%arg0: i32) -> (i32, i32) {
    %c0_i32 = arith.constant 0 : i32
    %c0_i32_0 = arith.constant 0 : i32
    %c0_i32_1 = arith.constant 0 : i32
    return %c0_i32, %c0_i32_0 : i32, i32
  }
  func.func @transform_10(%arg0: i32) -> (i32, i32, i32) {
    %c0_i32 = arith.constant 0 : i32
    %c0_i32_0 = arith.constant 0 : i32
    %c0_i32_1 = arith.constant 0 : i32
    return %arg0, %c0_i32, %c0_i32_0 : i32, i32, i32
  }
}

</mosaic_0001>

<llo_original>
// kernel: bert_base_forward.1
$region0: #{bert_base_forward.1}
  #allocation0 [shape = 'u32[]', space=smem, size = 0x4, offset = 0x4, fixed_abs, tag = 'smem constant byte address 0x4 - core index']
  #allocation1 [shape = 'u32[144,128]{1,0:T(1,128)}', space=vmem, size = 0x12000, scoped, tag = 'internal scratch']
  #allocation2 [shape = 'f32[8,64]{1,0:T(8,128)}', space=vmem, size = 0x1000, scoped, tag = 'scratch operand']
  %s0 = inlined_call_operand.vmem [shape: f32[2,8,64], index: 0, kind: input, shape index: {}]
  %s1 = inlined_call_operand.vmem [shape: s32[2,1,8], index: 1, kind: input, shape index: {}]
  %s2 = inlined_call_operand.vmem [shape: bf16[2,64,192], index: 2, kind: input, shape index: {}]
  %s3 = inlined_call_operand.vmem [shape: bf16[2,64,64], index: 3, kind: input, shape index: {}]
  %s4 = inlined_call_operand.vmem [shape: bf16[2,64,128], index: 4, kind: input, shape index: {}]
  %s5 = inlined_call_operand.vmem [shape: bf16[2,128,64], index: 5, kind: input, shape index: {}]
  %s6 = inlined_call_operand.vmem [shape: f32[2,8,192], index: 6, kind: input, shape index: {}]
  %s7 = inlined_call_operand.vmem [shape: bf16[64,64], index: 7, kind: input, shape index: {}]
  %s8 = inlined_call_operand.vmem [shape: bf16[64,128], index: 8, kind: input, shape index: {}]
  %s9 = inlined_call_operand.vmem [shape: f32[4,128], index: 9, kind: input, shape index: {}]
  %s10 = inlined_call_operand.hbm [shape: f32[2,1,128], index: 10, kind: output, shape index: {}]
  %s11 = sld [smem:[#allocation0]]
  $region73: #{bert_base_forward.1} parent=0
    _
  %s13 = ssub.s32 1, %s11
  %s14 = scalar_select 0, %s13, %s11
  $region1: #{bert_base_forward.1} parent=0
    #allocation3 [shape = 'u8[1024]{0}', space=vmem, size = 0x400, scoped, tag = 'output window, operand 0']
    #allocation4 [shape = 's32[2]{0}', space=sflag, size = 0x8, scoped, tag = 'scoped memory for bert_base_forward.1']
    %15 = vsyncpa [#allocation4], 0
    %s16 = scalar_lea.sflag [#allocation4], 1
    %17 = vsyncpa %s16, 0
    loop: start=0, step=1, limit=4
    $region2: #{bert_base_forward.1} parent=1 // loop_pre_header
      _
    $region3: #{bert_base_forward.1} parent=1 // loop_header
      %s19 = sphi 0, %s23
      %p20 = scmp.ge.s32.totalorder %s19, 4
      %s29 = sphi 0, %s31
      %s32 = sphi 0, %s29
      %s33 = sphi 0, %s32
      %s49 = sphi 0, %s33
      %s55 = sphi 0, %s57
      %s58 = sphi 0, %s55
      %s59 = sphi 0, %s58
      %s75 = sphi 0, %s59
      %s79 = sphi 0, %s79
      %s81 = sphi 0, %s79
      %s82 = sphi 0, %s81
      %s96 = sphi 0, %s82
      %s100 = sphi 0, %s100
      %s102 = sphi 0, %s100
      %s103 = sphi 0, %s102
      %s117 = sphi 0, %s103
      %s121 = sphi 0, %s121
      %s123 = sphi 0, %s121
      %s124 = sphi 0, %s123
      %s138 = sphi 0, %s124
      %s142 = sphi 0, %s142
      %s144 = sphi 0, %s142
      %s145 = sphi 0, %s144
      %s159 = sphi 0, %s145
      %s163 = sphi 0, %s163
      %s165 = sphi 0, %s163
      %s166 = sphi 0, %s165
      %s180 = sphi 0, %s166
      %s184 = sphi 0, %s184
      %s186 = sphi 0, %s184
      %s187 = sphi 0, %s186
      %s201 = sphi 0, %s187
      %s205 = sphi 0, %s205
      %s207 = sphi 0, %s205
      %s208 = sphi 0, %s207
      %s222 = sphi 0, %s208
      %s226 = sphi 0, %s226
      %s228 = sphi 0, %s226
      %s229 = sphi 0, %s228
      %s243 = sphi 0, %s229
      %s249 = sphi 0, %s251
      %s252 = sphi 0, %s249
      %s253 = sphi 0, %s252
      %s269 = sphi 0, %s253
    $region4: #{bert_base_forward.1} parent=1 // loop_header_branch
      %22 = sbr.rel (%p20) target = $region8
    $region5: #{bert_base_forward.1} parent=1 // loop_body
      %s24 = ssub.s32 %s19, 1
      %s25 = ssub.s32 %s19, 2
      %s26 = sadd.s32 %s19, 1
      %s27 = ssub.s32 %s19, %s26
      %p28 = scmp.eq.s32.totalorder %s27, 0
      %s30 = sadd.s32 %s29, 1
      %s31 = scalar_select %p28, %s29, %s30
      %p34 = pneg %p28
      %p35 = scmp.eq.s32.totalorder %s19, 1
      %p36 = por %p34, %p35
      %p37 = scmp.ne.s32.totalorder %s29, %s32
      %p38 = scmp.eq.s32.totalorder %s19, 0
      %p39 = por %p37, %p38
      %p40 = scmp.ne.s32.totalorder %s29, %s32
      %p41 = scmp.eq.s32.totalorder %s24, 1
      %p42 = por %p40, %p41
      %p43 = scmp.ne.s32.totalorder %s32, %s33
      %p44 = scmp.eq.s32.totalorder %s24, 0
      %p45 = por %p43, %p44
      %p46 = scmp.ne.s32.totalorder %s32, %s33
      %p47 = scmp.eq.s32.totalorder %s25, 1
      %p48 = por %p46, %p47
      %p50 = scmp.ne.s32.totalorder %s33, %s49
      %p51 = scmp.eq.s32.totalorder %s25, 0
      %p52 = por %p50, %p51
      %s53 = ssub.s32 %s19, %s26
      %p54 = scmp.eq.s32.totalorder %s53, 0
      %s56 = sadd.s32 %s55, 1
      %s57 = scalar_select %p54, %s55, %s56
      %p60 = pneg %p54
      %p61 = scmp.eq.s32.totalorder %s19, 1
      %p62 = por %p60, %p61
      %p63 = scmp.ne.s32.totalorder %s55, %s58
      %p64 = scmp.eq.s32.totalorder %s19, 0
      %p65 = por %p63, %p64
      %p66 = scmp.ne.s32.totalorder %s55, %s58
      %p67 = scmp.eq.s32.totalorder %s24, 1
      %p68 = por %p66, %p67
      %p69 = scmp.ne.s32.totalorder %s58, %s59
      %p70 = scmp.eq.s32.totalorder %s24, 0
      %p71 = por %p69, %p70
      %p72 = scmp.ne.s32.totalorder %s58, %s59
      %p73 = scmp.eq.s32.totalorder %s25, 1
      %p74 = por %p72, %p73
      %p76 = scmp.ne.s32.totalorder %s59, %s75
      %p77 = scmp.eq.s32.totalorder %s25, 0
      %p78 = por %p76, %p77
      %s80 = sadd.s32 %s79, 1
      %p83 = scmp.eq.s32.totalorder %s19, 1
      %p84 = scmp.ne.s32.totalorder %s79, %s81
      %p85 = scmp.eq.s32.totalorder %s19, 0
      %p86 = por %p84, %p85
      %p87 = scmp.ne.s32.totalorder %s79, %s81
      %p88 = scmp.eq.s32.totalorder %s24, 1
      %p89 = por %p87, %p88
      %p90 = scmp.ne.s32.totalorder %s81, %s82
      %p91 = scmp.eq.s32.totalorder %s24, 0
      %p92 = por %p90, %p91
      %p93 = scmp.ne.s32.totalorder %s81, %s82
      %p94 = scmp.eq.s32.totalorder %s25, 1
      %p95 = por %p93, %p94
      %p97 = scmp.ne.s32.totalorder %s82, %s96
      %p98 = scmp.eq.s32.totalorder %s25, 0
      %p99 = por %p97, %p98
      %s101 = sadd.s32 %s100, 1
      %p104 = scmp.eq.s32.totalorder %s19, 1
      %p105 = scmp.ne.s32.totalorder %s100, %s102
      %p106 = scmp.eq.s32.totalorder %s19, 0
      %p107 = por %p105, %p106
      %p108 = scmp.ne.s32.totalorder %s100, %s102
      %p109 = scmp.eq.s32.totalorder %s24, 1
      %p110 = por %p108, %p109
      %p111 = scmp.ne.s32.totalorder %s102, %s103
      %p112 = scmp.eq.s32.totalorder %s24, 0
      %p113 = por %p111, %p112
      %p114 = scmp.ne.s32.totalorder %s102, %s103
      %p115 = scmp.eq.s32.totalorder %s25, 1
      %p116 = por %p114, %p115
      %p118 = scmp.ne.s32.totalorder %s103, %s117
      %p119 = scmp.eq.s32.totalorder %s25, 0
      %p120 = por %p118, %p119
      %s122 = sadd.s32 %s121, 1
      %p125 = scmp.eq.s32.totalorder %s19, 1
      %p126 = scmp.ne.s32.totalorder %s121, %s123
      %p127 = scmp.eq.s32.totalorder %s19, 0
      %p128 = por %p126, %p127
      %p129 = scmp.ne.s32.totalorder %s121, %s123
      %p130 = scmp.eq.s32.totalorder %s24, 1
      %p131 = por %p129, %p130
      %p132 = scmp.ne.s32.totalorder %s123, %s124
      %p133 = scmp.eq.s32.totalorder %s24, 0
      %p134 = por %p132, %p133
      %p135 = scmp.ne.s32.totalorder %s123, %s124
      %p136 = scmp.eq.s32.totalorder %s25, 1
      %p137 = por %p135, %p136
      %p139 = scmp.ne.s32.totalorder %s124, %s138
      %p140 = scmp.eq.s32.totalorder %s25, 0
      %p141 = por %p139, %p140
      %s143 = sadd.s32 %s142, 1
      %p146 = scmp.eq.s32.totalorder %s19, 1
      %p147 = scmp.ne.s32.totalorder %s142, %s144
      %p148 = scmp.eq.s32.totalorder %s19, 0
      %p149 = por %p147, %p148
      %p150 = scmp.ne.s32.totalorder %s142, %s144
      %p151 = scmp.eq.s32.totalorder %s24, 1
      %p152 = por %p150, %p151
      %p153 = scmp.ne.s32.totalorder %s144, %s145
      %p154 = scmp.eq.s32.totalorder %s24, 0
      %p155 = por %p153, %p154
      %p156 = scmp.ne.s32.totalorder %s144, %s145
      %p157 = scmp.eq.s32.totalorder %s25, 1
      %p158 = por %p156, %p157
      %p160 = scmp.ne.s32.totalorder %s145, %s159
      %p161 = scmp.eq.s32.totalorder %s25, 0
      %p162 = por %p160, %p161
      %s164 = sadd.s32 %s163, 1
      %p167 = scmp.eq.s32.totalorder %s19, 1
      %p168 = scmp.ne.s32.totalorder %s163, %s165
      %p169 = scmp.eq.s32.totalorder %s19, 0
      %p170 = por %p168, %p169
      %p171 = scmp.ne.s32.totalorder %s163, %s165
      %p172 = scmp.eq.s32.totalorder %s24, 1
      %p173 = por %p171, %p172
      %p174 = scmp.ne.s32.totalorder %s165, %s166
      %p175 = scmp.eq.s32.totalorder %s24, 0
      %p176 = por %p174, %p175
      %p177 = scmp.ne.s32.totalorder %s165, %s166
      %p178 = scmp.eq.s32.totalorder %s25, 1
      %p179 = por %p177, %p178
      %p181 = scmp.ne.s32.totalorder %s166, %s180
      %p182 = scmp.eq.s32.totalorder %s25, 0
      %p183 = por %p181, %p182
      %s185 = sadd.s32 %s184, 1
      %p188 = scmp.eq.s32.totalorder %s19, 1
      %p189 = scmp.ne.s32.totalorder %s184, %s186
      %p190 = scmp.eq.s32.totalorder %s19, 0
      %p191 = por %p189, %p190
      %p192 = scmp.ne.s32.totalorder %s184, %s186
      %p193 = scmp.eq.s32.totalorder %s24, 1
      %p194 = por %p192, %p193
      %p195 = scmp.ne.s32.totalorder %s186, %s187
      %p196 = scmp.eq.s32.totalorder %s24, 0
      %p197 = por %p195, %p196
      %p198 = scmp.ne.s32.totalorder %s186, %s187
      %p199 = scmp.eq.s32.totalorder %s25, 1
      %p200 = por %p198, %p199
      %p202 = scmp.ne.s32.totalorder %s187, %s201
      %p203 = scmp.eq.s32.totalorder %s25, 0
      %p204 = por %p202, %p203
      %s206 = sadd.s32 %s205, 1
      %p209 = scmp.eq.s32.totalorder %s19, 1
      %p210 = scmp.ne.s32.totalorder %s205, %s207
      %p211 = scmp.eq.s32.totalorder %s19, 0
      %p212 = por %p210, %p211
      %p213 = scmp.ne.s32.totalorder %s205, %s207
      %p214 = scmp.eq.s32.totalorder %s24, 1
      %p215 = por %p213, %p214
      %p216 = scmp.ne.s32.totalorder %s207, %s208
      %p217 = scmp.eq.s32.totalorder %s24, 0
      %p218 = por %p216, %p217
      %p219 = scmp.ne.s32.totalorder %s207, %s208
      %p220 = scmp.eq.s32.totalorder %s25, 1
      %p221 = por %p219, %p220
      %p223 = scmp.ne.s32.totalorder %s208, %s222
      %p224 = scmp.eq.s32.totalorder %s25, 0
      %p225 = por %p223, %p224
      %s227 = sadd.s32 %s226, 1
      %p230 = scmp.eq.s32.totalorder %s19, 1
      %p231 = scmp.ne.s32.totalorder %s226, %s228
      %p232 = scmp.eq.s32.totalorder %s19, 0
      %p233 = por %p231, %p232
      %p234 = scmp.ne.s32.totalorder %s226, %s228
      %p235 = scmp.eq.s32.totalorder %s24, 1
      %p236 = por %p234, %p235
      %p237 = scmp.ne.s32.totalorder %s228, %s229
      %p238 = scmp.eq.s32.totalorder %s24, 0
      %p239 = por %p237, %p238
      %p240 = scmp.ne.s32.totalorder %s228, %s229
      %p241 = scmp.eq.s32.totalorder %s25, 1
      %p242 = por %p240, %p241
      %p244 = scmp.ne.s32.totalorder %s229, %s243
      %p245 = scmp.eq.s32.totalorder %s25, 0
      %p246 = por %p244, %p245
      %s247 = ssub.s32 %s19, %s26
      %p248 = scmp.eq.s32.totalorder %s247, 0
      %s250 = sadd.s32 %s249, 1
      %s251 = scalar_select %p248, %s249, %s250
      %p254 = pneg %p248
      %p255 = scmp.eq.s32.totalorder %s19, 1
      %p256 = por %p254, %p255
      %p257 = scmp.ne.s32.totalorder %s249, %s252
      %p258 = scmp.eq.s32.totalorder %s19, 0
      %p259 = por %p257, %p258
      %p260 = scmp.ne.s32.totalorder %s249, %s252
      %p261 = scmp.eq.s32.totalorder %s24, 1
      %p262 = por %p260, %p261
      %p263 = scmp.ne.s32.totalorder %s252, %s253
      %p264 = scmp.eq.s32.totalorder %s24, 0
      %p265 = por %p263, %p264
      %p266 = scmp.ne.s32.totalorder %s252, %s253
      %p267 = scmp.eq.s32.totalorder %s25, 1
      %p268 = por %p266, %p267
      %p270 = scmp.ne.s32.totalorder %s253, %s269
      %p271 = scmp.eq.s32.totalorder %s25, 0
      %p272 = por %p270, %p271
      %p273 = scmp.le.s32.totalorder 1, %s19
      %p274 = scmp.lt.s32.totalorder %s19, 3
      %p275 = pnand %p273, %p274
      %p276 = pneg %p275
      // Predicated region
      $region9: #{bert_base_forward.1} parent=5 // pred_check
        _
      $region10: #{bert_base_forward.1} parent=5 // pred_check_branch
        %278 = sbr.rel (%p275) target = $region12
      $region11: #{bert_base_forward.1} parent=5 // pred_region
        %s279 = ssub.s32 %s19, 1
        // Predicated region
        $region13: #{bert_base_forward.1} parent=11 // pred_check
          %p280 = pneg %p92
        $region14: #{bert_base_forward.1} parent=11 // pred_check_branch
          %282 = sbr.rel (%p280) target = $region16
        $region15: #{bert_base_forward.1} parent=11 // pred_region
          _
        $region16: #{bert_base_forward.1} parent=11 // pred_fallthru
          _
        // Predicated region
        $region17: #{bert_base_forward.1} parent=11 // pred_check
          %p283 = pneg %p113
        $region18: #{bert_base_forward.1} parent=11 // pred_check_branch
          %285 = sbr.rel (%p283) target = $region20
        $region19: #{bert_base_forward.1} parent=11 // pred_region
          _
        $region20: #{bert_base_forward.1} parent=11 // pred_fallthru
          _
        // Predicated region
        $region21: #{bert_base_forward.1} parent=11 // pred_check
          %p286 = pneg %p134
        $region22: #{bert_base_forward.1} parent=11 // pred_check_branch
          %288 = sbr.rel (%p286) target = $region24
        $region23: #{bert_base_forward.1} parent=11 // pred_region
          _
        $region24: #{bert_base_forward.1} parent=11 // pred_fallthru
          _
        // Predicated region
        $region25: #{bert_base_forward.1} parent=11 // pred_check
          %p289 = pneg %p155
        $region26: #{bert_base_forward.1} parent=11 // pred_check_branch
          %291 = sbr.rel (%p289) target = $region28
        $region27: #{bert_base_forward.1} parent=11 // pred_region
          _
        $region28: #{bert_base_forward.1} parent=11 // pred_fallthru
          _
        // Predicated region
        $region29: #{bert_base_forward.1} parent=11 // pred_check
          %p292 = pneg %p176
        $region30: #{bert_base_forward.1} parent=11 // pred_check_branch
          %294 = sbr.rel (%p292) target = $region32
        $region31: #{bert_base_forward.1} parent=11 // pred_region
          _
        $region32: #{bert_base_forward.1} parent=11 // pred_fallthru
          _
        // Predicated region
        $region33: #{bert_base_forward.1} parent=11 // pred_check
          %p295 = pneg %p197
        $region34: #{bert_base_forward.1} parent=11 // pred_check_branch
          %297 = sbr.rel (%p295) target = $region36
        $region35: #{bert_base_forward.1} parent=11 // pred_region
          _
        $region36: #{bert_base_forward.1} parent=11 // pred_fallthru
          _
        // Predicated region
        $region37: #{bert_base_forward.1} parent=11 // pred_check
          %p298 = pneg %p218
        $region38: #{bert_base_forward.1} parent=11 // pred_check_branch
          %300 = sbr.rel (%p298) target = $region40
        $region39: #{bert_base_forward.1} parent=11 // pred_region
          _
        $region40: #{bert_base_forward.1} parent=11 // pred_fallthru
          _
        // Predicated region
        $region41: #{bert_base_forward.1} parent=11 // pred_check
          %p301 = pneg %p239
        $region42: #{bert_base_forward.1} parent=11 // pred_check_branch
          %303 = sbr.rel (%p301) target = $region44
        $region43: #{bert_base_forward.1} parent=11 // pred_region
          _
        $region44: #{bert_base_forward.1} parent=11 // pred_fallthru
          _
      $region12: #{bert_base_forward.1} parent=5 // pred_fallthru
        _
      %p304 = scmp.lt.s32.totalorder %s19, 2
      // Predicated region
      $region45: #{bert_base_forward.1} parent=5 // pred_check
        %p305 = pneg %p304
      $region46: #{bert_base_forward.1} parent=5 // pred_check_branch
        %307 = sbr.rel (%p305) target = $region48
      $region47: #{bert_base_forward.1} parent=5 // pred_region
        // Predicated region
        $region49: #{bert_base_forward.1} parent=47 // pred_check
          %p308 = pneg %p39
        $region50: #{bert_base_forward.1} parent=47 // pred_check_branch
          %310 = sbr.rel (%p308) target = $region52
        $region51: #{bert_base_forward.1} parent=47 // pred_region
          %p311 = scmp.lt.s32.totalorder %s19, 1
          %s312 = scalar_select %p311, %s19, 1
          %s313 = smul.addr %s312, 8
          %s314 = scalar_lea.vmem %s0, %s313
        $region52: #{bert_base_forward.1} parent=47 // pred_fallthru
          _
        // Predicated region
        $region53: #{bert_base_forward.1} parent=47 // pred_check
          %p315 = pneg %p65
        $region54: #{bert_base_forward.1} parent=47 // pred_check_branch
          %317 = sbr.rel (%p315) target = $region56
        $region55: #{bert_base_forward.1} parent=47 // pred_region
          %p318 = scmp.lt.s32.totalorder %s19, 1
          %s319 = scalar_select %p318, %s19, 1
          %s320 = scalar_lea.vmem %s1, %s319
        $region56: #{bert_base_forward.1} parent=47 // pred_fallthru
          _
      $region48: #{bert_base_forward.1} parent=5 // pred_fallthru
        _
      %p321 = scmp.le.s32.totalorder 1, %s19
      %p322 = scmp.lt.s32.totalorder %s19, 3
      %p323 = pnand %p321, %p322
      %p324 = pneg %p323
      // Predicated region
      $region57: #{bert_base_forward.1} parent=5 // pred_check
        _
      $region58: #{bert_base_forward.1} parent=5 // pred_check_branch
        %326 = sbr.rel (%p323) target = $region60
      $region59: #{bert_base_forward.1} parent=5 // pred_region
        %s327 = ssub.s32 %s19, 1
        %p328 = scmp.lt.s32.totalorder %s24, 1
        %s329 = scalar_select %p328, %s24, 1
        %s330 = smul.addr %s329, 8
        %s331 = scalar_lea.vmem %s0, %s330
        %p332 = pneg %p45
        %p333 = pneg %p42
        %p334 = scmp.lt.s32.totalorder %s24, 1
        %s335 = scalar_select %p334, %s24, 1
        %s336 = scalar_lea.vmem %s1, %s335
        %p337 = pneg %p71
        %p338 = pneg %p68
        %p339 = pneg %p92
        %p340 = pneg %p89
        %p341 = pneg %p113
        %p342 = pneg %p110
        %p343 = pneg %p134
        %p344 = pneg %p131
        %p345 = pneg %p155
        %p346 = pneg %p152
        %p347 = pneg %p176
        %p348 = pneg %p173
        %p349 = pneg %p197
        %p350 = pneg %p194
        %p351 = pneg %p218
        %p352 = pneg %p215
        %p353 = pneg %p239
        %p354 = pneg %p236
        %p355 = pneg %p265
        %p356 = pneg %p262
        %s357 = sand.u32 %s252, 1
        %s358 = scalar_lea.sflag [#allocation4], %s357
        %s359 = sand.u32 %s252, 1
        %s360 = scalar_lea.vmem [#allocation3], %s359
        %p361 = scmp.lt.s32.totalorder %s24, 1
        %s362 = scalar_select %p361, %s24, 1
        %s363 = smul.addr %s362, 8
        %s364 = scalar_lea.vmem %s0, %s363
        %p365 = scmp.lt.s32.totalorder %s24, 1
        %s366 = scalar_select %p365, %s24, 1
        %s367 = scalar_lea.vmem %s1, %s366
        %v369 = vld [vmem:[%s367] sm:$0x1]
        %vm370 = vcmp.gt.s32.totalorder %v369, 0
        %v371 = vsel %vm370, 0.0, -1e+09
        %v372 = vld [vmem:[%s9] sm:$0xf]
        %v373 = vld [vmem:[%s364] sm:$0xff]
        %vm374 = vcmask 523264
        %v375 = vsel %vm374, %v373, 0.0
        %376 = vadd.xlane.f32.xlu0 %v375
        %v377 = vpop.xlane.xlu0 %376
        %v378 = vrcp.pop 64.0
        %v379 = vmul.f32 %v377, %v378
        %v380 = vsub.f32 %v373, %v379
        %v381 = vmul.f32 %v380, %v380
        %v382 = vsel %vm374, %v381, 0.0
        %383 = vadd.xlane.f32.xlu0 %v382
        %v384 = vpop.xlane.xlu0 %383
        %v385 = vmul.f32 %v384, %v378
        %v386 = vadd.f32 %v385, 1e-12
        %v387 = vrsqrt.pop %v386
        %v388 = vmul.f32 %v380, %v387
        %v389 = vlaneseq
        %v390 = vshrl.u32 %v389, 7
        %v391 = vsub.s32 0, %v390
        %v392 = vrot.slane %v372, %v391
        %v393 = vmul.f32 %v388, %v392
        %v394 = vlaneseq
        %v395 = vshrl.u32 %v394, 7
        %v396 = vsub.s32 1, %v395
        %v397 = vrot.slane %v372, %v396
        %v398 = vadd.f32 %v393, %v397
        %v399 = vld [vmem:[%s6] sm:$0xff]
        %v400 = vld [vmem:[%s6 + $0x8] sm:$0xff]
        %v401 = vpack.c.bf16 %v398, %v398
        %v402 = vld [vmem:[%s2] sm:$0xff]
        %v403 = vld [vmem:[%s2 + $0x8] sm:$0xff]
        %v404 = vld [vmem:[%s2 + $0x10] sm:$0xff]
        %v405 = vld [vmem:[%s2 + $0x18] sm:$0xff]
        %v406 = vld [vmem:[%s2 + $0x20] sm:$0xff]
        %v407 = vld [vmem:[%s2 + $0x28] sm:$0xff]
        %v408 = vld [vmem:[%s2 + $0x30] sm:$0xff]
        %v409 = vld [vmem:[%s2 + $0x38] sm:$0xff]
        %v410 = vlaneseq
        %v411 = vshrl.u32 %v410, 7
        %v412 = vsub.s32 0, %v411
        %v413 = vrot.slane %v399, %v412
        %v414 = vlaneseq
        %v415 = vshrl.u32 %v414, 7
        %v416 = vsub.s32 0, %v415
        %v417 = vrot.slane %v400, %v416
        %v426 = vunpack.c.l.b16 %v402
        %v427 = vunpack.c.h.b16 %v402
        %v428 = vunpack.c.l.b16 %v403
        %v429 = vunpack.c.h.b16 %v403
        %v430 = vunpack.c.l.b16 %v404
        %v431 = vunpack.c.h.b16 %v404
        %v432 = vunpack.c.l.b16 %v405
        %v433 = vunpack.c.h.b16 %v405
        %v434 = vunpack.c.l.b16 %v406
        %v435 = vunpack.c.h.b16 %v406
        %v436 = vunpack.c.l.b16 %v407
        %v437 = vunpack.c.h.b16 %v407
        %v438 = vunpack.c.l.b16 %v408
        %v439 = vunpack.c.h.b16 %v408
        %v440 = vunpack.c.l.b16 %v409
        %v441 = vunpack.c.h.b16 %v409
        %v442 = vpack.c.b16 %v428, %v426
        %v443 = vpack.c.b16 %v429, %v427
        %v444 = vpack.c.b16 %v432, %v430
        %v445 = vpack.c.b16 %v433, %v431
        %v446 = vpack.c.b16 %v436, %v434
        %v447 = vpack.c.b16 %v437, %v435
        %v448 = vpack.c.b16 %v440, %v438
        %v449 = vpack.c.b16 %v441, %v439
        %v459 = vsel %vm374, %v401, 0
        %461 = vmatprep.subr.bf16.mxu0 %v443
        %462 = vmatpush1.bf16.msra.mxu0 %v442
        %463 = vmatprep.subr.bf16.mxu0 %v445
        %464 = vmatpush1.bf16.msra.mxu0 %v444
        %465 = vmatprep.subr.bf16.mxu0 %v447
        %466 = vmatpush1.bf16.msra.mxu0 %v446
        %467 = vmatprep.subr.bf16.mxu0 %v449
        %468 = vmatpush1.bf16.msra.mxu0 %v448
        %469 = vmatprep.subr.bf16.mxu0 0
        %470 = vmatpush1.bf16.msra.mxu0 0
        %471 = vmatprep.subr.bf16.mxu0 0
        %472 = vmatpush1.bf16.msra.mxu0 0
        %473 = vmatprep.subr.bf16.mxu0 0
        %474 = vmatpush1.bf16.msra.mxu0 0
        %475 = vmatprep.subr.bf16.mxu0 0
        %476 = vmatpush1.bf16.msra.mxu0 0
        %477 = vmatprep.subr.bf16.mxu0 0
        %478 = vmatpush1.bf16.msra.mxu0 0
        %479 = vmatprep.subr.bf16.mxu0 0
        %480 = vmatpush1.bf16.msra.mxu0 0
        %481 = vmatprep.subr.bf16.mxu0 0
        %482 = vmatpush1.bf16.msra.mxu0 0
        %483 = vmatprep.subr.bf16.mxu0 0
        %484 = vmatpush1.bf16.msra.mxu0 0
        %485 = vmatprep.subr.bf16.mxu0 0
        %486 = vmatpush1.bf16.msra.mxu0 0
        %487 = vmatprep.subr.bf16.mxu0 0
        %488 = vmatpush1.bf16.msra.mxu0 0
        %489 = vmatprep.subr.bf16.mxu0 0
        %490 = vmatpush1.bf16.msra.mxu0 0
        %491 = vmatprep.subr.bf16.mxu0 0
        %492 = vmatpush1.bf16.msra.mxu0 0
        %493 = vmatprep.mubr.bf16.mxu0 0
        %494 = vmatmul.mubr.bf16.gmra.mrb[0].mxu0 %v459
        %v495 = vpop.f32.mrb[0].mxu0
        %v496 = vadd.f32 %v413, %v495
        %v497 = vpop.f32.mrb[0].mxu0
        %v498 = vadd.f32 %v417, %v497
        %v499 = vpop.f32.mrb[0].mxu0
        %v500 = vpop.f32.mrb[0].mxu0
        %501 = vdwg.mxu0
        %v502 = vpack.c.bf16 %v496, %v496
        %v503 = vpack.c.bf16 %v498, %v498
        %v505 = vlaneseq
        %v506 = vshrl.u32 %v505, 7
        %v507 = vsub.s32 0, %v506
        %v508 = vrot.slane %v371, %v507
        %511 = vrot.lane.b32.xlu0 %v502, 64
        %v512 = vpop.permute.xlu0 %511
        %vm513 = vcmask 130048
        %v515 = vsel %vm513, %v502, 0
        %v518 = vsel %vm513, %v512, 0
        %520 = vmatprep.subr.bf16.mxu0 0
        %521 = vmatpush1.bf16.xpose.msra.mxu0 %v518
        %522 = vmatprep.subr.bf16.mxu0 0
        %523 = vmatpush1.bf16.xpose.msra.mxu0 0
        %524 = vmatprep.subr.bf16.mxu0 0
        %525 = vmatpush1.bf16.xpose.msra.mxu0 0
        %526 = vmatprep.subr.bf16.mxu0 0
        %527 = vmatpush1.bf16.xpose.msra.mxu0 0
        %528 = vmatprep.subr.bf16.mxu0 0
        %529 = vmatpush1.bf16.xpose.msra.mxu0 0
        %530 = vmatprep.subr.bf16.mxu0 0
        %531 = vmatpush1.bf16.xpose.msra.mxu0 0
        %532 = vmatprep.subr.bf16.mxu0 0
        %533 = vmatpush1.bf16.xpose.msra.mxu0 0
        %534 = vmatprep.subr.bf16.mxu0 0
        %535 = vmatpush1.bf16.xpose.msra.mxu0 0
        %536 = vmatprep.subr.bf16.mxu0 0
        %537 = vmatpush1.bf16.xpose.msra.mxu0 0
        %538 = vmatprep.subr.bf16.mxu0 0
        %539 = vmatpush1.bf16.xpose.msra.mxu0 0
        %540 = vmatprep.subr.bf16.mxu0 0
        %541 = vmatpush1.bf16.xpose.msra.mxu0 0
        %542 = vmatprep.subr.bf16.mxu0 0
        %543 = vmatpush1.bf16.xpose.msra.mxu0 0
        %544 = vmatprep.subr.bf16.mxu0 0
        %545 = vmatpush1.bf16.xpose.msra.mxu0 0
        %546 = vmatprep.subr.bf16.mxu0 0
        %547 = vmatpush1.bf16.xpose.msra.mxu0 0
        %548 = vmatprep.subr.bf16.mxu0 0
        %549 = vmatpush1.bf16.xpose.msra.mxu0 0
        %550 = vmatprep.subr.bf16.mxu0 0
        %551 = vmatpush1.bf16.xpose.msra.mxu0 0
        %552 = vmatprep.mubr.bf16.mxu0 0
        %553 = vmatmul.mubr.bf16.gmra.mrb[0].mxu0 %v515
        %v554 = vpop.f32.mrb[0].mxu0
        %v555 = vadd.f32 %v508, %v554
        %v556 = vpop.f32.mrb[0].mxu0
        %v557 = vpop.f32.mrb[0].mxu0
        %v558 = vpop.f32.mrb[0].mxu0
        %559 = vdwg.mxu0
        %vm560 = vcmask 64512
        %v561 = vsel %vm560, %v555, -inf
        %562 = vmax.xlane.f32.xlu0 %v561
        %v563 = vpop.xlane.xlu0 %562
        %v564 = vsub.f32 %v555, %v563
        %v565 = vmul.f32 %v564, 1.442695
        %v566 = vpow.pop %v565
        %v567 = vsel %vm560, %v566, 0.0
        %568 = vadd.xlane.f32.xlu0 %v567
        %v569 = vpop.xlane.xlu0 %568
        %v570 = vrcp.pop %v569
        %v571 = vmul.f32 %v566, %v570
        %v572 = vpack.c.bf16 %v571, %v571
        %v574 = vsel %vm560, %v572, 0
        %vm576 = vcmask 1043456
        %v578 = vsel %vm576, %v503, 0
        %580 = vmatprep.subr.bf16.mxu0 0
        %581 = vmatpush1.bf16.msra.mxu0 %v578
        %582 = vmatprep.subr.bf16.mxu0 0
        %583 = vmatpush1.bf16.msra.mxu0 0
        %584 = vmatprep.subr.bf16.mxu0 0
        %585 = vmatpush1.bf16.msra.mxu0 0
        %586 = vmatprep.subr.bf16.mxu0 0
        %587 = vmatpush1.bf16.msra.mxu0 0
        %588 = vmatprep.subr.bf16.mxu0 0
        %589 = vmatpush1.bf16.msra.mxu0 0
        %590 = vmatprep.subr.bf16.mxu0 0
        %591 = vmatpush1.bf16.msra.mxu0 0
        %592 = vmatprep.subr.bf16.mxu0 0
        %593 = vmatpush1.bf16.msra.mxu0 0
        %594 = vmatprep.subr.bf16.mxu0 0
        %595 = vmatpush1.bf16.msra.mxu0 0
        %596 = vmatprep.subr.bf16.mxu0 0
        %597 = vmatpush1.bf16.msra.mxu0 0
        %598 = vmatprep.subr.bf16.mxu0 0
        %599 = vmatpush1.bf16.msra.mxu0 0
        %600 = vmatprep.subr.bf16.mxu0 0
        %601 = vmatpush1.bf16.msra.mxu0 0
        %602 = vmatprep.subr.bf16.mxu0 0
        %603 = vmatpush1.bf16.msra.mxu0 0
        %604 = vmatprep.subr.bf16.mxu0 0
        %605 = vmatpush1.bf16.msra.mxu0 0
        %606 = vmatprep.subr.bf16.mxu0 0
        %607 = vmatpush1.bf16.msra.mxu0 0
        %608 = vmatprep.subr.bf16.mxu0 0
        %609 = vmatpush1.bf16.msra.mxu0 0
        %610 = vmatprep.subr.bf16.mxu0 0
        %611 = vmatpush1.bf16.msra.mxu0 0
        %612 = vmatprep.mubr.bf16.mxu0 0
        %613 = vmatmul.mubr.bf16.gmra.mrb[0].mxu0 %v574
        %v614 = vpop.f32.mrb[0].mxu0
        %v615 = vadd.f32 0.0, %v614
        %v616 = vpop.f32.mrb[0].mxu0
        %v617 = vpop.f32.mrb[0].mxu0
        %v618 = vpop.f32.mrb[0].mxu0
        %619 = vdwg.mxu0
        %620 = vst.msk [vmem:[#allocation2] sm:$0xff] %vm513, %v615
        %621 = vrot.lane.b32.xlu0 %v502, 112
        %v622 = vpop.permute.xlu0 %621
        %623 = vrot.lane.b32.xlu0 %v502, 48
        %v624 = vpop.permute.xlu0 %623
        %v626 = vsel %vm513, %v622, 0
        %v629 = vsel %vm513, %v624, 0
        %631 = vmatprep.subr.bf16.mxu0 0
        %632 = vmatpush1.bf16.xpose.msra.mxu0 %v629
        %633 = vmatprep.subr.bf16.mxu0 0
        %634 = vmatpush1.bf16.xpose.msra.mxu0 0
        %635 = vmatprep.subr.bf16.mxu0 0
        %636 = vmatpush1.bf16.xpose.msra.mxu0 0
        %637 = vmatprep.subr.bf16.mxu0 0
        %638 = vmatpush1.bf16.xpose.msra.mxu0 0
        %639 = vmatprep.subr.bf16.mxu0 0
        %640 = vmatpush1.bf16.xpose.msra.mxu0 0
        %641 = vmatprep.subr.bf16.mxu0 0
        %642 = vmatpush1.bf16.xpose.msra.mxu0 0
        %643 = vmatprep.subr.bf16.mxu0 0
        %644 = vmatpush1.bf16.xpose.msra.mxu0 0
        %645 = vmatprep.subr.bf16.mxu0 0
        %646 = vmatpush1.bf16.xpose.msra.mxu0 0
        %647 = vmatprep.subr.bf16.mxu0 0
        %648 = vmatpush1.bf16.xpose.msra.mxu0 0
        %649 = vmatprep.subr.bf16.mxu0 0
        %650 = vmatpush1.bf16.xpose.msra.mxu0 0
        %651 = vmatprep.subr.bf16.mxu0 0
        %652 = vmatpush1.bf16.xpose.msra.mxu0 0
        %653 = vmatprep.subr.bf16.mxu0 0
        %654 = vmatpush1.bf16.xpose.msra.mxu0 0
        %655 = vmatprep.subr.bf16.mxu0 0
        %656 = vmatpush1.bf16.xpose.msra.mxu0 0
        %657 = vmatprep.subr.bf16.mxu0 0
        %658 = vmatpush1.bf16.xpose.msra.mxu0 0
        %659 = vmatprep.subr.bf16.mxu0 0
        %660 = vmatpush1.bf16.xpose.msra.mxu0 0
        %661 = vmatprep.subr.bf16.mxu0 0
        %662 = vmatpush1.bf16.xpose.msra.mxu0 0
        %663 = vmatprep.mubr.bf16.mxu0 0
        %664 = vmatmul.mubr.bf16.gmra.mrb[0].mxu0 %v626
        %v665 = vpop.f32.mrb[0].mxu0
        %v666 = vadd.f32 %v508, %v665
        %v667 = vpop.f32.mrb[0].mxu0
        %v668 = vpop.f32.mrb[0].mxu0
        %v669 = vpop.f32.mrb[0].mxu0
        %670 = vdwg.mxu0
        %v671 = vsel %vm560, %v666, -inf
        %672 = vmax.xlane.f32.xlu0 %v671
        %v673 = vpop.xlane.xlu0 %672
        %v674 = vsub.f32 %v666, %v673
        %v675 = vmul.f32 %v674, 1.442695
        %v676 = vpow.pop %v675
        %v677 = vsel %vm560, %v676, 0.0
        %678 = vadd.xlane.f32.xlu0 %v677
        %v679 = vpop.xlane.xlu0 %678
        %v680 = vrcp.pop %v679
        %v681 = vmul.f32 %v676, %v680
        %v682 = vpack.c.bf16 %v681, %v681
        %684 = vrot.lane.b32.xlu0 %v503, 112
        %v685 = vpop.permute.xlu0 %684
        %v687 = vsel %vm560, %v682, 0
        %v690 = vsel %vm576, %v685, 0
        %692 = vmatprep.subr.bf16.mxu0 0
        %693 = vmatpush1.bf16.msra.mxu0 %v690
        %694 = vmatprep.subr.bf16.mxu0 0
        %695 = vmatpush1.bf16.msra.mxu0 0
        %696 = vmatprep.subr.bf16.mxu0 0
        %697 = vmatpush1.bf16.msra.mxu0 0
        %698 = vmatprep.subr.bf16.mxu0 0
        %699 = vmatpush1.bf16.msra.mxu0 0
        %700 = vmatprep.subr.bf16.mxu0 0
        %701 = vmatpush1.bf16.msra.mxu0 0
        %702 = vmatprep.subr.bf16.mxu0 0
        %703 = vmatpush1.bf16.msra.mxu0 0
        %704 = vmatprep.subr.bf16.mxu0 0
        %705 = vmatpush1.bf16.msra.mxu0 0
        %706 = vmatprep.subr.bf16.mxu0 0
        %707 = vmatpush1.bf16.msra.mxu0 0
        %708 = vmatprep.subr.bf16.mxu0 0
        %709 = vmatpush1.bf16.msra.mxu0 0
        %710 = vmatprep.subr.bf16.mxu0 0
        %711 = vmatpush1.bf16.msra.mxu0 0
        %712 = vmatprep.subr.bf16.mxu0 0
        %713 = vmatpush1.bf16.msra.mxu0 0
        %714 = vmatprep.subr.bf16.mxu0 0
        %715 = vmatpush1.bf16.msra.mxu0 0
        %716 = vmatprep.subr.bf16.mxu0 0
        %717 = vmatpush1.bf16.msra.mxu0 0
        %718 = vmatprep.subr.bf16.mxu0 0
        %719 = vmatpush1.bf16.msra.mxu0 0
        %720 = vmatprep.subr.bf16.mxu0 0
        %721 = vmatpush1.bf16.msra.mxu0 0
        %722 = vmatprep.subr.bf16.mxu0 0
        %723 = vmatpush1.bf16.msra.mxu0 0
        %724 = vmatprep.mubr.bf16.mxu0 0
        %725 = vmatmul.mubr.bf16.gmra.mrb[0].mxu0 %v687
        %v726 = vpop.f32.mrb[0].mxu0
        %v727 = vadd.f32 0.0, %v726
        %v728 = vpop.f32.mrb[0].mxu0
        %v729 = vpop.f32.mrb[0].mxu0
        %v730 = vpop.f32.mrb[0].mxu0
        %731 = vdwg.mxu0
        %733 = vrot.lane.b32.xlu0 %v727, 16
        %v734 = vpop.permute.xlu0 %733
        %vm736 = vcmask 261248
        %737 = vst.msk [vmem:[#allocation2] sm:$0xff] %vm736, %v734
        %738 = vrot.lane.b32.xlu0 %v502, 96
        %v739 = vpop.permute.xlu0 %738
        %740 = vrot.lane.b32.xlu0 %v502, 32
        %v741 = vpop.permute.xlu0 %740
        %v743 = vsel %vm513, %v739, 0
        %v746 = vsel %vm513, %v741, 0
        %748 = vmatprep.subr.bf16.mxu0 0
        %749 = vmatpush1.bf16.xpose.msra.mxu0 %v746
        %750 = vmatprep.subr.bf16.mxu0 0
        %751 = vmatpush1.bf16.xpose.msra.mxu0 0
        %752 = vmatprep.subr.bf16.mxu0 0
        %753 = vmatpush1.bf16.xpose.msra.mxu0 0
        %754 = vmatprep.subr.bf16.mxu0 0
        %755 = vmatpush1.bf16.xpose.msra.mxu0 0
        %756 = vmatprep.subr.bf16.mxu0 0
        %757 = vmatpush1.bf16.xpose.msra.mxu0 0
        %758 = vmatprep.subr.bf16.mxu0 0
        %759 = vmatpush1.bf16.xpose.msra.mxu0 0
        %760 = vmatprep.subr.bf16.mxu0 0
        %761 = vmatpush1.bf16.xpose.msra.mxu0 0
        %762 = vmatprep.subr.bf16.mxu0 0
        %763 = vmatpush1.bf16.xpose.msra.mxu0 0
        %764 = vmatprep.subr.bf16.mxu0 0
        %765 = vmatpush1.bf16.xpose.msra.mxu0 0
        %766 = vmatprep.subr.bf16.mxu0 0
        %767 = vmatpush1.bf16.xpose.msra.mxu0 0
        %768 = vmatprep.subr.bf16.mxu0 0
        %769 = vmatpush1.bf16.xpose.msra.mxu0 0
        %770 = vmatprep.subr.bf16.mxu0 0
        %771 = vmatpush1.bf16.xpose.msra.mxu0 0
        %772 = vmatprep.subr.bf16.mxu0 0
        %773 = vmatpush1.bf16.xpose.msra.mxu0 0
        %774 = vmatprep.subr.bf16.mxu0 0
        %775 = vmatpush1.bf16.xpose.msra.mxu0 0
        %776 = vmatprep.subr.bf16.mxu0 0
        %777 = vmatpush1.bf16.xpose.msra.mxu0 0
        %778 = vmatprep.subr.bf16.mxu0 0
        %779 = vmatpush1.bf16.xpose.msra.mxu0 0
        %780 = vmatprep.mubr.bf16.mxu0 0
        %781 = vmatmul.mubr.bf16.gmra.mrb[0].mxu0 %v743
        %v782 = vpop.f32.mrb[0].mxu0
        %v783 = vadd.f32 %v508, %v782
        %v784 = vpop.f32.mrb[0].mxu0
        %v785 = vpop.f32.mrb[0].mxu0
        %v786 = vpop.f32.mrb[0].mxu0
        %787 = vdwg.mxu0
        %v788 = vsel %vm560, %v783, -inf
        %789 = vmax.xlane.f32.xlu0 %v788
        %v790 = vpop.xlane.xlu0 %789
        %v791 = vsub.f32 %v783, %v790
        %v792 = vmul.f32 %v791, 1.442695
        %v793 = vpow.pop %v792
        %v794 = vsel %vm560, %v793, 0.0
        %795 = vadd.xlane.f32.xlu0 %v794
        %v796 = vpop.xlane.xlu0 %795
        %v797 = vrcp.pop %v796
        %v798 = vmul.f32 %v793, %v797
        %v799 = vpack.c.bf16 %v798, %v798
        %800 = vrot.lane.b32.xlu0 %v503, 96
        %v801 = vpop.permute.xlu0 %800
        %v803 = vsel %vm560, %v799, 0
        %v806 = vsel %vm576, %v801, 0
        %808 = vmatprep.subr.bf16.mxu0 0
        %809 = vmatpush1.bf16.msra.mxu0 %v806
        %810 = vmatprep.subr.bf16.mxu0 0
        %811 = vmatpush1.bf16.msra.mxu0 0
        %812 = vmatprep.subr.bf16.mxu0 0
        %813 = vmatpush1.bf16.msra.mxu0 0
        %814 = vmatprep.subr.bf16.mxu0 0
        %815 = vmatpush1.bf16.msra.mxu0 0
        %816 = vmatprep.subr.bf16.mxu0 0
        %817 = vmatpush1.bf16.msra.mxu0 0
        %818 = vmatprep.subr.bf16.mxu0 0
        %819 = vmatpush1.bf16.msra.mxu0 0
        %820 = vmatprep.subr.bf16.mxu0 0
        %821 = vmatpush1.bf16.msra.mxu0 0
        %822 = vmatprep.subr.bf16.mxu0 0
        %823 = vmatpush1.bf16.msra.mxu0 0
        %824 = vmatprep.subr.bf16.mxu0 0
        %825 = vmatpush1.bf16.msra.mxu0 0
        %826 = vmatprep.subr.bf16.mxu0 0
        %827 = vmatpush1.bf16.msra.mxu0 0
        %828 = vmatprep.subr.bf16.mxu0 0
        %829 = vmatpush1.bf16.msra.mxu0 0
        %830 = vmatprep.subr.bf16.mxu0 0
        %831 = vmatpush1.bf16.msra.mxu0 0
        %832 = vmatprep.subr.bf16.mxu0 0
        %833 = vmatpush1.bf16.msra.mxu0 0
        %834 = vmatprep.subr.bf16.mxu0 0
        %835 = vmatpush1.bf16.msra.mxu0 0
        %836 = vmatprep.subr.bf16.mxu0 0
        %837 = vmatpush1.bf16.msra.mxu0 0
        %838 = vmatprep.subr.bf16.mxu0 0
        %839 = vmatpush1.bf16.msra.mxu0 0
        %840 = vmatprep.mubr.bf16.mxu0 0
        %841 = vmatmul.mubr.bf16.gmra.mrb[0].mxu0 %v803
        %v842 = vpop.f32.mrb[0].mxu0
        %v843 = vadd.f32 0.0, %v842
        %v844 = vpop.f32.mrb[0].mxu0
        %v845 = vpop.f32.mrb[0].mxu0
        %v846 = vpop.f32.mrb[0].mxu0
        %847 = vdwg.mxu0
        %849 = vrot.lane.b32.xlu0 %v843, 32
        %v850 = vpop.permute.xlu0 %849
        %vm852 = vcmask 392448
        %853 = vst.msk [vmem:[#allocation2] sm:$0xff] %vm852, %v850
        %854 = vrot.lane.b32.xlu0 %v502, 80
        %v855 = vpop.permute.xlu0 %854
        %856 = vrot.lane.b32.xlu0 %v502, 16
        %v857 = vpop.permute.xlu0 %856
        %v859 = vsel %vm513, %v855, 0
        %v862 = vsel %vm513, %v857, 0
        %864 = vmatprep.subr.bf16.mxu0 0
        %865 = vmatpush1.bf16.xpose.msra.mxu0 %v862
        %866 = vmatprep.subr.bf16.mxu0 0
        %867 = vmatpush1.bf16.xpose.msra.mxu0 0
        %868 = vmatprep.subr.bf16.mxu0 0
        %869 = vmatpush1.bf16.xpose.msra.mxu0 0
        %870 = vmatprep.subr.bf16.mxu0 0
        %871 = vmatpush1.bf16.xpose.msra.mxu0 0
        %872 = vmatprep.subr.bf16.mxu0 0
        %873 = vmatpush1.bf16.xpose.msra.mxu0 0
        %874 = vmatprep.subr.bf16.mxu0 0
        %875 = vmatpush1.bf16.xpose.msra.mxu0 0
        %876 = vmatprep.subr.bf16.mxu0 0
        %877 = vmatpush1.bf16.xpose.msra.mxu0 0
        %878 = vmatprep.subr.bf16.mxu0 0
        %879 = vmatpush1.bf16.xpose.msra.mxu0 0
        %880 = vmatprep.subr.bf16.mxu0 0
        %881 = vmatpush1.bf16.xpose.msra.mxu0 0
        %882 = vmatprep.subr.bf16.mxu0 0
        %883 = vmatpush1.bf16.xpose.msra.mxu0 0
        %884 = vmatprep.subr.bf16.mxu0 0
        %885 = vmatpush1.bf16.xpose.msra.mxu0 0
        %886 = vmatprep.subr.bf16.mxu0 0
        %887 = vmatpush1.bf16.xpose.msra.mxu0 0
        %888 = vmatprep.subr.bf16.mxu0 0
        %889 = vmatpush1.bf16.xpose.msra.mxu0 0
        %890 = vmatprep.subr.bf16.mxu0 0
        %891 = vmatpush1.bf16.xpose.msra.mxu0 0
        %892 = vmatprep.subr.bf16.mxu0 0
        %893 = vmatpush1.bf16.xpose.msra.mxu0 0
        %894 = vmatprep.subr.bf16.mxu0 0
        %895 = vmatpush1.bf16.xpose.msra.mxu0 0
        %896 = vmatprep.mubr.bf16.mxu0 0
        %897 = vmatmul.mubr.bf16.gmra.mrb[0].mxu0 %v859
        %v898 = vpop.f32.mrb[0].mxu0
        %v899 = vadd.f32 %v508, %v898
        %v900 = vpop.f32.mrb[0].mxu0
        %v901 = vpop.f32.mrb[0].mxu0
        %v902 = vpop.f32.mrb[0].mxu0
        %903 = vdwg.mxu0
        %v904 = vsel %vm560, %v899, -inf
        %905 = vmax.xlane.f32.xlu0 %v904
        %v906 = vpop.xlane.xlu0 %905
        %v907 = vsub.f32 %v899, %v906
        %v908 = vmul.f32 %v907, 1.442695
        %v909 = vpow.pop %v908
        %v910 = vsel %vm560, %v909, 0.0
        %911 = vadd.xlane.f32.xlu0 %v910
        %v912 = vpop.xlane.xlu0 %911
        %v913 = vrcp.pop %v912
        %v914 = vmul.f32 %v909, %v913
        %v915 = vpack.c.bf16 %v914, %v914
        %916 = vrot.lane.b32.xlu0 %v503, 80
        %v917 = vpop.permute.xlu0 %916
        %v919 = vsel %vm560, %v915, 0
        %v922 = vsel %vm576, %v917, 0
        %924 = vmatprep.subr.bf16.mxu0 0
        %925 = vmatpush1.bf16.msra.mxu0 %v922
        %926 = vmatprep.subr.bf16.mxu0 0
        %927 = vmatpush1.bf16.msra.mxu0 0
        %928 = vmatprep.subr.bf16.mxu0 0
        %929 = vmatpush1.bf16.msra.mxu0 0
        %930 = vmatprep.subr.bf16.mxu0 0
        %931 = vmatpush1.bf16.msra.mxu0 0
        %932 = vmatprep.subr.bf16.mxu0 0
        %933 = vmatpush1.bf16.msra.mxu0 0
        %934 = vmatprep.subr.bf16.mxu0 0
        %935 = vmatpush1.bf16.msra.mxu0 0
        %936 = vmatprep.subr.bf16.mxu0 0
        %937 = vmatpush1.bf16.msra.mxu0 0
        %938 = vmatprep.subr.bf16.mxu0 0
        %939 = vmatpush1.bf16.msra.mxu0 0
        %940 = vmatprep.subr.bf16.mxu0 0
        %941 = vmatpush1.bf16.msra.mxu0 0
        %942 = vmatprep.subr.bf16.mxu0 0
        %943 = vmatpush1.bf16.msra.mxu0 0
        %944 = vmatprep.subr.bf16.mxu0 0
        %945 = vmatpush1.bf16.msra.mxu0 0
        %946 = vmatprep.subr.bf16.mxu0 0
        %947 = vmatpush1.bf16.msra.mxu0 0
        %948 = vmatprep.subr.bf16.mxu0 0
        %949 = vmatpush1.bf16.msra.mxu0 0
        %950 = vmatprep.subr.bf16.mxu0 0
        %951 = vmatpush1.bf16.msra.mxu0 0
        %952 = vmatprep.subr.bf16.mxu0 0
        %953 = vmatpush1.bf16.msra.mxu0 0
        %954 = vmatprep.subr.bf16.mxu0 0
        %955 = vmatpush1.bf16.msra.mxu0 0
        %956 = vmatprep.mubr.bf16.mxu0 0
        %957 = vmatmul.mubr.bf16.gmra.mrb[0].mxu0 %v919
        %v958 = vpop.f32.mrb[0].mxu0
        %v959 = vadd.f32 0.0, %v958
        %v960 = vpop.f32.mrb[0].mxu0
        %v961 = vpop.f32.mrb[0].mxu0
        %v962 = vpop.f32.mrb[0].mxu0
        %963 = vdwg.mxu0
        %965 = vrot.lane.b32.xlu0 %v959, 48
        %v966 = vpop.permute.xlu0 %965
        %vm968 = vcmask 523648
        %969 = vst.msk [vmem:[#allocation2] sm:$0xff] %vm968, %v966
        %v970 = vld [vmem:[#allocation2] sm:$0xff]
        %v971 = vpack.c.bf16 %v970, %v970
        %v972 = vld [vmem:[%s3] sm:$0xf]
        %v973 = vld [vmem:[%s3 + $0x4] sm:$0xf]
        %v974 = vld [vmem:[%s3 + $0x8] sm:$0xf]
        %v975 = vld [vmem:[%s3 + $0xc] sm:$0xf]
        %v976 = vld [vmem:[%s3 + $0x10] sm:$0xf]
        %v977 = vld [vmem:[%s3 + $0x14] sm:$0xf]
        %v978 = vld [vmem:[%s3 + $0x18] sm:$0xf]
        %v979 = vld [vmem:[%s3 + $0x1c] sm:$0xf]
        %v980 = vlaneseq
        %v981 = vshrl.u32 %v980, 7
        %v982 = vsub.s32 1, %v981
        %v983 = vrot.slane %v399, %v982
        %v992 = vunpack.c.l.b16 %v972
        %v993 = vunpack.c.l.b16 %v973
        %v994 = vunpack.c.l.b16 %v974
        %v995 = vunpack.c.l.b16 %v975
        %v996 = vunpack.c.l.b16 %v976
        %v997 = vunpack.c.l.b16 %v977
        %v998 = vunpack.c.l.b16 %v978
        %v999 = vunpack.c.l.b16 %v979
        %v1000 = vpack.c.b16 %v993, %v992
        %v1001 = vpack.c.b16 %v995, %v994
        %v1002 = vpack.c.b16 %v997, %v996
        %v1003 = vpack.c.b16 %v999, %v998
        %v1009 = vsel %vm374, %v971, 0
        %1011 = vmatprep.subr.bf16.mxu0 0
        %1012 = vmatpush1.bf16.msra.mxu0 %v1000
        %1013 = vmatprep.subr.bf16.mxu0 0
        %1014 = vmatpush1.bf16.msra.mxu0 %v1001
        %1015 = vmatprep.subr.bf16.mxu0 0
        %1016 = vmatpush1.bf16.msra.mxu0 %v1002
        %1017 = vmatprep.subr.bf16.mxu0 0
        %1018 = vmatpush1.bf16.msra.mxu0 %v1003
        %1019 = vmatprep.subr.bf16.mxu0 0
        %1020 = vmatpush1.bf16.msra.mxu0 0
        %1021 = vmatprep.subr.bf16.mxu0 0
        %1022 = vmatpush1.bf16.msra.mxu0 0
        %1023 = vmatprep.subr.bf16.mxu0 0
        %1024 = vmatpush1.bf16.msra.mxu0 0
        %1025 = vmatprep.subr.bf16.mxu0 0
        %1026 = vmatpush1.bf16.msra.mxu0 0
        %1027 = vmatprep.subr.bf16.mxu0 0
        %1028 = vmatpush1.bf16.msra.mxu0 0
        %1029 = vmatprep.subr.bf16.mxu0 0
        %1030 = vmatpush1.bf16.msra.mxu0 0
        %1031 = vmatprep.subr.bf16.mxu0 0
        %1032 = vmatpush1.bf16.msra.mxu0 0
        %1033 = vmatprep.subr.bf16.mxu0 0
        %1034 = vmatpush1.bf16.msra.mxu0 0
        %1035 = vmatprep.subr.bf16.mxu0 0
        %1036 = vmatpush1.bf16.msra.mxu0 0
        %1037 = vmatprep.subr.bf16.mxu0 0
        %1038 = vmatpush1.bf16.msra.mxu0 0
        %1039 = vmatprep.subr.bf16.mxu0 0
        %1040 = vmatpush1.bf16.msra.mxu0 0
        %1041 = vmatprep.subr.bf16.mxu0 0
        %1042 = vmatpush1.bf16.msra.mxu0 0
        %1043 = vmatprep.mubr.bf16.mxu0 0
        %1044 = vmatmul.mubr.bf16.gmra.mrb[0].mxu0 %v1009
        %v1045 = vpop.f32.mrb[0].mxu0
        %v1046 = vadd.f32 %v983, %v1045
        %v1047 = vpop.f32.mrb[0].mxu0
        %v1048 = vpop.f32.mrb[0].mxu0
        %v1049 = vpop.f32.mrb[0].mxu0
        %1050 = vdwg.mxu0
        %v1051 = vadd.f32 %v1046, %v398
        %v1052 = vsel %vm374, %v1051, 0.0
        %1053 = vadd.xlane.f32.xlu0 %v1052
        %v1054 = vpop.xlane.xlu0 %1053
        %v1055 = vmul.f32 %v1054, %v378
        %v1056 = vsub.f32 %v1051, %v1055
        %v1057 = vmul.f32 %v1056, %v1056
        %v1058 = vsel %vm374, %v1057, 0.0
        %1059 = vadd.xlane.f32.xlu0 %v1058
        %v1060 = vpop.xlane.xlu0 %1059
        %v1061 = vmul.f32 %v1060, %v378
        %v1062 = vadd.f32 %v1061, 1e-12
        %v1063 = vrsqrt.pop %v1062
        %v1064 = vmul.f32 %v1056, %v1063
        %v1065 = vlaneseq
        %v1066 = vshrl.u32 %v1065, 7
        %v1067 = vsub.s32 2, %v1066
        %v1068 = vrot.slane %v399, %v1067
        %v1069 = vmul.f32 %v1064, %v1068
        %v1070 = vlaneseq
        %v1071 = vshrl.u32 %v1070, 7
        %v1072 = vsub.s32 3, %v1071
        %v1073 = vrot.slane %v399, %v1072
        %v1074 = vadd.f32 %v1069, %v1073
        %v1075 = vpack.c.bf16 %v1074, %v1074
        %v1076 = vld [vmem:[%s4] sm:$0xf]
        %v1077 = vld [vmem:[%s4 + $0x4] sm:$0xf]
        %v1078 = vld [vmem:[%s4 + $0x8] sm:$0xf]
        %v1079 = vld [vmem:[%s4 + $0xc] sm:$0xf]
        %v1080 = vld [vmem:[%s4 + $0x10] sm:$0xf]
        %v1081 = vld [vmem:[%s4 + $0x14] sm:$0xf]
        %v1082 = vld [vmem:[%s4 + $0x18] sm:$0xf]
        %v1083 = vld [vmem:[%s4 + $0x1c] sm:$0xf]
        %v1084 = vlaneseq
        %v1085 = vshrl.u32 %v1084, 7
        %v1086 = vsub.s32 4, %v1085
        %v1087 = vrot.slane %v399, %v1086
        %v1096 = vunpack.c.l.b16 %v1076
        %v1097 = vunpack.c.l.b16 %v1077
        %v1098 = vunpack.c.l.b16 %v1078
        %v1099 = vunpack.c.l.b16 %v1079
        %v1100 = vunpack.c.l.b16 %v1080
        %v1101 = vunpack.c.l.b16 %v1081
        %v1102 = vunpack.c.l.b16 %v1082
        %v1103 = vunpack.c.l.b16 %v1083
        %v1104 = vpack.c.b16 %v1097, %v1096
        %v1105 = vpack.c.b16 %v1099, %v1098
        %v1106 = vpack.c.b16 %v1101, %v1100
        %v1107 = vpack.c.b16 %v1103, %v1102
        %v1113 = vsel %vm374, %v1075, 0
        %1115 = vmatprep.subr.bf16.mxu0 0
        %1116 = vmatpush1.bf16.msra.mxu0 %v1104
        %1117 = vmatprep.subr.bf16.mxu0 0
        %1118 = vmatpush1.bf16.msra.mxu0 %v1105
        %1119 = vmatprep.subr.bf16.mxu0 0
        %1120 = vmatpush1.bf16.msra.mxu0 %v1106
        %1121 = vmatprep.subr.bf16.mxu0 0
        %1122 = vmatpush1.bf16.msra.mxu0 %v1107
        %1123 = vmatprep.subr.bf16.mxu0 0
        %1124 = vmatpush1.bf16.msra.mxu0 0
        %1125 = vmatprep.subr.bf16.mxu0 0
        %1126 = vmatpush1.bf16.msra.mxu0 0
        %1127 = vmatprep.subr.bf16.mxu0 0
        %1128 = vmatpush1.bf16.msra.mxu0 0
        %1129 = vmatprep.subr.bf16.mxu0 0
        %1130 = vmatpush1.bf16.msra.mxu0 0
        %1131 = vmatprep.subr.bf16.mxu0 0
        %1132 = vmatpush1.bf16.msra.mxu0 0
        %1133 = vmatprep.subr.bf16.mxu0 0
        %1134 = vmatpush1.bf16.msra.mxu0 0
        %1135 = vmatprep.subr.bf16.mxu0 0
        %1136 = vmatpush1.bf16.msra.mxu0 0
        %1137 = vmatprep.subr.bf16.mxu0 0
        %1138 = vmatpush1.bf16.msra.mxu0 0
        %1139 = vmatprep.subr.bf16.mxu0 0
        %1140 = vmatpush1.bf16.msra.mxu0 0
        %1141 = vmatprep.subr.bf16.mxu0 0
        %1142 = vmatpush1.bf16.msra.mxu0 0
        %1143 = vmatprep.subr.bf16.mxu0 0
        %1144 = vmatpush1.bf16.msra.mxu0 0
        %1145 = vmatprep.subr.bf16.mxu0 0
        %1146 = vmatpush1.bf16.msra.mxu0 0
        %1147 = vmatprep.mubr.bf16.mxu0 0
        %1148 = vmatmul.mubr.bf16.gmra.mrb[0].mxu0 %v1113
        %v1149 = vpop.f32.mrb[0].mxu0
        %v1150 = vadd.f32 %v1087, %v1149
        %v1151 = vpop.f32.mrb[0].mxu0
        %v1152 = vpop.f32.mrb[0].mxu0
        %v1153 = vpop.f32.mrb[0].mxu0
        %1154 = vdwg.mxu0
        %v1155 = vmul.f32 %v1150, 0.5
        %v1156 = vmul.f32 %v1150, 0.70710677
        %vm1157 = vcmp.ge.f32.partialorder %v1156, 0.0
        %v1158 = vsel %vm1157, 1.0, -1.0
        %v1159 = vand.u32 2147483647, %v1156
        %v1160 = vmul.f32 %v1159, 0.3275911
        %v1161 = vadd.f32 %v1160, 1.0
        %v1162 = vrcp.pop %v1161
        %v1163 = vmul.f32 1.0, %v1162
        %v1164 = vmul.f32 %v1163, 1.0614054
        %v1165 = vadd.f32 %v1164, -1.4531521
        %v1166 = vmul.f32 %v1165, %v1163
        %v1167 = vadd.f32 %v1166, 1.4214138
        %v1168 = vmul.f32 %v1167, %v1163
        %v1169 = vadd.f32 %v1168, -0.28449672
        %v1170 = vmul.f32 %v1169, %v1163
        %v1171 = vadd.f32 %v1170, 0.2548296
        %v1172 = vmul.f32 %v1171, %v1163
        %v1173 = vsub.f32 0.0, %v1159
        %v1174 = vmul.f32 %v1173, %v1159
        %v1175 = vmul.f32 %v1174, 1.442695
        %v1176 = vpow.pop %v1175
        %v1177 = vmul.f32 %v1172, %v1176
        %v1178 = vsub.f32 1.0, %v1177
        %v1179 = vmul.f32 %v1158, %v1178
        %v1180 = vadd.f32 %v1179, 1.0
        %v1181 = vmul.f32 %v1155, %v1180
        %v1182 = vpack.c.bf16 %v1181, %v1181
        %v1183 = vld [vmem:[%s5] sm:$0xf]
        %v1184 = vld [vmem:[%s5 + $0x4] sm:$0xf]
        %v1185 = vld [vmem:[%s5 + $0x8] sm:$0xf]
        %v1186 = vld [vmem:[%s5 + $0xc] sm:$0xf]
        %v1187 = vld [vmem:[%s5 + $0x10] sm:$0xf]
        %v1188 = vld [vmem:[%s5 + $0x14] sm:$0xf]
        %v1189 = vld [vmem:[%s5 + $0x18] sm:$0xf]
        %v1190 = vld [vmem:[%s5 + $0x1c] sm:$0xf]
        %v1191 = vld [vmem:[%s5 + $0x20] sm:$0xf]
        %v1192 = vld [vmem:[%s5 + $0x24] sm:$0xf]
        %v1193 = vld [vmem:[%s5 + $0x28] sm:$0xf]
        %v1194 = vld [vmem:[%s5 + $0x2c] sm:$0xf]
        %v1195 = vld [vmem:[%s5 + $0x30] sm:$0xf]
        %v1196 = vld [vmem:[%s5 + $0x34] sm:$0xf]
        %v1197 = vld [vmem:[%s5 + $0x38] sm:$0xf]
        %v1198 = vld [vmem:[%s5 + $0x3c] sm:$0xf]
        %v1199 = vlaneseq
        %v1200 = vshrl.u32 %v1199, 7
        %v1201 = vsub.s32 5, %v1200
        %v1202 = vrot.slane %v399, %v1201
        %v1219 = vunpack.c.l.b16 %v1183
        %v1220 = vunpack.c.l.b16 %v1184
        %v1221 = vunpack.c.l.b16 %v1185
        %v1222 = vunpack.c.l.b16 %v1186
        %v1223 = vunpack.c.l.b16 %v1187
        %v1224 = vunpack.c.l.b16 %v1188
        %v1225 = vunpack.c.l.b16 %v1189
        %v1226 = vunpack.c.l.b16 %v1190
        %v1227 = vunpack.c.l.b16 %v1191
        %v1228 = vunpack.c.l.b16 %v1192
        %v1229 = vunpack.c.l.b16 %v1193
        %v1230 = vunpack.c.l.b16 %v1194
        %v1231 = vunpack.c.l.b16 %v1195
        %v1232 = vunpack.c.l.b16 %v1196
        %v1233 = vunpack.c.l.b16 %v1197
        %v1234 = vunpack.c.l.b16 %v1198
        %v1235 = vpack.c.b16 %v1220, %v1219
        %v1236 = vpack.c.b16 %v1222, %v1221
        %v1237 = vpack.c.b16 %v1224, %v1223
        %v1238 = vpack.c.b16 %v1226, %v1225
        %v1239 = vpack.c.b16 %v1228, %v1227
        %v1240 = vpack.c.b16 %v1230, %v1229
        %v1241 = vpack.c.b16 %v1232, %v1231
        %v1242 = vpack.c.b16 %v1234, %v1233
        %1251 = vmatprep.subr.bf16.mxu0 0
        %1252 = vmatpush1.bf16.msra.mxu0 %v1235
        %1253 = vmatprep.subr.bf16.mxu0 0
        %1254 = vmatpush1.bf16.msra.mxu0 %v1236
        %1255 = vmatprep.subr.bf16.mxu0 0
        %1256 = vmatpush1.bf16.msra.mxu0 %v1237
        %1257 = vmatprep.subr.bf16.mxu0 0
        %1258 = vmatpush1.bf16.msra.mxu0 %v1238
        %1259 = vmatprep.subr.bf16.mxu0 0
        %1260 = vmatpush1.bf16.msra.mxu0 %v1239
        %1261 = vmatprep.subr.bf16.mxu0 0
        %1262 = vmatpush1.bf16.msra.mxu0 %v1240
        %1263 = vmatprep.subr.bf16.mxu0 0
        %1264 = vmatpush1.bf16.msra.mxu0 %v1241
        %1265 = vmatprep.subr.bf16.mxu0 0
        %1266 = vmatpush1.bf16.msra.mxu0 %v1242
        %1267 = vmatprep.subr.bf16.mxu0 0
        %1268 = vmatpush1.bf16.msra.mxu0 0
        %1269 = vmatprep.subr.bf16.mxu0 0
        %1270 = vmatpush1.bf16.msra.mxu0 0
        %1271 = vmatprep.subr.bf16.mxu0 0
        %1272 = vmatpush1.bf16.msra.mxu0 0
        %1273 = vmatprep.subr.bf16.mxu0 0
        %1274 = vmatpush1.bf16.msra.mxu0 0
        %1275 = vmatprep.subr.bf16.mxu0 0
        %1276 = vmatpush1.bf16.msra.mxu0 0
        %1277 = vmatprep.subr.bf16.mxu0 0
        %1278 = vmatpush1.bf16.msra.mxu0 0
        %1279 = vmatprep.subr.bf16.mxu0 0
        %1280 = vmatpush1.bf16.msra.mxu0 0
        %1281 = vmatprep.subr.bf16.mxu0 0
        %1282 = vmatpush1.bf16.msra.mxu0 0
        %1283 = vmatprep.mubr.bf16.mxu0 0
        %1284 = vmatmul.mubr.bf16.gmra.mrb[0].mxu0 %v1182
        %v1285 = vpop.f32.mrb[0].mxu0
        %v1286 = vadd.f32 %v1202, %v1285
        %v1287 = vpop.f32.mrb[0].mxu0
        %v1288 = vpop.f32.mrb[0].mxu0
        %v1289 = vpop.f32.mrb[0].mxu0
        %1290 = vdwg.mxu0
        %v1291 = vadd.f32 %v1286, %v1074
        %v1292 = vsel %vm374, %v1291, 0.0
        %1293 = vadd.xlane.f32.xlu0 %v1292
        %v1294 = vpop.xlane.xlu0 %1293
        %v1295 = vmul.f32 %v1294, %v378
        %v1296 = vsub.f32 %v1291, %v1295
        %v1297 = vmul.f32 %v1296, %v1296
        %v1298 = vsel %vm374, %v1297, 0.0
        %1299 = vadd.xlane.f32.xlu0 %v1298
        %v1300 = vpop.xlane.xlu0 %1299
        %v1301 = vmul.f32 %v1300, %v378
        %v1302 = vadd.f32 %v1301, 1e-12
        %v1303 = vrsqrt.pop %v1302
        %v1304 = vmul.f32 %v1296, %v1303
        %v1305 = vlaneseq
        %v1306 = vshrl.u32 %v1305, 7
        %v1307 = vsub.s32 6, %v1306
        %v1308 = vrot.slane %v399, %v1307
        %v1309 = vmul.f32 %v1304, %v1308
        %v1310 = vlaneseq
        %v1311 = vshrl.u32 %v1310, 7
        %v1312 = vsub.s32 7, %v1311
        %v1313 = vrot.slane %v399, %v1312
        %v1314 = vadd.f32 %v1309, %v1313
        %s1315 = scalar_lea.vmem %s6, 16
        %v1316 = vld [vmem:[%s1315] sm:$0xff]
        %v1317 = vld [vmem:[%s1315 + $0x8] sm:$0xff]
        %v1318 = vpack.c.bf16 %v1314, %v1314
        %s1319 = scalar_lea.vmem %s2, 64
        %v1320 = vld [vmem:[%s1319] sm:$0xff]
        %v1321 = vld [vmem:[%s1319 + $0x8] sm:$0xff]
        %v1322 = vld [vmem:[%s1319 + $0x10] sm:$0xff]
        %v1323 = vld [vmem:[%s1319 + $0x18] sm:$0xff]
        %v1324 = vld [vmem:[%s1319 + $0x20] sm:$0xff]
        %v1325 = vld [vmem:[%s1319 + $0x28] sm:$0xff]
        %v1326 = vld [vmem:[%s1319 + $0x30] sm:$0xff]
        %v1327 = vld [vmem:[%s1319 + $0x38] sm:$0xff]
        %v1328 = vlaneseq
        %v1329 = vshrl.u32 %v1328, 7
        %v1330 = vsub.s32 0, %v1329
        %v1331 = vrot.slane %v1316, %v1330
        %v1332 = vlaneseq
        %v1333 = vshrl.u32 %v1332, 7
        %v1334 = vsub.s32 0, %v1333
        %v1335 = vrot.slane %v1317, %v1334
        %v1344 = vunpack.c.l.b16 %v1320
        %v1345 = vunpack.c.h.b16 %v1320
        %v1346 = vunpack.c.l.b16 %v1321
        %v1347 = vunpack.c.h.b16 %v1321
        %v1348 = vunpack.c.l.b16 %v1322
        %v1349 = vunpack.c.h.b16 %v1322
        %v1350 = vunpack.c.l.b16 %v1323
        %v1351 = vunpack.c.h.b16 %v1323
        %v1352 = vunpack.c.l.b16 %v1324
        %v1353 = vunpack.c.h.b16 %v1324
        %v1354 = vunpack.c.l.b16 %v1325
        %v1355 = vunpack.c.h.b16 %v1325
        %v1356 = vunpack.c.l.b16 %v1326
        %v1357 = vunpack.c.h.b16 %v1326
        %v1358 = vunpack.c.l.b16 %v1327
        %v1359 = vunpack.c.h.b16 %v1327
        %v1360 = vpack.c.b16 %v1346, %v1344
        %v1361 = vpack.c.b16 %v1347, %v1345
        %v1362 = vpack.c.b16 %v1350, %v1348
        %v1363 = vpack.c.b16 %v1351, %v1349
        %v1364 = vpack.c.b16 %v1354, %v1352
        %v1365 = vpack.c.b16 %v1355, %v1353
        %v1366 = vpack.c.b16 %v1358, %v1356
        %v1367 = vpack.c.b16 %v1359, %v1357
        %v1377 = vsel %vm374, %v1318, 0
        %1379 = vmatprep.subr.bf16.mxu0 %v1361
        %1380 = vmatpush1.bf16.msra.mxu0 %v1360
        %1381 = vmatprep.subr.bf16.mxu0 %v1363
        %1382 = vmatpush1.bf16.msra.mxu0 %v1362
        %1383 = vmatprep.subr.bf16.mxu0 %v1365
        %1384 = vmatpush1.bf16.msra.mxu0 %v1364
        %1385 = vmatprep.subr.bf16.mxu0 %v1367
        %1386 = vmatpush1.bf16.msra.mxu0 %v1366
        %1387 = vmatprep.subr.bf16.mxu0 0
        %1388 = vmatpush1.bf16.msra.mxu0 0
        %1389 = vmatprep.subr.bf16.mxu0 0
        %1390 = vmatpush1.bf16.msra.mxu0 0
        %1391 = vmatprep.subr.bf16.mxu0 0
        %1392 = vmatpush1.bf16.msra.mxu0 0
        %1393 = vmatprep.subr.bf16.mxu0 0
        %1394 = vmatpush1.bf16.msra.mxu0 0
        %1395 = vmatprep.subr.bf16.mxu0 0
        %1396 = vmatpush1.bf16.msra.mxu0 0
        %1397 = vmatprep.subr.bf16.mxu0 0
        %1398 = vmatpush1.bf16.msra.mxu0 0
        %1399 = vmatprep.subr.bf16.mxu0 0
        %1400 = vmatpush1.bf16.msra.mxu0 0
        %1401 = vmatprep.subr.bf16.mxu0 0
        %1402 = vmatpush1.bf16.msra.mxu0 0
        %1403 = vmatprep.subr.bf16.mxu0 0
        %1404 = vmatpush1.bf16.msra.mxu0 0
        %1405 = vmatprep.subr.bf16.mxu0 0
        %1406 = vmatpush1.bf16.msra.mxu0 0
        %1407 = vmatprep.subr.bf16.mxu0 0
        %1408 = vmatpush1.bf16.msra.mxu0 0
        %1409 = vmatprep.subr.bf16.mxu0 0
        %1410 = vmatpush1.bf16.msra.mxu0 0
        %1411 = vmatprep.mubr.bf16.mxu0 0
        %1412 = vmatmul.mubr.bf16.gmra.mrb[0].mxu0 %v1377
        %v1413 = vpop.f32.mrb[0].mxu0
        %v1414 = vadd.f32 %v1331, %v1413
        %v1415 = vpop.f32.mrb[0].mxu0
        %v1416 = vadd.f32 %v1335, %v1415
        %v1417 = vpop.f32.mrb[0].mxu0
        %v1418 = vpop.f32.mrb[0].mxu0
        %1419 = vdwg.mxu0
        %v1420 = vpack.c.bf16 %v1414, %v1414
        %v1421 = vpack.c.bf16 %v1416, %v1416
        %1423 = vrot.lane.b32.xlu0 %v1420, 64
        %v1424 = vpop.permute.xlu0 %1423
        %v1426 = vsel %vm513, %v1420, 0
        %v1429 = vsel %vm513, %v1424, 0
        %1431 = vmatprep.subr.bf16.mxu0 0
        %1432 = vmatpush1.bf16.xpose.msra.mxu0 %v1429
        %1433 = vmatprep.subr.bf16.mxu0 0
        %1434 = vmatpush1.bf16.xpose.msra.mxu0 0
        %1435 = vmatprep.subr.bf16.mxu0 0
        %1436 = vmatpush1.bf16.xpose.msra.mxu0 0
        %1437 = vmatprep.subr.bf16.mxu0 0
        %1438 = vmatpush1.bf16.xpose.msra.mxu0 0
        %1439 = vmatprep.subr.bf16.mxu0 0
        %1440 = vmatpush1.bf16.xpose.msra.mxu0 0
        %1441 = vmatprep.subr.bf16.mxu0 0
        %1442 = vmatpush1.bf16.xpose.msra.mxu0 0
        %1443 = vmatprep.subr.bf16.mxu0 0
        %1444 = vmatpush1.bf16.xpose.msra.mxu0 0
        %1445 = vmatprep.subr.bf16.mxu0 0
        %1446 = vmatpush1.bf16.xpose.msra.mxu0 0
        %1447 = vmatprep.subr.bf16.mxu0 0
        %1448 = vmatpush1.bf16.xpose.msra.mxu0 0
        %1449 = vmatprep.subr.bf16.mxu0 0
        %1450 = vmatpush1.bf16.xpose.msra.mxu0 0
        %1451 = vmatprep.subr.bf16.mxu0 0
        %1452 = vmatpush1.bf16.xpose.msra.mxu0 0
        %1453 = vmatprep.subr.bf16.mxu0 0
        %1454 = vmatpush1.bf16.xpose.msra.mxu0 0
        %1455 = vmatprep.subr.bf16.mxu0 0
        %1456 = vmatpush1.bf16.xpose.msra.mxu0 0
        %1457 = vmatprep.subr.bf16.mxu0 0
        %1458 = vmatpush1.bf16.xpose.msra.mxu0 0
        %1459 = vmatprep.subr.bf16.mxu0 0
        %1460 = vmatpush1.bf16.xpose.msra.mxu0 0
        %1461 = vmatprep.subr.bf16.mxu0 0
        %1462 = vmatpush1.bf16.xpose.msra.mxu0 0
        %1463 = vmatprep.mubr.bf16.mxu0 0
        %1464 = vmatmul.mubr.bf16.gmra.mrb[0].mxu0 %v1426
        %v1465 = vpop.f32.mrb[0].mxu0
        %v1466 = vadd.f32 %v508, %v1465
        %v1467 = vpop.f32.mrb[0].mxu0
        %v1468 = vpop.f32.mrb[0].mxu0
        %v1469 = vpop.f32.mrb[0].mxu0
        %1470 = vdwg.mxu0
        %v1471 = vsel %vm560, %v1466, -inf
        %1472 = vmax.xlane.f32.xlu0 %v1471
        %v1473 = vpop.xlane.xlu0 %1472
        %v1474 = vsub.f32 %v1466, %v1473
        %v1475 = vmul.f32 %v1474, 1.442695
        %v1476 = vpow.pop %v1475
        %v1477 = vsel %vm560, %v1476, 0.0
        %1478 = vadd.xlane.f32.xlu0 %v1477
        %v1479 = vpop.xlane.xlu0 %1478
        %v1480 = vrcp.pop %v1479
        %v1481 = vmul.f32 %v1476, %v1480
        %v1482 = vpack.c.bf16 %v1481, %v1481
        %v1484 = vsel %vm560, %v1482, 0
        %v1487 = vsel %vm576, %v1421, 0
        %1489 = vmatprep.subr.bf16.mxu0 0
        %1490 = vmatpush1.bf16.msra.mxu0 %v1487
        %1491 = vmatprep.subr.bf16.mxu0 0
        %1492 = vmatpush1.bf16.msra.mxu0 0
        %1493 = vmatprep.subr.bf16.mxu0 0
        %1494 = vmatpush1.bf16.msra.mxu0 0
        %1495 = vmatprep.subr.bf16.mxu0 0
        %1496 = vmatpush1.bf16.msra.mxu0 0
        %1497 = vmatprep.subr.bf16.mxu0 0
        %1498 = vmatpush1.bf16.msra.mxu0 0
        %1499 = vmatprep.subr.bf16.mxu0 0
        %1500 = vmatpush1.bf16.msra.mxu0 0
        %1501 = vmatprep.subr.bf16.mxu0 0
        %1502 = vmatpush1.bf16.msra.mxu0 0
        %1503 = vmatprep.subr.bf16.mxu0 0
        %1504 = vmatpush1.bf16.msra.mxu0 0
        %1505 = vmatprep.subr.bf16.mxu0 0
        %1506 = vmatpush1.bf16.msra.mxu0 0
        %1507 = vmatprep.subr.bf16.mxu0 0
        %1508 = vmatpush1.bf16.msra.mxu0 0
        %1509 = vmatprep.subr.bf16.mxu0 0
        %1510 = vmatpush1.bf16.msra.mxu0 0
        %1511 = vmatprep.subr.bf16.mxu0 0
        %1512 = vmatpush1.bf16.msra.mxu0 0
        %1513 = vmatprep.subr.bf16.mxu0 0
        %1514 = vmatpush1.bf16.msra.mxu0 0
        %1515 = vmatprep.subr.bf16.mxu0 0
        %1516 = vmatpush1.bf16.msra.mxu0 0
        %1517 = vmatprep.subr.bf16.mxu0 0
        %1518 = vmatpush1.bf16.msra.mxu0 0
        %1519 = vmatprep.subr.bf16.mxu0 0
        %1520 = vmatpush1.bf16.msra.mxu0 0
        %1521 = vmatprep.mubr.bf16.mxu0 0
        %1522 = vmatmul.mubr.bf16.gmra.mrb[0].mxu0 %v1484
        %v1523 = vpop.f32.mrb[0].mxu0
        %v1524 = vadd.f32 0.0, %v1523
        %v1525 = vpop.f32.mrb[0].mxu0
        %v1526 = vpop.f32.mrb[0].mxu0
        %v1527 = vpop.f32.mrb[0].mxu0
        %1528 = vdwg.mxu0
        %1529 = vst.msk [vmem:[#allocation2] sm:$0xff] %vm513, %v1524
        %1530 = vrot.lane.b32.xlu0 %v1420, 112
        %v1531 = vpop.permute.xlu0 %1530
        %1532 = vrot.lane.b32.xlu0 %v1420, 48
        %v1533 = vpop.permute.xlu0 %1532
        %v1535 = vsel %vm513, %v1531, 0
        %v1538 = vsel %vm513, %v1533, 0
        %1540 = vmatprep.subr.bf16.mxu0 0
        %1541 = vmatpush1.bf16.xpose.msra.mxu0 %v1538
        %1542 = vmatprep.subr.bf16.mxu0 0
        %1543 = vmatpush1.bf16.xpose.msra.mxu0 0
        %1544 = vmatprep.subr.bf16.mxu0 0
        %1545 = vmatpush1.bf16.xpose.msra.mxu0 0
        %1546 = vmatprep.subr.bf16.mxu0 0
        %1547 = vmatpush1.bf16.xpose.msra.mxu0 0
        %1548 = vmatprep.subr.bf16.mxu0 0
        %1549 = vmatpush1.bf16.xpose.msra.mxu0 0
        %1550 = vmatprep.subr.bf16.mxu0 0
        %1551 = vmatpush1.bf16.xpose.msra.mxu0 0
        %1552 = vmatprep.subr.bf16.mxu0 0
        %1553 = vmatpush1.bf16.xpose.msra.mxu0 0
        %1554 = vmatprep.subr.bf16.mxu0 0
        %1555 = vmatpush1.bf16.xpose.msra.mxu0 0
        %1556 = vmatprep.subr.bf16.mxu0 0
        %1557 = vmatpush1.bf16.xpose.msra.mxu0 0
        %1558 = vmatprep.subr.bf16.mxu0 0
        %1559 = vmatpush1.bf16.xpose.msra.mxu0 0
        %1560 = vmatprep.subr.bf16.mxu0 0
        %1561 = vmatpush1.bf16.xpose.msra.mxu0 0
        %1562 = vmatprep.subr.bf16.mxu0 0
        %1563 = vmatpush1.bf16.xpose.msra.mxu0 0
        %1564 = vmatprep.subr.bf16.mxu0 0
        %1565 = vmatpush1.bf16.xpose.msra.mxu0 0
        %1566 = vmatprep.subr.bf16.mxu0 0
        %1567 = vmatpush1.bf16.xpose.msra.mxu0 0
        %1568 = vmatprep.subr.bf16.mxu0 0
        %1569 = vmatpush1.bf16.xpose.msra.mxu0 0
        %1570 = vmatprep.subr.bf16.mxu0 0
        %1571 = vmatpush1.bf16.xpose.msra.mxu0 0
        %1572 = vmatprep.mubr.bf16.mxu0 0
        %1573 = vmatmul.mubr.bf16.gmra.mrb[0].mxu0 %v1535
        %v1574 = vpop.f32.mrb[0].mxu0
        %v1575 = vadd.f32 %v508, %v1574
        %v1576 = vpop.f32.mrb[0].mxu0
        %v1577 = vpop.f32.mrb[0].mxu0
        %v1578 = vpop.f32.mrb[0].mxu0
        %1579 = vdwg.mxu0
        %v1580 = vsel %vm560, %v1575, -inf
        %1581 = vmax.xlane.f32.xlu0 %v1580
        %v1582 = vpop.xlane.xlu0 %1581
        %v1583 = vsub.f32 %v1575, %v1582
        %v1584 = vmul.f32 %v1583, 1.442695
        %v1585 = vpow.pop %v1584
        %v1586 = vsel %vm560, %v1585, 0.0
        %1587 = vadd.xlane.f32.xlu0 %v1586
        %v1588 = vpop.xlane.xlu0 %1587
        %v1589 = vrcp.pop %v1588
        %v1590 = vmul.f32 %v1585, %v1589
        %v1591 = vpack.c.bf16 %v1590, %v1590
        %1593 = vrot.lane.b32.xlu0 %v1421, 112
        %v1594 = vpop.permute.xlu0 %1593
        %v1596 = vsel %vm560, %v1591, 0
        %v1599 = vsel %vm576, %v1594, 0
        %1601 = vmatprep.subr.bf16.mxu0 0
        %1602 = vmatpush1.bf16.msra.mxu0 %v1599
        %1603 = vmatprep.subr.bf16.mxu0 0
        %1604 = vmatpush1.bf16.msra.mxu0 0
        %1605 = vmatprep.subr.bf16.mxu0 0
        %1606 = vmatpush1.bf16.msra.mxu0 0
        %1607 = vmatprep.subr.bf16.mxu0 0
        %1608 = vmatpush1.bf16.msra.mxu0 0
        %1609 = vmatprep.subr.bf16.mxu0 0
        %1610 = vmatpush1.bf16.msra.mxu0 0
        %1611 = vmatprep.subr.bf16.mxu0 0
        %1612 = vmatpush1.bf16.msra.mxu0 0
        %1613 = vmatprep.subr.bf16.mxu0 0
        %1614 = vmatpush1.bf16.msra.mxu0 0
        %1615 = vmatprep.subr.bf16.mxu0 0
        %1616 = vmatpush1.bf16.msra.mxu0 0
        %1617 = vmatprep.subr.bf16.mxu0 0
        %1618 = vmatpush1.bf16.msra.mxu0 0
        %1619 = vmatprep.subr.bf16.mxu0 0
        %1620 = vmatpush1.bf16.msra.mxu0 0
        %1621 = vmatprep.subr.bf16.mxu0 0
        %1622 = vmatpush1.bf16.msra.mxu0 0
        %1623 = vmatprep.subr.bf16.mxu0 0
        %1624 = vmatpush1.bf16.msra.mxu0 0
        %1625 = vmatprep.subr.bf16.mxu0 0
        %1626 = vmatpush1.bf16.msra.mxu0 0
        %1627 = vmatprep.subr.bf16.mxu0 0
        %1628 = vmatpush1.bf16.msra.mxu0 0
        %1629 = vmatprep.subr.bf16.mxu0 0
        %1630 = vmatpush1.bf16.msra.mxu0 0
        %1631 = vmatprep.subr.bf16.mxu0 0
        %1632 = vmatpush1.bf16.msra.mxu0 0
        %1633 = vmatprep.mubr.bf16.mxu0 0
        %1634 = vmatmul.mubr.bf16.gmra.mrb[0].mxu0 %v1596
        %v1635 = vpop.f32.mrb[0].mxu0
        %v1636 = vadd.f32 0.0, %v1635
        %v1637 = vpop.f32.mrb[0].mxu0
        %v1638 = vpop.f32.mrb[0].mxu0
        %v1639 = vpop.f32.mrb[0].mxu0
        %1640 = vdwg.mxu0
        %1642 = vrot.lane.b32.xlu0 %v1636, 16
        %v1643 = vpop.permute.xlu0 %1642
        %1645 = vst.msk [vmem:[#allocation2] sm:$0xff] %vm736, %v1643
        %1646 = vrot.lane.b32.xlu0 %v1420, 96
        %v1647 = vpop.permute.xlu0 %1646
        %1648 = vrot.lane.b32.xlu0 %v1420, 32
        %v1649 = vpop.permute.xlu0 %1648
        %v1651 = vsel %vm513, %v1647, 0
        %v1654 = vsel %vm513, %v1649, 0
        %1656 = vmatprep.subr.bf16.mxu0 0
        %1657 = vmatpush1.bf16.xpose.msra.mxu0 %v1654
        %1658 = vmatprep.subr.bf16.mxu0 0
        %1659 = vmatpush1.bf16.xpose.msra.mxu0 0
        %1660 = vmatprep.subr.bf16.mxu0 0
        %1661 = vmatpush1.bf16.xpose.msra.mxu0 0
        %1662 = vmatprep.subr.bf16.mxu0 0
        %1663 = vmatpush1.bf16.xpose.msra.mxu0 0
        %1664 = vmatprep.subr.bf16.mxu0 0
        %1665 = vmatpush1.bf16.xpose.msra.mxu0 0
        %1666 = vmatprep.subr.bf16.mxu0 0
        %1667 = vmatpush1.bf16.xpose.msra.mxu0 0
        %1668 = vmatprep.subr.bf16.mxu0 0
        %1669 = vmatpush1.bf16.xpose.msra.mxu0 0
        %1670 = vmatprep.subr.bf16.mxu0 0
        %1671 = vmatpush1.bf16.xpose.msra.mxu0 0
        %1672 = vmatprep.subr.bf16.mxu0 0
        %1673 = vmatpush1.bf16.xpose.msra.mxu0 0
        %1674 = vmatprep.subr.bf16.mxu0 0
        %1675 = vmatpush1.bf16.xpose.msra.mxu0 0
        %1676 = vmatprep.subr.bf16.mxu0 0
        %1677 = vmatpush1.bf16.xpose.msra.mxu0 0
        %1678 = vmatprep.subr.bf16.mxu0 0
        %1679 = vmatpush1.bf16.xpose.msra.mxu0 0
        %1680 = vmatprep.subr.bf16.mxu0 0
        %1681 = vmatpush1.bf16.xpose.msra.mxu0 0
        %1682 = vmatprep.subr.bf16.mxu0 0
        %1683 = vmatpush1.bf16.xpose.msra.mxu0 0
        %1684 = vmatprep.subr.bf16.mxu0 0
        %1685 = vmatpush1.bf16.xpose.msra.mxu0 0
        %1686 = vmatprep.subr.bf16.mxu0 0
        %1687 = vmatpush1.bf16.xpose.msra.mxu0 0
        %1688 = vmatprep.mubr.bf16.mxu0 0
        %1689 = vmatmul.mubr.bf16.gmra.mrb[0].mxu0 %v1651
        %v1690 = vpop.f32.mrb[0].mxu0
        %v1691 = vadd.f32 %v508, %v1690
        %v1692 = vpop.f32.mrb[0].mxu0
        %v1693 = vpop.f32.mrb[0].mxu0
        %v1694 = vpop.f32.mrb[0].mxu0
        %1695 = vdwg.mxu0
        %v1696 = vsel %vm560, %v1691, -inf
        %1697 = vmax.xlane.f32.xlu0 %v1696
        %v1698 = vpop.xlane.xlu0 %1697
        %v1699 = vsub.f32 %v1691, %v1698
        %v1700 = vmul.f32 %v1699, 1.442695
        %v1701 = vpow.pop %v1700
        %v1702 = vsel %vm560, %v1701, 0.0
        %1703 = vadd.xlane.f32.xlu0 %v1702
        %v1704 = vpop.xlane.xlu0 %1703
        %v1705 = vrcp.pop %v1704
        %v1706 = vmul.f32 %v1701, %v1705
        %v1707 = vpack.c.bf16 %v1706, %v1706
        %1708 = vrot.lane.b32.xlu0 %v1421, 96
        %v1709 = vpop.permute.xlu0 %1708
        %v1711 = vsel %vm560, %v1707, 0
        %v1714 = vsel %vm576, %v1709, 0
        %1716 = vmatprep.subr.bf16.mxu0 0
        %1717 = vmatpush1.bf16.msra.mxu0 %v1714
        %1718 = vmatprep.subr.bf16.mxu0 0
        %1719 = vmatpush1.bf16.msra.mxu0 0
        %1720 = vmatprep.subr.bf16.mxu0 0
        %1721 = vmatpush1.bf16.msra.mxu0 0
        %1722 = vmatprep.subr.bf16.mxu0 0
        %1723 = vmatpush1.bf16.msra.mxu0 0
        %1724 = vmatprep.subr.bf16.mxu0 0
        %1725 = vmatpush1.bf16.msra.mxu0 0
        %1726 = vmatprep.subr.bf16.mxu0 0
        %1727 = vmatpush1.bf16.msra.mxu0 0
        %1728 = vmatprep.subr.bf16.mxu0 0
        %1729 = vmatpush1.bf16.msra.mxu0 0
        %1730 = vmatprep.subr.bf16.mxu0 0
        %1731 = vmatpush1.bf16.msra.mxu0 0
        %1732 = vmatprep.subr.bf16.mxu0 0
        %1733 = vmatpush1.bf16.msra.mxu0 0
        %1734 = vmatprep.subr.bf16.mxu0 0
        %1735 = vmatpush1.bf16.msra.mxu0 0
        %1736 = vmatprep.subr.bf16.mxu0 0
        %1737 = vmatpush1.bf16.msra.mxu0 0
        %1738 = vmatprep.subr.bf16.mxu0 0
        %1739 = vmatpush1.bf16.msra.mxu0 0
        %1740 = vmatprep.subr.bf16.mxu0 0
        %1741 = vmatpush1.bf16.msra.mxu0 0
        %1742 = vmatprep.subr.bf16.mxu0 0
        %1743 = vmatpush1.bf16.msra.mxu0 0
        %1744 = vmatprep.subr.bf16.mxu0 0
        %1745 = vmatpush1.bf16.msra.mxu0 0
        %1746 = vmatprep.subr.bf16.mxu0 0
        %1747 = vmatpush1.bf16.msra.mxu0 0
        %1748 = vmatprep.mubr.bf16.mxu0 0
        %1749 = vmatmul.mubr.bf16.gmra.mrb[0].mxu0 %v1711
        %v1750 = vpop.f32.mrb[0].mxu0
        %v1751 = vadd.f32 0.0, %v1750
        %v1752 = vpop.f32.mrb[0].mxu0
        %v1753 = vpop.f32.mrb[0].mxu0
        %v1754 = vpop.f32.mrb[0].mxu0
        %1755 = vdwg.mxu0
        %1757 = vrot.lane.b32.xlu0 %v1751, 32
        %v1758 = vpop.permute.xlu0 %1757
        %1760 = vst.msk [vmem:[#allocation2] sm:$0xff] %vm852, %v1758
        %1761 = vrot.lane.b32.xlu0 %v1420, 80
        %v1762 = vpop.permute.xlu0 %1761
        %1763 = vrot.lane.b32.xlu0 %v1420, 16
        %v1764 = vpop.permute.xlu0 %1763
        %v1766 = vsel %vm513, %v1762, 0
        %v1769 = vsel %vm513, %v1764, 0
        %1771 = vmatprep.subr.bf16.mxu0 0
        %1772 = vmatpush1.bf16.xpose.msra.mxu0 %v1769
        %1773 = vmatprep.subr.bf16.mxu0 0
        %1774 = vmatpush1.bf16.xpose.msra.mxu0 0
        %1775 = vmatprep.subr.bf16.mxu0 0
        %1776 = vmatpush1.bf16.xpose.msra.mxu0 0
        %1777 = vmatprep.subr.bf16.mxu0 0
        %1778 = vmatpush1.bf16.xpose.msra.mxu0 0
        %1779 = vmatprep.subr.bf16.mxu0 0
        %1780 = vmatpush1.bf16.xpose.msra.mxu0 0
        %1781 = vmatprep.subr.bf16.mxu0 0
        %1782 = vmatpush1.bf16.xpose.msra.mxu0 0
        %1783 = vmatprep.subr.bf16.mxu0 0
        %1784 = vmatpush1.bf16.xpose.msra.mxu0 0
        %1785 = vmatprep.subr.bf16.mxu0 0
        %1786 = vmatpush1.bf16.xpose.msra.mxu0 0
        %1787 = vmatprep.subr.bf16.mxu0 0
        %1788 = vmatpush1.bf16.xpose.msra.mxu0 0
        %1789 = vmatprep.subr.bf16.mxu0 0
        %1790 = vmatpush1.bf16.xpose.msra.mxu0 0
        %1791 = vmatprep.subr.bf16.mxu0 0
        %1792 = vmatpush1.bf16.xpose.msra.mxu0 0
        %1793 = vmatprep.subr.bf16.mxu0 0
        %1794 = vmatpush1.bf16.xpose.msra.mxu0 0
        %1795 = vmatprep.subr.bf16.mxu0 0
        %1796 = vmatpush1.bf16.xpose.msra.mxu0 0
        %1797 = vmatprep.subr.bf16.mxu0 0
        %1798 = vmatpush1.bf16.xpose.msra.mxu0 0
        %1799 = vmatprep.subr.bf16.mxu0 0
        %1800 = vmatpush1.bf16.xpose.msra.mxu0 0
        %1801 = vmatprep.subr.bf16.mxu0 0
        %1802 = vmatpush1.bf16.xpose.msra.mxu0 0
        %1803 = vmatprep.mubr.bf16.mxu0 0
        %1804 = vmatmul.mubr.bf16.gmra.mrb[0].mxu0 %v1766
        %v1805 = vpop.f32.mrb[0].mxu0
        %v1806 = vadd.f32 %v508, %v1805
        %v1807 = vpop.f32.mrb[0].mxu0
        %v1808 = vpop.f32.mrb[0].mxu0
        %v1809 = vpop.f32.mrb[0].mxu0
        %1810 = vdwg.mxu0
        %v1811 = vsel %vm560, %v1806, -inf
        %1812 = vmax.xlane.f32.xlu0 %v1811
        %v1813 = vpop.xlane.xlu0 %1812
        %v1814 = vsub.f32 %v1806, %v1813
        %v1815 = vmul.f32 %v1814, 1.442695
        %v1816 = vpow.pop %v1815
        %v1817 = vsel %vm560, %v1816, 0.0
        %1818 = vadd.xlane.f32.xlu0 %v1817
        %v1819 = vpop.xlane.xlu0 %1818
        %v1820 = vrcp.pop %v1819
        %v1821 = vmul.f32 %v1816, %v1820
        %v1822 = vpack.c.bf16 %v1821, %v1821
        %1823 = vrot.lane.b32.xlu0 %v1421, 80
        %v1824 = vpop.permute.xlu0 %1823
        %v1826 = vsel %vm560, %v1822, 0
        %v1829 = vsel %vm576, %v1824, 0
        %1831 = vmatprep.subr.bf16.mxu0 0
        %1832 = vmatpush1.bf16.msra.mxu0 %v1829
        %1833 = vmatprep.subr.bf16.mxu0 0
        %1834 = vmatpush1.bf16.msra.mxu0 0
        %1835 = vmatprep.subr.bf16.mxu0 0
        %1836 = vmatpush1.bf16.msra.mxu0 0
        %1837 = vmatprep.subr.bf16.mxu0 0
        %1838 = vmatpush1.bf16.msra.mxu0 0
        %1839 = vmatprep.subr.bf16.mxu0 0
        %1840 = vmatpush1.bf16.msra.mxu0 0
        %1841 = vmatprep.subr.bf16.mxu0 0
        %1842 = vmatpush1.bf16.msra.mxu0 0
        %1843 = vmatprep.subr.bf16.mxu0 0
        %1844 = vmatpush1.bf16.msra.mxu0 0
        %1845 = vmatprep.subr.bf16.mxu0 0
        %1846 = vmatpush1.bf16.msra.mxu0 0
        %1847 = vmatprep.subr.bf16.mxu0 0
        %1848 = vmatpush1.bf16.msra.mxu0 0
        %1849 = vmatprep.subr.bf16.mxu0 0
        %1850 = vmatpush1.bf16.msra.mxu0 0
        %1851 = vmatprep.subr.bf16.mxu0 0
        %1852 = vmatpush1.bf16.msra.mxu0 0
        %1853 = vmatprep.subr.bf16.mxu0 0
        %1854 = vmatpush1.bf16.msra.mxu0 0
        %1855 = vmatprep.subr.bf16.mxu0 0
        %1856 = vmatpush1.bf16.msra.mxu0 0
        %1857 = vmatprep.subr.bf16.mxu0 0
        %1858 = vmatpush1.bf16.msra.mxu0 0
        %1859 = vmatprep.subr.bf16.mxu0 0
        %1860 = vmatpush1.bf16.msra.mxu0 0
        %1861 = vmatprep.subr.bf16.mxu0 0
        %1862 = vmatpush1.bf16.msra.mxu0 0
        %1863 = vmatprep.mubr.bf16.mxu0 0
        %1864 = vmatmul.mubr.bf16.gmra.mrb[0].mxu0 %v1826
        %v1865 = vpop.f32.mrb[0].mxu0
        %v1866 = vadd.f32 0.0, %v1865
        %v1867 = vpop.f32.mrb[0].mxu0
        %v1868 = vpop.f32.mrb[0].mxu0
        %v1869 = vpop.f32.mrb[0].mxu0
        %1870 = vdwg.mxu0
        %1872 = vrot.lane.b32.xlu0 %v1866, 48
        %v1873 = vpop.permute.xlu0 %1872
        %1875 = vst.msk [vmem:[#allocation2] sm:$0xff] %vm968, %v1873
        %v1876 = vld [vmem:[#allocation2] sm:$0xff]
        %v1877 = vpack.c.bf16 %v1876, %v1876
        %s1878 = scalar_lea.vmem %s3, 32
        %v1879 = vld [vmem:[%s1878] sm:$0xf]
        %v1880 = vld [vmem:[%s1878 + $0x4] sm:$0xf]
        %v1881 = vld [vmem:[%s1878 + $0x8] sm:$0xf]
        %v1882 = vld [vmem:[%s1878 + $0xc] sm:$0xf]
        %v1883 = vld [vmem:[%s1878 + $0x10] sm:$0xf]
        %v1884 = vld [vmem:[%s1878 + $0x14] sm:$0xf]
        %v1885 = vld [vmem:[%s1878 + $0x18] sm:$0xf]
        %v1886 = vld [vmem:[%s1878 + $0x1c] sm:$0xf]
        %v1887 = vlaneseq
        %v1888 = vshrl.u32 %v1887, 7
        %v1889 = vsub.s32 1, %v1888
        %v1890 = vrot.slane %v1316, %v1889
        %v1899 = vunpack.c.l.b16 %v1879
        %v1900 = vunpack.c.l.b16 %v1880
        %v1901 = vunpack.c.l.b16 %v1881
        %v1902 = vunpack.c.l.b16 %v1882
        %v1903 = vunpack.c.l.b16 %v1883
        %v1904 = vunpack.c.l.b16 %v1884
        %v1905 = vunpack.c.l.b16 %v1885
        %v1906 = vunpack.c.l.b16 %v1886
        %v1907 = vpack.c.b16 %v1900, %v1899
        %v1908 = vpack.c.b16 %v1902, %v1901
        %v1909 = vpack.c.b16 %v1904, %v1903
        %v1910 = vpack.c.b16 %v1906, %v1905
        %v1916 = vsel %vm374, %v1877, 0
        %1918 = vmatprep.subr.bf16.mxu0 0
        %1919 = vmatpush1.bf16.msra.mxu0 %v1907
        %1920 = vmatprep.subr.bf16.mxu0 0
        %1921 = vmatpush1.bf16.msra.mxu0 %v1908
        %1922 = vmatprep.subr.bf16.mxu0 0
        %1923 = vmatpush1.bf16.msra.mxu0 %v1909
        %1924 = vmatprep.subr.bf16.mxu0 0
        %1925 = vmatpush1.bf16.msra.mxu0 %v1910
        %1926 = vmatprep.subr.bf16.mxu0 0
        %1927 = vmatpush1.bf16.msra.mxu0 0
        %1928 = vmatprep.subr.bf16.mxu0 0
        %1929 = vmatpush1.bf16.msra.mxu0 0
        %1930 = vmatprep.subr.bf16.mxu0 0
        %1931 = vmatpush1.bf16.msra.mxu0 0
        %1932 = vmatprep.subr.bf16.mxu0 0
        %1933 = vmatpush1.bf16.msra.mxu0 0
        %1934 = vmatprep.subr.bf16.mxu0 0
        %1935 = vmatpush1.bf16.msra.mxu0 0
        %1936 = vmatprep.subr.bf16.mxu0 0
        %1937 = vmatpush1.bf16.msra.mxu0 0
        %1938 = vmatprep.subr.bf16.mxu0 0
        %1939 = vmatpush1.bf16.msra.mxu0 0
        %1940 = vmatprep.subr.bf16.mxu0 0
        %1941 = vmatpush1.bf16.msra.mxu0 0
        %1942 = vmatprep.subr.bf16.mxu0 0
        %1943 = vmatpush1.bf16.msra.mxu0 0
        %1944 = vmatprep.subr.bf16.mxu0 0
        %1945 = vmatpush1.bf16.msra.mxu0 0
        %1946 = vmatprep.subr.bf16.mxu0 0
        %1947 = vmatpush1.bf16.msra.mxu0 0
        %1948 = vmatprep.subr.bf16.mxu0 0
        %1949 = vmatpush1.bf16.msra.mxu0 0
        %1950 = vmatprep.mubr.bf16.mxu0 0
        %1951 = vmatmul.mubr.bf16.gmra.mrb[0].mxu0 %v1916
        %v1952 = vpop.f32.mrb[0].mxu0
        %v1953 = vadd.f32 %v1890, %v1952
        %v1954 = vpop.f32.mrb[0].mxu0
        %v1955 = vpop.f32.mrb[0].mxu0
        %v1956 = vpop.f32.mrb[0].mxu0
        %1957 = vdwg.mxu0
        %v1958 = vadd.f32 %v1953, %v1314
        %v1959 = vsel %vm374, %v1958, 0.0
        %1960 = vadd.xlane.f32.xlu0 %v1959
        %v1961 = vpop.xlane.xlu0 %1960
        %v1962 = vmul.f32 %v1961, %v378
        %v1963 = vsub.f32 %v1958, %v1962
        %v1964 = vmul.f32 %v1963, %v1963
        %v1965 = vsel %vm374, %v1964, 0.0
        %1966 = vadd.xlane.f32.xlu0 %v1965
        %v1967 = vpop.xlane.xlu0 %1966
        %v1968 = vmul.f32 %v1967, %v378
        %v1969 = vadd.f32 %v1968, 1e-12
        %v1970 = vrsqrt.pop %v1969
        %v1971 = vmul.f32 %v1963, %v1970
        %v1972 = vlaneseq
        %v1973 = vshrl.u32 %v1972, 7
        %v1974 = vsub.s32 2, %v1973
        %v1975 = vrot.slane %v1316, %v1974
        %v1976 = vmul.f32 %v1971, %v1975
        %v1977 = vlaneseq
        %v1978 = vshrl.u32 %v1977, 7
        %v1979 = vsub.s32 3, %v1978
        %v1980 = vrot.slane %v1316, %v1979
        %v1981 = vadd.f32 %v1976, %v1980
        %v1982 = vpack.c.bf16 %v1981, %v1981
        %s1983 = scalar_lea.vmem %s4, 32
        %v1984 = vld [vmem:[%s1983] sm:$0xf]
        %v1985 = vld [vmem:[%s1983 + $0x4] sm:$0xf]
        %v1986 = vld [vmem:[%s1983 + $0x8] sm:$0xf]
        %v1987 = vld [vmem:[%s1983 + $0xc] sm:$0xf]
        %v1988 = vld [vmem:[%s1983 + $0x10] sm:$0xf]
        %v1989 = vld [vmem:[%s1983 + $0x14] sm:$0xf]
        %v1990 = vld [vmem:[%s1983 + $0x18] sm:$0xf]
        %v1991 = vld [vmem:[%s1983 + $0x1c] sm:$0xf]
        %v1992 = vlaneseq
        %v1993 = vshrl.u32 %v1992, 7
        %v1994 = vsub.s32 4, %v1993
        %v1995 = vrot.slane %v1316, %v1994
        %v2004 = vunpack.c.l.b16 %v1984
        %v2005 = vunpack.c.l.b16 %v1985
        %v2006 = vunpack.c.l.b16 %v1986
        %v2007 = vunpack.c.l.b16 %v1987
        %v2008 = vunpack.c.l.b16 %v1988
        %v2009 = vunpack.c.l.b16 %v1989
        %v2010 = vunpack.c.l.b16 %v1990
        %v2011 = vunpack.c.l.b16 %v1991
        %v2012 = vpack.c.b16 %v2005, %v2004
        %v2013 = vpack.c.b16 %v2007, %v2006
        %v2014 = vpack.c.b16 %v2009, %v2008
        %v2015 = vpack.c.b16 %v2011, %v2010
        %v2021 = vsel %vm374, %v1982, 0
        %2023 = vmatprep.subr.bf16.mxu0 0
        %2024 = vmatpush1.bf16.msra.mxu0 %v2012
        %2025 = vmatprep.subr.bf16.mxu0 0
        %2026 = vmatpush1.bf16.msra.mxu0 %v2013
        %2027 = vmatprep.subr.bf16.mxu0 0
        %2028 = vmatpush1.bf16.msra.mxu0 %v2014
        %2029 = vmatprep.subr.bf16.mxu0 0
        %2030 = vmatpush1.bf16.msra.mxu0 %v2015
        %2031 = vmatprep.subr.bf16.mxu0 0
        %2032 = vmatpush1.bf16.msra.mxu0 0
        %2033 = vmatprep.subr.bf16.mxu0 0
        %2034 = vmatpush1.bf16.msra.mxu0 0
        %2035 = vmatprep.subr.bf16.mxu0 0
        %2036 = vmatpush1.bf16.msra.mxu0 0
        %2037 = vmatprep.subr.bf16.mxu0 0
        %2038 = vmatpush1.bf16.msra.mxu0 0
        %2039 = vmatprep.subr.bf16.mxu0 0
        %2040 = vmatpush1.bf16.msra.mxu0 0
        %2041 = vmatprep.subr.bf16.mxu0 0
        %2042 = vmatpush1.bf16.msra.mxu0 0
        %2043 = vmatprep.subr.bf16.mxu0 0
        %2044 = vmatpush1.bf16.msra.mxu0 0
        %2045 = vmatprep.subr.bf16.mxu0 0
        %2046 = vmatpush1.bf16.msra.mxu0 0
        %2047 = vmatprep.subr.bf16.mxu0 0
        %2048 = vmatpush1.bf16.msra.mxu0 0
        %2049 = vmatprep.subr.bf16.mxu0 0
        %2050 = vmatpush1.bf16.msra.mxu0 0
        %2051 = vmatprep.subr.bf16.mxu0 0
        %2052 = vmatpush1.bf16.msra.mxu0 0
        %2053 = vmatprep.subr.bf16.mxu0 0
        %2054 = vmatpush1.bf16.msra.mxu0 0
        %2055 = vmatprep.mubr.bf16.mxu0 0
        %2056 = vmatmul.mubr.bf16.gmra.mrb[0].mxu0 %v2021
        %v2057 = vpop.f32.mrb[0].mxu0
        %v2058 = vadd.f32 %v1995, %v2057
        %v2059 = vpop.f32.mrb[0].mxu0
        %v2060 = vpop.f32.mrb[0].mxu0
        %v2061 = vpop.f32.mrb[0].mxu0
        %2062 = vdwg.mxu0
        %v2063 = vmul.f32 %v2058, 0.5
        %v2064 = vmul.f32 %v2058, 0.70710677
        %vm2065 = vcmp.ge.f32.partialorder %v2064, 0.0
        %v2066 = vsel %vm2065, 1.0, -1.0
        %v2067 = vand.u32 2147483647, %v2064
        %v2068 = vmul.f32 %v2067, 0.3275911
        %v2069 = vadd.f32 %v2068, 1.0
        %v2070 = vrcp.pop %v2069
        %v2071 = vmul.f32 1.0, %v2070
        %v2072 = vmul.f32 %v2071, 1.0614054
        %v2073 = vadd.f32 %v2072, -1.4531521
        %v2074 = vmul.f32 %v2073, %v2071
        %v2075 = vadd.f32 %v2074, 1.4214138
        %v2076 = vmul.f32 %v2075, %v2071
        %v2077 = vadd.f32 %v2076, -0.28449672
        %v2078 = vmul.f32 %v2077, %v2071
        %v2079 = vadd.f32 %v2078, 0.2548296
        %v2080 = vmul.f32 %v2079, %v2071
        %v2081 = vsub.f32 0.0, %v2067
        %v2082 = vmul.f32 %v2081, %v2067
        %v2083 = vmul.f32 %v2082, 1.442695
        %v2084 = vpow.pop %v2083
        %v2085 = vmul.f32 %v2080, %v2084
        %v2086 = vsub.f32 1.0, %v2085
        %v2087 = vmul.f32 %v2066, %v2086
        %v2088 = vadd.f32 %v2087, 1.0
        %v2089 = vmul.f32 %v2063, %v2088
        %v2090 = vpack.c.bf16 %v2089, %v2089
        %s2091 = scalar_lea.vmem %s5, 64
        %v2092 = vld [vmem:[%s2091] sm:$0xf]
        %v2093 = vld [vmem:[%s2091 + $0x4] sm:$0xf]
        %v2094 = vld [vmem:[%s2091 + $0x8] sm:$0xf]
        %v2095 = vld [vmem:[%s2091 + $0xc] sm:$0xf]
        %v2096 = vld [vmem:[%s2091 + $0x10] sm:$0xf]
        %v2097 = vld [vmem:[%s2091 + $0x14] sm:$0xf]
        %v2098 = vld [vmem:[%s2091 + $0x18] sm:$0xf]
        %v2099 = vld [vmem:[%s2091 + $0x1c] sm:$0xf]
        %v2100 = vld [vmem:[%s2091 + $0x20] sm:$0xf]
        %v2101 = vld [vmem:[%s2091 + $0x24] sm:$0xf]
        %v2102 = vld [vmem:[%s2091 + $0x28] sm:$0xf]
        %v2103 = vld [vmem:[%s2091 + $0x2c] sm:$0xf]
        %v2104 = vld [vmem:[%s2091 + $0x30] sm:$0xf]
        %v2105 = vld [vmem:[%s2091 + $0x34] sm:$0xf]
        %v2106 = vld [vmem:[%s2091 + $0x38] sm:$0xf]
        %v2107 = vld [vmem:[%s2091 + $0x3c] sm:$0xf]
        %v2108 = vlaneseq
        %v2109 = vshrl.u32 %v2108, 7
        %v2110 = vsub.s32 5, %v2109
        %v2111 = vrot.slane %v1316, %v2110
        %v2128 = vunpack.c.l.b16 %v2092
        %v2129 = vunpack.c.l.b16 %v2093
        %v2130 = vunpack.c.l.b16 %v2094
        %v2131 = vunpack.c.l.b16 %v2095
        %v2132 = vunpack.c.l.b16 %v2096
        %v2133 = vunpack.c.l.b16 %v2097
        %v2134 = vunpack.c.l.b16 %v2098
        %v2135 = vunpack.c.l.b16 %v2099
        %v2136 = vunpack.c.l.b16 %v2100
        %v2137 = vunpack.c.l.b16 %v2101
        %v2138 = vunpack.c.l.b16 %v2102
        %v2139 = vunpack.c.l.b16 %v2103
        %v2140 = vunpack.c.l.b16 %v2104
        %v2141 = vunpack.c.l.b16 %v2105
        %v2142 = vunpack.c.l.b16 %v2106
        %v2143 = vunpack.c.l.b16 %v2107
        %v2144 = vpack.c.b16 %v2129, %v2128
        %v2145 = vpack.c.b16 %v2131, %v2130
        %v2146 = vpack.c.b16 %v2133, %v2132
        %v2147 = vpack.c.b16 %v2135, %v2134
        %v2148 = vpack.c.b16 %v2137, %v2136
        %v2149 = vpack.c.b16 %v2139, %v2138
        %v2150 = vpack.c.b16 %v2141, %v2140
        %v2151 = vpack.c.b16 %v2143, %v2142
        %2160 = vmatprep.subr.bf16.mxu0 0
        %2161 = vmatpush1.bf16.msra.mxu0 %v2144
        %2162 = vmatprep.subr.bf16.mxu0 0
        %2163 = vmatpush1.bf16.msra.mxu0 %v2145
        %2164 = vmatprep.subr.bf16.mxu0 0
        %2165 = vmatpush1.bf16.msra.mxu0 %v2146
        %2166 = vmatprep.subr.bf16.mxu0 0
        %2167 = vmatpush1.bf16.msra.mxu0 %v2147
        %2168 = vmatprep.subr.bf16.mxu0 0
        %2169 = vmatpush1.bf16.msra.mxu0 %v2148
        %2170 = vmatprep.subr.bf16.mxu0 0
        %2171 = vmatpush1.bf16.msra.mxu0 %v2149
        %2172 = vmatprep.subr.bf16.mxu0 0
        %2173 = vmatpush1.bf16.msra.mxu0 %v2150
        %2174 = vmatprep.subr.bf16.mxu0 0
        %2175 = vmatpush1.bf16.msra.mxu0 %v2151
        %2176 = vmatprep.subr.bf16.mxu0 0
        %2177 = vmatpush1.bf16.msra.mxu0 0
        %2178 = vmatprep.subr.bf16.mxu0 0
        %2179 = vmatpush1.bf16.msra.mxu0 0
        %2180 = vmatprep.subr.bf16.mxu0 0
        %2181 = vmatpush1.bf16.msra.mxu0 0
        %2182 = vmatprep.subr.bf16.mxu0 0
        %2183 = vmatpush1.bf16.msra.mxu0 0
        %2184 = vmatprep.subr.bf16.mxu0 0
        %2185 = vmatpush1.bf16.msra.mxu0 0
        %2186 = vmatprep.subr.bf16.mxu0 0
        %2187 = vmatpush1.bf16.msra.mxu0 0
        %2188 = vmatprep.subr.bf16.mxu0 0
        %2189 = vmatpush1.bf16.msra.mxu0 0
        %2190 = vmatprep.subr.bf16.mxu0 0
        %2191 = vmatpush1.bf16.msra.mxu0 0
        %2192 = vmatprep.mubr.bf16.mxu0 0
        %2193 = vmatmul.mubr.bf16.gmra.mrb[0].mxu0 %v2090
        %v2194 = vpop.f32.mrb[0].mxu0
        %v2195 = vadd.f32 %v2111, %v2194
        %v2196 = vpop.f32.mrb[0].mxu0
        %v2197 = vpop.f32.mrb[0].mxu0
        %v2198 = vpop.f32.mrb[0].mxu0
        %2199 = vdwg.mxu0
        %v2200 = vadd.f32 %v2195, %v1981
        %v2201 = vsel %vm374, %v2200, 0.0
        %2202 = vadd.xlane.f32.xlu0 %v2201
        %v2203 = vpop.xlane.xlu0 %2202
        %v2204 = vmul.f32 %v2203, %v378
        %v2205 = vsub.f32 %v2200, %v2204
        %v2206 = vmul.f32 %v2205, %v2205
        %v2207 = vsel %vm374, %v2206, 0.0
        %2208 = vadd.xlane.f32.xlu0 %v2207
        %v2209 = vpop.xlane.xlu0 %2208
        %v2210 = vmul.f32 %v2209, %v378
        %v2211 = vadd.f32 %v2210, 1e-12
        %v2212 = vrsqrt.pop %v2211
        %v2213 = vmul.f32 %v2205, %v2212
        %v2214 = vlaneseq
        %v2215 = vshrl.u32 %v2214, 7
        %v2216 = vsub.s32 6, %v2215
        %v2217 = vrot.slane %v1316, %v2216
        %v2218 = vmul.f32 %v2213, %v2217
        %v2219 = vlaneseq
        %v2220 = vshrl.u32 %v2219, 7
        %v2221 = vsub.s32 7, %v2220
        %v2222 = vrot.slane %v1316, %v2221
        %v2223 = vadd.f32 %v2218, %v2222
        %v2224 = vpack.c.bf16 %v2223, %v2223
        %v2225 = vld [vmem:[%s7] sm:$0xf]
        %v2226 = vld [vmem:[%s7 + $0x4] sm:$0xf]
        %v2227 = vld [vmem:[%s7 + $0x8] sm:$0xf]
        %v2228 = vld [vmem:[%s7 + $0xc] sm:$0xf]
        %v2229 = vld [vmem:[%s7 + $0x10] sm:$0xf]
        %v2230 = vld [vmem:[%s7 + $0x14] sm:$0xf]
        %v2231 = vld [vmem:[%s7 + $0x18] sm:$0xf]
        %v2232 = vld [vmem:[%s7 + $0x1c] sm:$0xf]
        %v2241 = vunpack.c.l.b16 %v2225
        %v2242 = vunpack.c.l.b16 %v2226
        %v2243 = vunpack.c.l.b16 %v2227
        %v2244 = vunpack.c.l.b16 %v2228
        %v2245 = vunpack.c.l.b16 %v2229
        %v2246 = vunpack.c.l.b16 %v2230
        %v2247 = vunpack.c.l.b16 %v2231
        %v2248 = vunpack.c.l.b16 %v2232
        %v2249 = vpack.c.b16 %v2242, %v2241
        %v2250 = vpack.c.b16 %v2244, %v2243
        %v2251 = vpack.c.b16 %v2246, %v2245
        %v2252 = vpack.c.b16 %v2248, %v2247
        %v2258 = vrot.slane %v372, 2
        %v2261 = vsel %vm374, %v2224, 0
        %2263 = vmatprep.subr.bf16.mxu0 0
        %2264 = vmatpush1.bf16.msra.mxu0 %v2249
        %2265 = vmatprep.subr.bf16.mxu0 0
        %2266 = vmatpush1.bf16.msra.mxu0 %v2250
        %2267 = vmatprep.subr.bf16.mxu0 0
        %2268 = vmatpush1.bf16.msra.mxu0 %v2251
        %2269 = vmatprep.subr.bf16.mxu0 0
        %2270 = vmatpush1.bf16.msra.mxu0 %v2252
        %2271 = vmatprep.subr.bf16.mxu0 0
        %2272 = vmatpush1.bf16.msra.mxu0 0
        %2273 = vmatprep.subr.bf16.mxu0 0
        %2274 = vmatpush1.bf16.msra.mxu0 0
        %2275 = vmatprep.subr.bf16.mxu0 0
        %2276 = vmatpush1.bf16.msra.mxu0 0
        %2277 = vmatprep.subr.bf16.mxu0 0
        %2278 = vmatpush1.bf16.msra.mxu0 0
        %2279 = vmatprep.subr.bf16.mxu0 0
        %2280 = vmatpush1.bf16.msra.mxu0 0
        %2281 = vmatprep.subr.bf16.mxu0 0
        %2282 = vmatpush1.bf16.msra.mxu0 0
        %2283 = vmatprep.subr.bf16.mxu0 0
        %2284 = vmatpush1.bf16.msra.mxu0 0
        %2285 = vmatprep.subr.bf16.mxu0 0
        %2286 = vmatpush1.bf16.msra.mxu0 0
        %2287 = vmatprep.subr.bf16.mxu0 0
        %2288 = vmatpush1.bf16.msra.mxu0 0
        %2289 = vmatprep.subr.bf16.mxu0 0
        %2290 = vmatpush1.bf16.msra.mxu0 0
        %2291 = vmatprep.subr.bf16.mxu0 0
        %2292 = vmatpush1.bf16.msra.mxu0 0
        %2293 = vmatprep.subr.bf16.mxu0 0
        %2294 = vmatpush1.bf16.msra.mxu0 0
        %2295 = vmatprep.mubr.bf16.mxu0 0
        %2296 = vmatmul.mubr.bf16.gmra.mrb[0].mxu0 %v2261
        %v2297 = vpop.f32.mrb[0].mxu0
        %v2298 = vadd.f32 %v2258, %v2297
        %v2299 = vpop.f32.mrb[0].mxu0
        %v2300 = vpop.f32.mrb[0].mxu0
        %v2301 = vpop.f32.mrb[0].mxu0
        %2302 = vdwg.mxu0
        %v2303 = vtanh.pop %v2298
        %v2304 = vpack.c.bf16 %v2303, %v2303
        %v2305 = vld [vmem:[%s8] sm:$0xf]
        %v2306 = vld [vmem:[%s8 + $0x4] sm:$0xf]
        %v2307 = vld [vmem:[%s8 + $0x8] sm:$0xf]
        %v2308 = vld [vmem:[%s8 + $0xc] sm:$0xf]
        %v2309 = vld [vmem:[%s8 + $0x10] sm:$0xf]
        %v2310 = vld [vmem:[%s8 + $0x14] sm:$0xf]
        %v2311 = vld [vmem:[%s8 + $0x18] sm:$0xf]
        %v2312 = vld [vmem:[%s8 + $0x1c] sm:$0xf]
        %v2321 = vunpack.c.l.b16 %v2305
        %v2322 = vunpack.c.l.b16 %v2306
        %v2323 = vunpack.c.l.b16 %v2307
        %v2324 = vunpack.c.l.b16 %v2308
        %v2325 = vunpack.c.l.b16 %v2309
        %v2326 = vunpack.c.l.b16 %v2310
        %v2327 = vunpack.c.l.b16 %v2311
        %v2328 = vunpack.c.l.b16 %v2312
        %v2329 = vpack.c.b16 %v2322, %v2321
        %v2330 = vpack.c.b16 %v2324, %v2323
        %v2331 = vpack.c.b16 %v2326, %v2325
        %v2332 = vpack.c.b16 %v2328, %v2327
        %v2337 = vrot.slane %v372, 3
        %v2340 = vsel %vm374, %v2304, 0
        %2342 = vmatprep.subr.bf16.mxu0 0
        %2343 = vmatpush1.bf16.msra.mxu0 %v2329
        %2344 = vmatprep.subr.bf16.mxu0 0
        %2345 = vmatpush1.bf16.msra.mxu0 %v2330
        %2346 = vmatprep.subr.bf16.mxu0 0
        %2347 = vmatpush1.bf16.msra.mxu0 %v2331
        %2348 = vmatprep.subr.bf16.mxu0 0
        %2349 = vmatpush1.bf16.msra.mxu0 %v2332
        %2350 = vmatprep.subr.bf16.mxu0 0
        %2351 = vmatpush1.bf16.msra.mxu0 0
        %2352 = vmatprep.subr.bf16.mxu0 0
        %2353 = vmatpush1.bf16.msra.mxu0 0
        %2354 = vmatprep.subr.bf16.mxu0 0
        %2355 = vmatpush1.bf16.msra.mxu0 0
        %2356 = vmatprep.subr.bf16.mxu0 0
        %2357 = vmatpush1.bf16.msra.mxu0 0
        %2358 = vmatprep.subr.bf16.mxu0 0
        %2359 = vmatpush1.bf16.msra.mxu0 0
        %2360 = vmatprep.subr.bf16.mxu0 0
        %2361 = vmatpush1.bf16.msra.mxu0 0
        %2362 = vmatprep.subr.bf16.mxu0 0
        %2363 = vmatpush1.bf16.msra.mxu0 0
        %2364 = vmatprep.subr.bf16.mxu0 0
        %2365 = vmatpush1.bf16.msra.mxu0 0
        %2366 = vmatprep.subr.bf16.mxu0 0
        %2367 = vmatpush1.bf16.msra.mxu0 0
        %2368 = vmatprep.subr.bf16.mxu0 0
        %2369 = vmatpush1.bf16.msra.mxu0 0
        %2370 = vmatprep.subr.bf16.mxu0 0
        %2371 = vmatpush1.bf16.msra.mxu0 0
        %2372 = vmatprep.subr.bf16.mxu0 0
        %2373 = vmatpush1.bf16.msra.mxu0 0
        %2374 = vmatprep.mubr.bf16.mxu0 0
        %2375 = vmatmul.mubr.bf16.gmra.mrb[0].mxu0 %v2340
        %v2376 = vpop.f32.mrb[0].mxu0
        %v2377 = vadd.f32 %v2337, %v2376
        %v2378 = vpop.f32.mrb[0].mxu0
        %v2379 = vpop.f32.mrb[0].mxu0
        %v2380 = vpop.f32.mrb[0].mxu0
        %2381 = vdwg.mxu0
        %2382 = vst [vmem:[%s360] sm:$0x1] %v2377
        %s2383 = sand.u32 %s252, 1
        %s2384 = scalar_lea.sflag [#allocation4], %s2383
        %s2385 = sand.u32 %s252, 1
        %s2386 = scalar_lea.vmem [#allocation3], %s2385
        // Predicated region
        $region61: #{bert_base_forward.1} parent=59 // pred_check
          %p2387 = pneg %p262
        $region62: #{bert_base_forward.1} parent=59 // pred_check_branch
          %2389 = sbr.rel (%p2387) target = $region64
        $region63: #{bert_base_forward.1} parent=59 // pred_region
          %s2391 = ssub.s32 16, 16
          %2392 = vsyncadd %s2384, %s2391
          %s2393 = smul.addr %s24, 16
          %s2394 = scalar_lea.hbm %s10, %s2393
          %s2396 = sshll.u32 %s2386, 4
          %s2397 = int_to_ptr.vmem [resolvable:$true] %s2396
          %2399 = dma.vmem_to_hbm [thread:$0]  %s2397, 16, %s2394, %s2384
        $region64: #{bert_base_forward.1} parent=59 // pred_fallthru
          _
      $region60: #{bert_base_forward.1} parent=5 // pred_fallthru
        _
      %p2400 = scmp.le.s32.totalorder 2, %s19
      // Predicated region
      $region65: #{bert_base_forward.1} parent=5 // pred_check
        %p2401 = pneg %p2400
      $region66: #{bert_base_forward.1} parent=5 // pred_check_branch
        %2403 = sbr.rel (%p2401) target = $region68
      $region67: #{bert_base_forward.1} parent=5 // pred_region
        %s2404 = ssub.s32 %s19, 2
        // Predicated region
        $region69: #{bert_base_forward.1} parent=67 // pred_check
          %p2405 = pneg %p268
        $region70: #{bert_base_forward.1} parent=67 // pred_check_branch
          %2407 = sbr.rel (%p2405) target = $region72
        $region71: #{bert_base_forward.1} parent=67 // pred_region
          %s2408 = sand.u32 %s253, 1
          %s2409 = scalar_lea.sflag [#allocation4], %s2408
          %s2410 = sand.u32 %s253, 1
          %s2411 = scalar_lea.vmem [#allocation3], %s2410
          %2412 = dma.done %s2409, 16
        $region72: #{bert_base_forward.1} parent=67 // pred_fallthru
          _
      $region68: #{bert_base_forward.1} parent=5 // pred_fallthru
        _
    $region6: #{bert_base_forward.1} parent=1 // loop_footer
      %s23 = sadd.s32 1, %s19
    $region7: #{bert_base_forward.1} parent=1 // loop_footer_branch
      %18 = sbr.rel target = $region3
    $region8: #{bert_base_forward.1} parent=1 // loop_exit
      _
    %2413 = vsyncpa [#allocation4], 1
    %s2414 = scalar_lea.sflag [#allocation4], 1
    %2415 = vsyncpa %s2414, 1

</llo_original>
